<compile_context>
chip_gen: v5e
topology: v5e:2x2
jax: 0.10.0
libtpu: 0.0.40
codegen_flags: <defaults>
</compile_context>

<pallas_src>
import numpy as np
import jax
import jax.numpy as jnp
from jax import lax
from jax.experimental import pallas as pl
from jax.experimental.pallas import tpu as pltpu

EPS = 1e-5
MATMUL_DTYPE = jnp.bfloat16   # MXU runs bf16 at full rate on v6e/v7x; f32 accum.


# --------------------------------------------------------------------------
# In-kernel helpers
# --------------------------------------------------------------------------
def _zero_halo(pad_ref):
    """Zero only the 1-pixel halo strips of a (H+2, W+2, C) VMEM scratch."""
    Hp, Wp, C = pad_ref.shape
    zrow = jnp.zeros((1, Wp, C), pad_ref.dtype)
    zcol = jnp.zeros((Hp, 1, C), pad_ref.dtype)
    pad_ref[0:1, :, :] = zrow
    pad_ref[Hp - 1:Hp, :, :] = zrow
    pad_ref[:, 0:1, :] = zcol
    pad_ref[:, Wp - 1:Wp, :] = zcol


def _conv3x3_im2col(pad_ref, w_ref, H, W):
    """3x3 'valid' conv over the padded scratch as a single im2col matmul.

    pad_ref : (H+2, W+2, Cin) f32 VMEM scratch (halo already zeroed)
    w_ref   : (9*Cin, Cout)   bf16 weight, flattened in (ky, kx, cin) order
    returns : (H*W, Cout)     f32 accumulator
    """
    C = pad_ref.shape[-1]
    xp = pad_ref[...].astype(w_ref.dtype)                   # cast once, in vregs
    cols = [xp[dy:dy + H, dx:dx + W, :].reshape(H * W, C)
            for dy in range(3) for dx in range(3)]
    patch = jnp.concatenate(cols, axis=-1)                  # (H*W, 9*Cin) bf16
    return jnp.dot(patch, w_ref[...], preferred_element_type=jnp.float32)


def _partial_stats(y):
    """Single-pass per-channel [sum; sum-of-squares] of an (N, C) f32 tile."""
    s = jnp.sum(y, axis=0, keepdims=True)
    ss = jnp.sum(y * y, axis=0, keepdims=True)
    return jnp.concatenate([s, ss], axis=0)                 # (2, C)


# --------------------------------------------------------------------------
# Kernels (grid = (B,), one image per step, batch axis is "parallel")
# --------------------------------------------------------------------------
def _conv1_stats_kernel(x_ref, w_ref, y_ref, st_ref, xpad_ref):
    """conv1 (3x3, pad 1) + per-tile BN1 partial statistics."""
    H, W, _ = x_ref.shape
    _zero_halo(xpad_ref)
    xpad_ref[1:H + 1, 1:W + 1, :] = x_ref[...]
    y = _conv3x3_im2col(xpad_ref, w_ref, H, W)              # (H*W, Cout) f32
    y_ref[...] = y.reshape(y_ref.shape)
    st_ref[...] = _partial_stats(y)


def _bn1_relu_conv2_stats_kernel(y1_ref, aff_ref, w_ref, y2_ref, st_ref,
                                 hpad_ref):
    """Apply folded BN1 + ReLU, then conv2 + per-tile BN2 partial stats."""
    H, W, Cout = y1_ref.shape
    scale = aff_ref[0:1, :].reshape(1, 1, Cout)
    shift = aff_ref[1:2, :].reshape(1, 1, Cout)
    h = jnp.maximum(y1_ref[...] * scale + shift, 0.0)       # f32, one FMA/elem
    _zero_halo(hpad_ref)
    hpad_ref[1:H + 1, 1:W + 1, :] = h
    y = _conv3x3_im2col(hpad_ref, w_ref, H, W)              # (H*W, Cout) f32
    y2_ref[...] = y.reshape(y2_ref.shape)
    st_ref[...] = _partial_stats(y)


def _bn2_add_relu_kernel(y2_ref, x_ref, aff_ref, o_ref):
    """Apply folded BN2, add identity residual, final ReLU."""
    Cout = y2_ref.shape[-1]
    scale = aff_ref[0:1, :].reshape(1, 1, Cout)
    shift = aff_ref[1:2, :].reshape(1, 1, Cout)
    o_ref[...] = jnp.maximum(y2_ref[...] * scale + shift + x_ref[...], 0.0)


# --------------------------------------------------------------------------
# Wrapper
# --------------------------------------------------------------------------
def _img_spec(H, W, C):
    return pl.BlockSpec((None, H, W, C), lambda b: (b, 0, 0, 0))


def _rep_spec(shape):
    # Same (full) block for every grid step -> fetched once, no re-DMA.
    return pl.BlockSpec(shape, lambda b: (0,) * len(shape))


def _fold_bn(partial_stats, gamma, beta, count):
    """Combine per-tile [sum; sumsq] and fold BN into a (2, C) scale/shift."""
    tot = jnp.sum(partial_stats, axis=0)                    # (2, C)
    mean = tot[0] / count
    var = jnp.maximum(tot[1] / count - mean * mean, 0.0)    # biased variance
    inv = lax.rsqrt(var + EPS)
    scale = gamma * inv
    shift = beta - mean * scale
    return jnp.stack([scale, shift], axis=0).astype(jnp.float32)   # (2, C)


@jax.jit
def residual_block(x_nchw, w1, w2, g1, b1, g2, b2):
    """NCHW in / NCHW out; weights in HWIO; train-mode BN."""
    x = jnp.transpose(x_nchw, (0, 2, 3, 1)).astype(jnp.float32)    # NHWC
    B, H, W, Cin = x.shape
    Cout = w1.shape[-1]
    count = B * H * W

    # im2col weight layout: (ky, kx, cin) flattened -> rows, cout -> lanes.
    w1m = w1.reshape(9 * Cin, Cout).astype(MATMUL_DTYPE)
    w2m = w2.reshape(9 * Cout, Cout).astype(MATMUL_DTYPE)

    cparams = pltpu.CompilerParams(
        dimension_semantics=("parallel",),        # v7x: split batch over 2 TCs
        vmem_limit_bytes=32 * 1024 * 1024)        # per-step blocks are ~2.5 MB

    st_spec = pl.BlockSpec((None, 2, Cout), lambda b: (b, 0, 0))
    st_shape = jax.ShapeDtypeStruct((B, 2, Cout), jnp.float32)

    # ---- pass 1: conv1 + per-tile BN1 partial stats -----------------------
    y1, st1 = pl.pallas_call(
        _conv1_stats_kernel,
        grid=(B,),
        in_specs=[_img_spec(H, W, Cin), _rep_spec((9 * Cin, Cout))],
        out_specs=[_img_spec(H, W, Cout), st_spec],
        out_shape=[jax.ShapeDtypeStruct((B, H, W, Cout), jnp.float32), st_shape],
        scratch_shapes=[pltpu.VMEM((H + 2, W + 2, Cin), jnp.float32)],
        compiler_params=cparams,
    )(x, w1m)

    aff1 = _fold_bn(st1, g1, b1, count)       # tiny (2, C)-vector JAX glue

    # ---- pass 2: BN1 + ReLU -> conv2 + per-tile BN2 partial stats ---------
    y2, st2 = pl.pallas_call(
        _bn1_relu_conv2_stats_kernel,
        grid=(B,),
        in_specs=[_img_spec(H, W, Cout), _rep_spec((2, Cout)),
                  _rep_spec((9 * Cout, Cout))],
        out_specs=[_img_spec(H, W, Cout), st_spec],
        out_shape=[jax.ShapeDtypeStruct((B, H, W, Cout), jnp.float32), st_shape],
        scratch_shapes=[pltpu.VMEM((H + 2, W + 2, Cout), jnp.float32)],
        compiler_params=cparams,
    )(y1, aff1, w2m)

    aff2 = _fold_bn(st2, g2, b2, count)

    # ---- pass 3: BN2 + identity residual + ReLU ---------------------------
    out_nhwc = pl.pallas_call(
        _bn2_add_relu_kernel,
        grid=(B,),
        in_specs=[_img_spec(H, W, Cout), _img_spec(H, W, Cin),
                  _rep_spec((2, Cout))],
        out_specs=_img_spec(H, W, Cout),
        out_shape=jax.ShapeDtypeStruct((B, H, W, Cout), jnp.float32),
        compiler_params=cparams,
    )(y2, x, aff2)

    return jnp.transpose(out_nhwc, (0, 3, 1, 2))            # back to NCHW


# --------------------------------------------------------------------------
# Pure-JAX reference mirroring the PyTorch forward (train-mode BN).
# Convolutions use the same bf16 x bf16 -> f32 MXU precision as the kernel;
# all BN / residual / ReLU math stays f32.
# --------------------------------------------------------------------------
def reference(x_nchw, w1, w2, g1, b1, g2, b2):
    def conv(x, w):
        return lax.conv_general_dilated(
            x.astype(MATMUL_DTYPE), w.astype(MATMUL_DTYPE),
            window_strides=(1, 1), padding=((1, 1), (1, 1)),
            dimension_numbers=("NCHW", "HWIO", "NCHW"),
            preferred_element_type=jnp.float32)

    def bn(t, g, b):
        mean = jnp.mean(t, axis=(0, 2, 3), keepdims=True)
        var = jnp.mean((t - mean) ** 2, axis=(0, 2, 3), keepdims=True)
        return ((t - mean) * lax.rsqrt(var + EPS)
                * g.reshape(1, -1, 1, 1) + b.reshape(1, -1, 1, 1))

    out = jnp.maximum(bn(conv(x_nchw, w1), g1, b1), 0.0)
    out = bn(conv(out, w2), g2, b2)
    return jnp.maximum(out + x_nchw, 0.0)


if __name__ == "__main__":
    # ResNet-like channel count (multiple of 128 -> fully lane-dense),
    # small spatial/batch so the whole test stays tiny.
    B, C, H, W = 2, 128, 16, 16      # i_channel == o_channel (downsample=None)
    key = jax.random.PRNGKey(0)
    kx, k1, k2, kg1, kb1, kg2, kb2 = jax.random.split(key, 7)

    x = jax.random.normal(kx, (B, C, H, W), jnp.float32)
    w1 = 0.1 * jax.random.normal(k1, (3, 3, C, C), jnp.float32)   # HWIO
    w2 = 0.1 * jax.random.normal(k2, (3, 3, C, C), jnp.float32)   # HWIO
    g1 = 1.0 + 0.1 * jax.random.normal(kg1, (C,), jnp.float32)
    b1 = 0.1 * jax.random.normal(kb1, (C,), jnp.float32)
    g2 = 1.0 + 0.1 * jax.random.normal(kg2, (C,), jnp.float32)
    b2 = 0.1 * jax.random.normal(kb2, (C,), jnp.float32)

    out = jax.block_until_ready(residual_block(x, w1, w2, g1, b1, g2, b2))
    ref = jax.block_until_ready(reference(x, w1, w2, g1, b1, g2, b2))

    np.testing.assert_allclose(np.asarray(out), np.asarray(ref),
                               rtol=5e-3, atol=5e-3)
    print("KERNEL_OK")
</pallas_src>

<mosaic_0001>
module attributes {stable_mosaic.version = 11 : i64} {
  func.func @_conv1_stats_kernel(%arg0: i32, %arg1: memref<1x16x16x128xf32, #tpu.memory_space<vmem>>, %arg2: memref<1152x128xbf16, #tpu.memory_space<vmem>>, %arg3: memref<1x16x16x128xf32, #tpu.memory_space<vmem>>, %arg4: memref<1x2x128xf32, #tpu.memory_space<vmem>>, %arg5: memref<18x18x128xf32, #tpu.memory_space<vmem>>) attributes {dimension_semantics = [#tpu.dimension_semantics<parallel>], iteration_bounds = array<i64: 2>, scalar_prefetch = 0 : i64, scratch_operands = 1 : i64, tpu.core_type = #tpu.core_type<tc>, window_params = [{transform_indices = @transform_0, window_bounds = array<i64: 1, 16, 16, 128>}, {pipeline_mode = #tpu.pipeline_mode<synchronous>, transform_indices = @transform_1, window_bounds = array<i64: 1152, 128>}, {transform_indices = @transform_2, window_bounds = array<i64: 1, 16, 16, 128>}, {transform_indices = @transform_3, window_bounds = array<i64: 1, 2, 128>}]} {
    %cst = arith.constant 0.000000e+00 : f32
    %0 = vector.broadcast %cst : f32 to vector<1x18x128xf32>
    %cst_0 = arith.constant 0.000000e+00 : f32
    %1 = vector.broadcast %cst_0 : f32 to vector<18x1x128xf32>
    %c0 = arith.constant 0 : index
    %c0_1 = arith.constant 0 : index
    %c0_2 = arith.constant 0 : index
    %2 = vector.load %arg5[%c0, %c0_1, %c0_2] : memref<18x18x128xf32, #tpu.memory_space<vmem>>, vector<1x18x128xf32>
    tpu.vector_store %arg5[%c0, %c0_1, %c0_2], %0 {strides = array<i32>} : memref<18x18x128xf32, #tpu.memory_space<vmem>>, vector<1x18x128xf32>,
    %c17 = arith.constant 17 : index
    %c0_3 = arith.constant 0 : index
    %c0_4 = arith.constant 0 : index
    %3 = vector.load %arg5[%c17, %c0_3, %c0_4] : memref<18x18x128xf32, #tpu.memory_space<vmem>>, vector<1x18x128xf32>
    tpu.vector_store %arg5[%c17, %c0_3, %c0_4], %0 {strides = array<i32>} : memref<18x18x128xf32, #tpu.memory_space<vmem>>, vector<1x18x128xf32>,
    %c0_5 = arith.constant 0 : index
    %c0_6 = arith.constant 0 : index
    %c0_7 = arith.constant 0 : index
    %4 = vector.load %arg5[%c0_5, %c0_6, %c0_7] : memref<18x18x128xf32, #tpu.memory_space<vmem>>, vector<18x1x128xf32>
    tpu.vector_store %arg5[%c0_5, %c0_6, %c0_7], %1 {strides = array<i32>} : memref<18x18x128xf32, #tpu.memory_space<vmem>>, vector<18x1x128xf32>,
    %c0_8 = arith.constant 0 : index
    %c17_9 = arith.constant 17 : index
    %c0_10 = arith.constant 0 : index
    %5 = vector.load %arg5[%c0_8, %c17_9, %c0_10] : memref<18x18x128xf32, #tpu.memory_space<vmem>>, vector<18x1x128xf32>
    tpu.vector_store %arg5[%c0_8, %c17_9, %c0_10], %1 {strides = array<i32>} : memref<18x18x128xf32, #tpu.memory_space<vmem>>, vector<18x1x128xf32>,
    %c0_11 = arith.constant 0 : index
    %c0_12 = arith.constant 0 : index
    %c0_13 = arith.constant 0 : index
    %c0_14 = arith.constant 0 : index
    %6 = vector.load %arg1[%c0_11, %c0_12, %c0_13, %c0_14] : memref<1x16x16x128xf32, #tpu.memory_space<vmem>>, vector<1x16x16x128xf32>
    %7 = vector.shape_cast %6 : vector<1x16x16x128xf32> to vector<16x16x128xf32>
    %c1 = arith.constant 1 : index
    %c1_15 = arith.constant 1 : index
    %c0_16 = arith.constant 0 : index
    %8 = vector.load %arg5[%c1, %c1_15, %c0_16] : memref<18x18x128xf32, #tpu.memory_space<vmem>>, vector<16x16x128xf32>
    tpu.vector_store %arg5[%c1, %c1_15, %c0_16], %7 {strides = array<i32>} : memref<18x18x128xf32, #tpu.memory_space<vmem>>, vector<16x16x128xf32>,
    %c0_17 = arith.constant 0 : index
    %c0_18 = arith.constant 0 : index
    %c0_19 = arith.constant 0 : index
    %9 = vector.load %arg5[%c0_17, %c0_18, %c0_19] : memref<18x18x128xf32, #tpu.memory_space<vmem>>, vector<18x18x128xf32>
    %10 = arith.truncf %9 : vector<18x18x128xf32> to vector<18x18x128xbf16>
    %11 = vector.extract_strided_slice %10 {offsets = [0, 0, 0], sizes = [16, 16, 128], strides = [1, 1, 1]} : vector<18x18x128xbf16> to vector<16x16x128xbf16>
    %12 = vector.shape_cast %11 : vector<16x16x128xbf16> to vector<256x128xbf16>
    %13 = vector.extract_strided_slice %10 {offsets = [0, 1, 0], sizes = [16, 16, 128], strides = [1, 1, 1]} : vector<18x18x128xbf16> to vector<16x16x128xbf16>
    %14 = vector.shape_cast %13 : vector<16x16x128xbf16> to vector<256x128xbf16>
    %15 = vector.extract_strided_slice %10 {offsets = [0, 2, 0], sizes = [16, 16, 128], strides = [1, 1, 1]} : vector<18x18x128xbf16> to vector<16x16x128xbf16>
    %16 = vector.shape_cast %15 : vector<16x16x128xbf16> to vector<256x128xbf16>
    %17 = vector.extract_strided_slice %10 {offsets = [1, 0, 0], sizes = [16, 16, 128], strides = [1, 1, 1]} : vector<18x18x128xbf16> to vector<16x16x128xbf16>
    %18 = vector.shape_cast %17 : vector<16x16x128xbf16> to vector<256x128xbf16>
    %19 = vector.extract_strided_slice %10 {offsets = [1, 1, 0], sizes = [16, 16, 128], strides = [1, 1, 1]} : vector<18x18x128xbf16> to vector<16x16x128xbf16>
    %20 = vector.shape_cast %19 : vector<16x16x128xbf16> to vector<256x128xbf16>
    %21 = vector.extract_strided_slice %10 {offsets = [1, 2, 0], sizes = [16, 16, 128], strides = [1, 1, 1]} : vector<18x18x128xbf16> to vector<16x16x128xbf16>
    %22 = vector.shape_cast %21 : vector<16x16x128xbf16> to vector<256x128xbf16>
    %23 = vector.extract_strided_slice %10 {offsets = [2, 0, 0], sizes = [16, 16, 128], strides = [1, 1, 1]} : vector<18x18x128xbf16> to vector<16x16x128xbf16>
    %24 = vector.shape_cast %23 : vector<16x16x128xbf16> to vector<256x128xbf16>
    %25 = vector.extract_strided_slice %10 {offsets = [2, 1, 0], sizes = [16, 16, 128], strides = [1, 1, 1]} : vector<18x18x128xbf16> to vector<16x16x128xbf16>
    %26 = vector.shape_cast %25 : vector<16x16x128xbf16> to vector<256x128xbf16>
    %27 = vector.extract_strided_slice %10 {offsets = [2, 2, 0], sizes = [16, 16, 128], strides = [1, 1, 1]} : vector<18x18x128xbf16> to vector<16x16x128xbf16>
    %28 = vector.shape_cast %27 : vector<16x16x128xbf16> to vector<256x128xbf16>
    %29 = tpu.concatenate %12, %14, %16, %18, %20, %22, %24, %26, %28 in 1 : vector<256x128xbf16>, vector<256x128xbf16>, vector<256x128xbf16>, vector<256x128xbf16>, vector<256x128xbf16>, vector<256x128xbf16>, vector<256x128xbf16>, vector<256x128xbf16>, vector<256x128xbf16> -> vector<256x1152xbf16>
    %c0_20 = arith.constant 0 : index
    %c0_21 = arith.constant 0 : index
    %30 = vector.load %arg2[%c0_20, %c0_21] : memref<1152x128xbf16, #tpu.memory_space<vmem>>, vector<1152x128xbf16>
    %cst_22 = arith.constant dense<0.000000e+00> : vector<256x128xf32>
    %31 = tpu.matmul %29, %30, %cst_22 {dimension_numbers = #tpu.dot_dimension_numbers<[1], [0], [0], [1], [0, 0, 1, 1], [], []>} : vector<256x1152xbf16>, vector<1152x128xbf16>, vector<256x128xf32> -> vector<256x128xf32>
    %32 = vector.shape_cast %31 : vector<256x128xf32> to vector<16x16x128xf32>
    %c0_23 = arith.constant 0 : index
    %c0_24 = arith.constant 0 : index
    %c0_25 = arith.constant 0 : index
    %c0_26 = arith.constant 0 : index
    %33 = vector.load %arg3[%c0_23, %c0_24, %c0_25, %c0_26] : memref<1x16x16x128xf32, #tpu.memory_space<vmem>>, vector<1x16x16x128xf32>
    %34 = vector.shape_cast %33 : vector<1x16x16x128xf32> to vector<16x16x128xf32>
    %35 = vector.shape_cast %32 : vector<16x16x128xf32> to vector<1x16x16x128xf32>
    tpu.vector_store %arg3[%c0_23, %c0_24, %c0_25, %c0_26], %35 {strides = array<i32>} : memref<1x16x16x128xf32, #tpu.memory_space<vmem>>, vector<1x16x16x128xf32>,
    %cst_27 = arith.constant dense<0.000000e+00> : vector<128xf32>
    %36 = vector.multi_reduction <add>, %31, %cst_27 [0] : vector<256x128xf32> to vector<128xf32>
    %37 = vector.shape_cast %36 : vector<128xf32> to vector<1x128xf32>
    %38 = arith.mulf %31, %31 : vector<256x128xf32>
    %cst_28 = arith.constant dense<0.000000e+00> : vector<128xf32>
    %39 = vector.multi_reduction <add>, %38, %cst_28 [0] : vector<256x128xf32> to vector<128xf32>
    %40 = vector.shape_cast %39 : vector<128xf32> to vector<1x128xf32>
    %41 = tpu.concatenate %37, %40 in 0 : vector<1x128xf32>, vector<1x128xf32> -> vector<2x128xf32>
    %c0_29 = arith.constant 0 : index
    %c0_30 = arith.constant 0 : index
    %c0_31 = arith.constant 0 : index
    %42 = vector.load %arg4[%c0_29, %c0_30, %c0_31] : memref<1x2x128xf32, #tpu.memory_space<vmem>>, vector<1x2x128xf32>
    %43 = vector.shape_cast %42 : vector<1x2x128xf32> to vector<2x128xf32>
    %44 = vector.shape_cast %41 : vector<2x128xf32> to vector<1x2x128xf32>
    tpu.vector_store %arg4[%c0_29, %c0_30, %c0_31], %44 {strides = array<i32>} : memref<1x2x128xf32, #tpu.memory_space<vmem>>, vector<1x2x128xf32>,
    return
  }
  func.func @transform_0(%arg0: i32) -> (i32, i32, i32, i32) {
    %c0_i32 = arith.constant 0 : i32
    %c0_i32_0 = arith.constant 0 : i32
    %c0_i32_1 = arith.constant 0 : i32
    %c0_i32_2 = arith.constant 0 : i32
    return %arg0, %c0_i32, %c0_i32_0, %c0_i32_1 : i32, i32, i32, i32
  }
  func.func @transform_1(%arg0: i32) -> (i32, i32) {
    %c0_i32 = arith.constant 0 : i32
    %c0_i32_0 = arith.constant 0 : i32
    %c0_i32_1 = arith.constant 0 : i32
    return %c0_i32, %c0_i32_0 : i32, i32
  }
  func.func @transform_2(%arg0: i32) -> (i32, i32, i32, i32) {
    %c0_i32 = arith.constant 0 : i32
    %c0_i32_0 = arith.constant 0 : i32
    %c0_i32_1 = arith.constant 0 : i32
    %c0_i32_2 = arith.constant 0 : i32
    return %arg0, %c0_i32, %c0_i32_0, %c0_i32_1 : i32, i32, i32, i32
  }
  func.func @transform_3(%arg0: i32) -> (i32, i32, i32) {
    %c0_i32 = arith.constant 0 : i32
    %c0_i32_0 = arith.constant 0 : i32
    %c0_i32_1 = arith.constant 0 : i32
    return %arg0, %c0_i32, %c0_i32_0 : i32, i32, i32
  }
}

module attributes {stable_mosaic.version = 11 : i64} {
  func.func @_bn1_relu_conv2_stats_kernel(%arg0: i32, %arg1: memref<1x16x16x128xf32, #tpu.memory_space<vmem>>, %arg2: memref<2x128xf32, #tpu.memory_space<vmem>>, %arg3: memref<1152x128xbf16, #tpu.memory_space<vmem>>, %arg4: memref<1x16x16x128xf32, #tpu.memory_space<vmem>>, %arg5: memref<1x2x128xf32, #tpu.memory_space<vmem>>, %arg6: memref<18x18x128xf32, #tpu.memory_space<vmem>>) attributes {dimension_semantics = [#tpu.dimension_semantics<parallel>], iteration_bounds = array<i64: 2>, scalar_prefetch = 0 : i64, scratch_operands = 1 : i64, tpu.core_type = #tpu.core_type<tc>, window_params = [{transform_indices = @transform_0, window_bounds = array<i64: 1, 16, 16, 128>}, {pipeline_mode = #tpu.pipeline_mode<synchronous>, transform_indices = @transform_1, window_bounds = array<i64: 2, 128>}, {pipeline_mode = #tpu.pipeline_mode<synchronous>, transform_indices = @transform_2, window_bounds = array<i64: 1152, 128>}, {transform_indices = @transform_3, window_bounds = array<i64: 1, 16, 16, 128>}, {transform_indices = @transform_4, window_bounds = array<i64: 1, 2, 128>}]} {
    %c0 = arith.constant 0 : index
    %c0_0 = arith.constant 0 : index
    %0 = vector.load %arg2[%c0, %c0_0] : memref<2x128xf32, #tpu.memory_space<vmem>>, vector<1x128xf32>
    %1 = vector.shape_cast %0 : vector<1x128xf32> to vector<1x1x128xf32>
    %c1 = arith.constant 1 : index
    %c0_1 = arith.constant 0 : index
    %2 = vector.load %arg2[%c1, %c0_1] : memref<2x128xf32, #tpu.memory_space<vmem>>, vector<1x128xf32>
    %3 = vector.shape_cast %2 : vector<1x128xf32> to vector<1x1x128xf32>
    %c0_2 = arith.constant 0 : index
    %c0_3 = arith.constant 0 : index
    %c0_4 = arith.constant 0 : index
    %c0_5 = arith.constant 0 : index
    %4 = vector.load %arg1[%c0_2, %c0_3, %c0_4, %c0_5] : memref<1x16x16x128xf32, #tpu.memory_space<vmem>>, vector<1x16x16x128xf32>
    %5 = vector.shape_cast %4 : vector<1x16x16x128xf32> to vector<16x16x128xf32>
    %6 = vector.broadcast %1 : vector<1x1x128xf32> to vector<16x16x128xf32>
    %7 = arith.mulf %5, %6 : vector<16x16x128xf32>
    %8 = vector.broadcast %3 : vector<1x1x128xf32> to vector<16x16x128xf32>
    %9 = arith.addf %7, %8 : vector<16x16x128xf32>
    %cst = arith.constant 0.000000e+00 : f32
    %10 = vector.broadcast %cst : f32 to vector<16x16x128xf32>
    %11 = arith.maximumf %9, %10 : vector<16x16x128xf32>
    %cst_6 = arith.constant 0.000000e+00 : f32
    %12 = vector.broadcast %cst_6 : f32 to vector<1x18x128xf32>
    %cst_7 = arith.constant 0.000000e+00 : f32
    %13 = vector.broadcast %cst_7 : f32 to vector<18x1x128xf32>
    %c0_8 = arith.constant 0 : index
    %c0_9 = arith.constant 0 : index
    %c0_10 = arith.constant 0 : index
    %14 = vector.load %arg6[%c0_8, %c0_9, %c0_10] : memref<18x18x128xf32, #tpu.memory_space<vmem>>, vector<1x18x128xf32>
    tpu.vector_store %arg6[%c0_8, %c0_9, %c0_10], %12 {strides = array<i32>} : memref<18x18x128xf32, #tpu.memory_space<vmem>>, vector<1x18x128xf32>,
    %c17 = arith.constant 17 : index
    %c0_11 = arith.constant 0 : index
    %c0_12 = arith.constant 0 : index
    %15 = vector.load %arg6[%c17, %c0_11, %c0_12] : memref<18x18x128xf32, #tpu.memory_space<vmem>>, vector<1x18x128xf32>
    tpu.vector_store %arg6[%c17, %c0_11, %c0_12], %12 {strides = array<i32>} : memref<18x18x128xf32, #tpu.memory_space<vmem>>, vector<1x18x128xf32>,
    %c0_13 = arith.constant 0 : index
    %c0_14 = arith.constant 0 : index
    %c0_15 = arith.constant 0 : index
    %16 = vector.load %arg6[%c0_13, %c0_14, %c0_15] : memref<18x18x128xf32, #tpu.memory_space<vmem>>, vector<18x1x128xf32>
    tpu.vector_store %arg6[%c0_13, %c0_14, %c0_15], %13 {strides = array<i32>} : memref<18x18x128xf32, #tpu.memory_space<vmem>>, vector<18x1x128xf32>,
    %c0_16 = arith.constant 0 : index
    %c17_17 = arith.constant 17 : index
    %c0_18 = arith.constant 0 : index
    %17 = vector.load %arg6[%c0_16, %c17_17, %c0_18] : memref<18x18x128xf32, #tpu.memory_space<vmem>>, vector<18x1x128xf32>
    tpu.vector_store %arg6[%c0_16, %c17_17, %c0_18], %13 {strides = array<i32>} : memref<18x18x128xf32, #tpu.memory_space<vmem>>, vector<18x1x128xf32>,
    %c1_19 = arith.constant 1 : index
    %c1_20 = arith.constant 1 : index
    %c0_21 = arith.constant 0 : index
    %18 = vector.load %arg6[%c1_19, %c1_20, %c0_21] : memref<18x18x128xf32, #tpu.memory_space<vmem>>, vector<16x16x128xf32>
    tpu.vector_store %arg6[%c1_19, %c1_20, %c0_21], %11 {strides = array<i32>} : memref<18x18x128xf32, #tpu.memory_space<vmem>>, vector<16x16x128xf32>,
    %c0_22 = arith.constant 0 : index
    %c0_23 = arith.constant 0 : index
    %c0_24 = arith.constant 0 : index
    %19 = vector.load %arg6[%c0_22, %c0_23, %c0_24] : memref<18x18x128xf32, #tpu.memory_space<vmem>>, vector<18x18x128xf32>
    %20 = arith.truncf %19 : vector<18x18x128xf32> to vector<18x18x128xbf16>
    %21 = vector.extract_strided_slice %20 {offsets = [0, 0, 0], sizes = [16, 16, 128], strides = [1, 1, 1]} : vector<18x18x128xbf16> to vector<16x16x128xbf16>
    %22 = vector.shape_cast %21 : vector<16x16x128xbf16> to vector<256x128xbf16>
    %23 = vector.extract_strided_slice %20 {offsets = [0, 1, 0], sizes = [16, 16, 128], strides = [1, 1, 1]} : vector<18x18x128xbf16> to vector<16x16x128xbf16>
    %24 = vector.shape_cast %23 : vector<16x16x128xbf16> to vector<256x128xbf16>
    %25 = vector.extract_strided_slice %20 {offsets = [0, 2, 0], sizes = [16, 16, 128], strides = [1, 1, 1]} : vector<18x18x128xbf16> to vector<16x16x128xbf16>
    %26 = vector.shape_cast %25 : vector<16x16x128xbf16> to vector<256x128xbf16>
    %27 = vector.extract_strided_slice %20 {offsets = [1, 0, 0], sizes = [16, 16, 128], strides = [1, 1, 1]} : vector<18x18x128xbf16> to vector<16x16x128xbf16>
    %28 = vector.shape_cast %27 : vector<16x16x128xbf16> to vector<256x128xbf16>
    %29 = vector.extract_strided_slice %20 {offsets = [1, 1, 0], sizes = [16, 16, 128], strides = [1, 1, 1]} : vector<18x18x128xbf16> to vector<16x16x128xbf16>
    %30 = vector.shape_cast %29 : vector<16x16x128xbf16> to vector<256x128xbf16>
    %31 = vector.extract_strided_slice %20 {offsets = [1, 2, 0], sizes = [16, 16, 128], strides = [1, 1, 1]} : vector<18x18x128xbf16> to vector<16x16x128xbf16>
    %32 = vector.shape_cast %31 : vector<16x16x128xbf16> to vector<256x128xbf16>
    %33 = vector.extract_strided_slice %20 {offsets = [2, 0, 0], sizes = [16, 16, 128], strides = [1, 1, 1]} : vector<18x18x128xbf16> to vector<16x16x128xbf16>
    %34 = vector.shape_cast %33 : vector<16x16x128xbf16> to vector<256x128xbf16>
    %35 = vector.extract_strided_slice %20 {offsets = [2, 1, 0], sizes = [16, 16, 128], strides = [1, 1, 1]} : vector<18x18x128xbf16> to vector<16x16x128xbf16>
    %36 = vector.shape_cast %35 : vector<16x16x128xbf16> to vector<256x128xbf16>
    %37 = vector.extract_strided_slice %20 {offsets = [2, 2, 0], sizes = [16, 16, 128], strides = [1, 1, 1]} : vector<18x18x128xbf16> to vector<16x16x128xbf16>
    %38 = vector.shape_cast %37 : vector<16x16x128xbf16> to vector<256x128xbf16>
    %39 = tpu.concatenate %22, %24, %26, %28, %30, %32, %34, %36, %38 in 1 : vector<256x128xbf16>, vector<256x128xbf16>, vector<256x128xbf16>, vector<256x128xbf16>, vector<256x128xbf16>, vector<256x128xbf16>, vector<256x128xbf16>, vector<256x128xbf16>, vector<256x128xbf16> -> vector<256x1152xbf16>
    %c0_25 = arith.constant 0 : index
    %c0_26 = arith.constant 0 : index
    %40 = vector.load %arg3[%c0_25, %c0_26] : memref<1152x128xbf16, #tpu.memory_space<vmem>>, vector<1152x128xbf16>
    %cst_27 = arith.constant dense<0.000000e+00> : vector<256x128xf32>
    %41 = tpu.matmul %39, %40, %cst_27 {dimension_numbers = #tpu.dot_dimension_numbers<[1], [0], [0], [1], [0, 0, 1, 1], [], []>} : vector<256x1152xbf16>, vector<1152x128xbf16>, vector<256x128xf32> -> vector<256x128xf32>
    %42 = vector.shape_cast %41 : vector<256x128xf32> to vector<16x16x128xf32>
    %c0_28 = arith.constant 0 : index
    %c0_29 = arith.constant 0 : index
    %c0_30 = arith.constant 0 : index
    %c0_31 = arith.constant 0 : index
    %43 = vector.load %arg4[%c0_28, %c0_29, %c0_30, %c0_31] : memref<1x16x16x128xf32, #tpu.memory_space<vmem>>, vector<1x16x16x128xf32>
    %44 = vector.shape_cast %43 : vector<1x16x16x128xf32> to vector<16x16x128xf32>
    %45 = vector.shape_cast %42 : vector<16x16x128xf32> to vector<1x16x16x128xf32>
    tpu.vector_store %arg4[%c0_28, %c0_29, %c0_30, %c0_31], %45 {strides = array<i32>} : memref<1x16x16x128xf32, #tpu.memory_space<vmem>>, vector<1x16x16x128xf32>,
    %cst_32 = arith.constant dense<0.000000e+00> : vector<128xf32>
    %46 = vector.multi_reduction <add>, %41, %cst_32 [0] : vector<256x128xf32> to vector<128xf32>
    %47 = vector.shape_cast %46 : vector<128xf32> to vector<1x128xf32>
    %48 = arith.mulf %41, %41 : vector<256x128xf32>
    %cst_33 = arith.constant dense<0.000000e+00> : vector<128xf32>
    %49 = vector.multi_reduction <add>, %48, %cst_33 [0] : vector<256x128xf32> to vector<128xf32>
    %50 = vector.shape_cast %49 : vector<128xf32> to vector<1x128xf32>
    %51 = tpu.concatenate %47, %50 in 0 : vector<1x128xf32>, vector<1x128xf32> -> vector<2x128xf32>
    %c0_34 = arith.constant 0 : index
    %c0_35 = arith.constant 0 : index
    %c0_36 = arith.constant 0 : index
    %52 = vector.load %arg5[%c0_34, %c0_35, %c0_36] : memref<1x2x128xf32, #tpu.memory_space<vmem>>, vector<1x2x128xf32>
    %53 = vector.shape_cast %52 : vector<1x2x128xf32> to vector<2x128xf32>
    %54 = vector.shape_cast %51 : vector<2x128xf32> to vector<1x2x128xf32>
    tpu.vector_store %arg5[%c0_34, %c0_35, %c0_36], %54 {strides = array<i32>} : memref<1x2x128xf32, #tpu.memory_space<vmem>>, vector<1x2x128xf32>,
    return
  }
  func.func @transform_0(%arg0: i32) -> (i32, i32, i32, i32) {
    %c0_i32 = arith.constant 0 : i32
    %c0_i32_0 = arith.constant 0 : i32
    %c0_i32_1 = arith.constant 0 : i32
    %c0_i32_2 = arith.constant 0 : i32
    return %arg0, %c0_i32, %c0_i32_0, %c0_i32_1 : i32, i32, i32, i32
  }
  func.func @transform_1(%arg0: i32) -> (i32, i32) {
    %c0_i32 = arith.constant 0 : i32
    %c0_i32_0 = arith.constant 0 : i32
    %c0_i32_1 = arith.constant 0 : i32
    return %c0_i32, %c0_i32_0 : i32, i32
  }
  func.func @transform_2(%arg0: i32) -> (i32, i32) {
    %c0_i32 = arith.constant 0 : i32
    %c0_i32_0 = arith.constant 0 : i32
    %c0_i32_1 = arith.constant 0 : i32
    return %c0_i32, %c0_i32_0 : i32, i32
  }
  func.func @transform_3(%arg0: i32) -> (i32, i32, i32, i32) {
    %c0_i32 = arith.constant 0 : i32
    %c0_i32_0 = arith.constant 0 : i32
    %c0_i32_1 = arith.constant 0 : i32
    %c0_i32_2 = arith.constant 0 : i32
    return %arg0, %c0_i32, %c0_i32_0, %c0_i32_1 : i32, i32, i32, i32
  }
  func.func @transform_4(%arg0: i32) -> (i32, i32, i32) {
    %c0_i32 = arith.constant 0 : i32
    %c0_i32_0 = arith.constant 0 : i32
    %c0_i32_1 = arith.constant 0 : i32
    return %arg0, %c0_i32, %c0_i32_0 : i32, i32, i32
  }
}

module attributes {stable_mosaic.version = 11 : i64} {
  func.func @_bn2_add_relu_kernel(%arg0: i32, %arg1: memref<1x16x16x128xf32, #tpu.memory_space<vmem>>, %arg2: memref<1x16x16x128xf32, #tpu.memory_space<vmem>>, %arg3: memref<2x128xf32, #tpu.memory_space<vmem>>, %arg4: memref<1x16x16x128xf32, #tpu.memory_space<vmem>>) attributes {dimension_semantics = [#tpu.dimension_semantics<parallel>], iteration_bounds = array<i64: 2>, scalar_prefetch = 0 : i64, scratch_operands = 0 : i64, tpu.core_type = #tpu.core_type<tc>, window_params = [{transform_indices = @transform_0, window_bounds = array<i64: 1, 16, 16, 128>}, {transform_indices = @transform_1, window_bounds = array<i64: 1, 16, 16, 128>}, {pipeline_mode = #tpu.pipeline_mode<synchronous>, transform_indices = @transform_2, window_bounds = array<i64: 2, 128>}, {transform_indices = @transform_3, window_bounds = array<i64: 1, 16, 16, 128>}]} {
    %c0 = arith.constant 0 : index
    %c0_0 = arith.constant 0 : index
    %0 = vector.load %arg3[%c0, %c0_0] : memref<2x128xf32, #tpu.memory_space<vmem>>, vector<1x128xf32>
    %1 = vector.shape_cast %0 : vector<1x128xf32> to vector<1x1x128xf32>
    %c1 = arith.constant 1 : index
    %c0_1 = arith.constant 0 : index
    %2 = vector.load %arg3[%c1, %c0_1] : memref<2x128xf32, #tpu.memory_space<vmem>>, vector<1x128xf32>
    %3 = vector.shape_cast %2 : vector<1x128xf32> to vector<1x1x128xf32>
    %c0_2 = arith.constant 0 : index
    %c0_3 = arith.constant 0 : index
    %c0_4 = arith.constant 0 : index
    %c0_5 = arith.constant 0 : index
    %4 = vector.load %arg1[%c0_2, %c0_3, %c0_4, %c0_5] : memref<1x16x16x128xf32, #tpu.memory_space<vmem>>, vector<1x16x16x128xf32>
    %5 = vector.shape_cast %4 : vector<1x16x16x128xf32> to vector<16x16x128xf32>
    %6 = vector.broadcast %1 : vector<1x1x128xf32> to vector<16x16x128xf32>
    %7 = arith.mulf %5, %6 : vector<16x16x128xf32>
    %8 = vector.broadcast %3 : vector<1x1x128xf32> to vector<16x16x128xf32>
    %9 = arith.addf %7, %8 : vector<16x16x128xf32>
    %c0_6 = arith.constant 0 : index
    %c0_7 = arith.constant 0 : index
    %c0_8 = arith.constant 0 : index
    %c0_9 = arith.constant 0 : index
    %10 = vector.load %arg2[%c0_6, %c0_7, %c0_8, %c0_9] : memref<1x16x16x128xf32, #tpu.memory_space<vmem>>, vector<1x16x16x128xf32>
    %11 = vector.shape_cast %10 : vector<1x16x16x128xf32> to vector<16x16x128xf32>
    %12 = arith.addf %9, %11 : vector<16x16x128xf32>
    %cst = arith.constant 0.000000e+00 : f32
    %13 = vector.broadcast %cst : f32 to vector<16x16x128xf32>
    %14 = arith.maximumf %12, %13 : vector<16x16x128xf32>
    %c0_10 = arith.constant 0 : index
    %c0_11 = arith.constant 0 : index
    %c0_12 = arith.constant 0 : index
    %c0_13 = arith.constant 0 : index
    %15 = vector.load %arg4[%c0_10, %c0_11, %c0_12, %c0_13] : memref<1x16x16x128xf32, #tpu.memory_space<vmem>>, vector<1x16x16x128xf32>
    %16 = vector.shape_cast %15 : vector<1x16x16x128xf32> to vector<16x16x128xf32>
    %17 = vector.shape_cast %14 : vector<16x16x128xf32> to vector<1x16x16x128xf32>
    tpu.vector_store %arg4[%c0_10, %c0_11, %c0_12, %c0_13], %17 {strides = array<i32>} : memref<1x16x16x128xf32, #tpu.memory_space<vmem>>, vector<1x16x16x128xf32>,
    return
  }
  func.func @transform_0(%arg0: i32) -> (i32, i32, i32, i32) {
    %c0_i32 = arith.constant 0 : i32
    %c0_i32_0 = arith.constant 0 : i32
    %c0_i32_1 = arith.constant 0 : i32
    %c0_i32_2 = arith.constant 0 : i32
    return %arg0, %c0_i32, %c0_i32_0, %c0_i32_1 : i32, i32, i32, i32
  }
  func.func @transform_1(%arg0: i32) -> (i32, i32, i32, i32) {
    %c0_i32 = arith.constant 0 : i32
    %c0_i32_0 = arith.constant 0 : i32
    %c0_i32_1 = arith.constant 0 : i32
    %c0_i32_2 = arith.constant 0 : i32
    return %arg0, %c0_i32, %c0_i32_0, %c0_i32_1 : i32, i32, i32, i32
  }
  func.func @transform_2(%arg0: i32) -> (i32, i32) {
    %c0_i32 = arith.constant 0 : i32
    %c0_i32_0 = arith.constant 0 : i32
    %c0_i32_1 = arith.constant 0 : i32
    return %c0_i32, %c0_i32_0 : i32, i32
  }
  func.func @transform_3(%arg0: i32) -> (i32, i32, i32, i32) {
    %c0_i32 = arith.constant 0 : i32
    %c0_i32_0 = arith.constant 0 : i32
    %c0_i32_1 = arith.constant 0 : i32
    %c0_i32_2 = arith.constant 0 : i32
    return %arg0, %c0_i32, %c0_i32_0, %c0_i32_1 : i32, i32, i32, i32
  }
}

</mosaic_0001>

<llo_original>
// kernel: residual_block.5
$region0: #{residual_block.5}
  #allocation0 [shape = 'u32[]', space=smem, size = 0x4, offset = 0x4, fixed_abs, tag = 'smem constant byte address 0x4 - core index']
  #allocation1 [shape = 'u32[72,128]{1,0:T(1,128)}', space=vmem, size = 0x9000, scoped, tag = 'internal scratch']
  %s0 = inlined_call_operand.vmem [shape: f32[2,16,16,128], index: 0, kind: input, shape index: {}]
  %s1 = inlined_call_operand.vmem [shape: f32[2,16,16,128], index: 1, kind: input, shape index: {}]
  %s2 = inlined_call_operand.vmem [shape: f32[2,128], index: 2, kind: input, shape index: {}]
  %s3 = inlined_call_operand.hbm [shape: f32[2,16,16,128], index: 3, kind: output, shape index: {}]
  %s4 = sld [smem:[#allocation0]]
  $region45: #{residual_block.5} parent=0
    _
  %s6 = ssub.s32 1, %s4
  %s7 = scalar_select 0, %s6, %s4
  $region1: #{residual_block.5} parent=0
    #allocation2 [shape = 'u8[262144]{0}', space=vmem, size = 0x40000, scoped, tag = 'output window, operand 0']
    #allocation3 [shape = 's32[2]{0}', space=sflag, size = 0x8, scoped, tag = 'scoped memory for residual_block.5']
    %8 = vsyncpa [#allocation3], 0
    %s9 = scalar_lea.sflag [#allocation3], 1
    %10 = vsyncpa %s9, 0
    loop: start=0, step=1, limit=4
    $region2: #{residual_block.5} parent=1 // loop_pre_header
      _
    $region3: #{residual_block.5} parent=1 // loop_header
      %s12 = sphi 0, %s16
      %p13 = scmp.ge.s32.totalorder %s12, 4
      %s22 = sphi 0, %s24
      %s25 = sphi 0, %s22
      %s26 = sphi 0, %s25
      %s42 = sphi 0, %s26
      %s48 = sphi 0, %s50
      %s51 = sphi 0, %s48
      %s52 = sphi 0, %s51
      %s68 = sphi 0, %s52
      %s72 = sphi 0, %s72
      %s74 = sphi 0, %s72
      %s75 = sphi 0, %s74
      %s89 = sphi 0, %s75
      %s95 = sphi 0, %s97
      %s98 = sphi 0, %s95
      %s99 = sphi 0, %s98
      %s115 = sphi 0, %s99
    $region4: #{residual_block.5} parent=1 // loop_header_branch
      %15 = sbr.rel (%p13) target = $region8
    $region5: #{residual_block.5} parent=1 // loop_body
      %s17 = ssub.s32 %s12, 1
      %s18 = ssub.s32 %s12, 2
      %s19 = sadd.s32 %s12, 1
      %s20 = ssub.s32 %s12, %s19
      %p21 = scmp.eq.s32.totalorder %s20, 0
      %s23 = sadd.s32 %s22, 1
      %s24 = scalar_select %p21, %s22, %s23
      %p27 = pneg %p21
      %p28 = scmp.eq.s32.totalorder %s12, 1
      %p29 = por %p27, %p28
      %p30 = scmp.ne.s32.totalorder %s22, %s25
      %p31 = scmp.eq.s32.totalorder %s12, 0
      %p32 = por %p30, %p31
      %p33 = scmp.ne.s32.totalorder %s22, %s25
      %p34 = scmp.eq.s32.totalorder %s17, 1
      %p35 = por %p33, %p34
      %p36 = scmp.ne.s32.totalorder %s25, %s26
      %p37 = scmp.eq.s32.totalorder %s17, 0
      %p38 = por %p36, %p37
      %p39 = scmp.ne.s32.totalorder %s25, %s26
      %p40 = scmp.eq.s32.totalorder %s18, 1
      %p41 = por %p39, %p40
      %p43 = scmp.ne.s32.totalorder %s26, %s42
      %p44 = scmp.eq.s32.totalorder %s18, 0
      %p45 = por %p43, %p44
      %s46 = ssub.s32 %s12, %s19
      %p47 = scmp.eq.s32.totalorder %s46, 0
      %s49 = sadd.s32 %s48, 1
      %s50 = scalar_select %p47, %s48, %s49
      %p53 = pneg %p47
      %p54 = scmp.eq.s32.totalorder %s12, 1
      %p55 = por %p53, %p54
      %p56 = scmp.ne.s32.totalorder %s48, %s51
      %p57 = scmp.eq.s32.totalorder %s12, 0
      %p58 = por %p56, %p57
      %p59 = scmp.ne.s32.totalorder %s48, %s51
      %p60 = scmp.eq.s32.totalorder %s17, 1
      %p61 = por %p59, %p60
      %p62 = scmp.ne.s32.totalorder %s51, %s52
      %p63 = scmp.eq.s32.totalorder %s17, 0
      %p64 = por %p62, %p63
      %p65 = scmp.ne.s32.totalorder %s51, %s52
      %p66 = scmp.eq.s32.totalorder %s18, 1
      %p67 = por %p65, %p66
      %p69 = scmp.ne.s32.totalorder %s52, %s68
      %p70 = scmp.eq.s32.totalorder %s18, 0
      %p71 = por %p69, %p70
      %s73 = sadd.s32 %s72, 1
      %p76 = scmp.eq.s32.totalorder %s12, 1
      %p77 = scmp.ne.s32.totalorder %s72, %s74
      %p78 = scmp.eq.s32.totalorder %s12, 0
      %p79 = por %p77, %p78
      %p80 = scmp.ne.s32.totalorder %s72, %s74
      %p81 = scmp.eq.s32.totalorder %s17, 1
      %p82 = por %p80, %p81
      %p83 = scmp.ne.s32.totalorder %s74, %s75
      %p84 = scmp.eq.s32.totalorder %s17, 0
      %p85 = por %p83, %p84
      %p86 = scmp.ne.s32.totalorder %s74, %s75
      %p87 = scmp.eq.s32.totalorder %s18, 1
      %p88 = por %p86, %p87
      %p90 = scmp.ne.s32.totalorder %s75, %s89
      %p91 = scmp.eq.s32.totalorder %s18, 0
      %p92 = por %p90, %p91
      %s93 = ssub.s32 %s12, %s19
      %p94 = scmp.eq.s32.totalorder %s93, 0
      %s96 = sadd.s32 %s95, 1
      %s97 = scalar_select %p94, %s95, %s96
      %p100 = pneg %p94
      %p101 = scmp.eq.s32.totalorder %s12, 1
      %p102 = por %p100, %p101
      %p103 = scmp.ne.s32.totalorder %s95, %s98
      %p104 = scmp.eq.s32.totalorder %s12, 0
      %p105 = por %p103, %p104
      %p106 = scmp.ne.s32.totalorder %s95, %s98
      %p107 = scmp.eq.s32.totalorder %s17, 1
      %p108 = por %p106, %p107
      %p109 = scmp.ne.s32.totalorder %s98, %s99
      %p110 = scmp.eq.s32.totalorder %s17, 0
      %p111 = por %p109, %p110
      %p112 = scmp.ne.s32.totalorder %s98, %s99
      %p113 = scmp.eq.s32.totalorder %s18, 1
      %p114 = por %p112, %p113
      %p116 = scmp.ne.s32.totalorder %s99, %s115
      %p117 = scmp.eq.s32.totalorder %s18, 0
      %p118 = por %p116, %p117
      %p119 = scmp.le.s32.totalorder 1, %s12
      %p120 = scmp.lt.s32.totalorder %s12, 3
      %p121 = pnand %p119, %p120
      %p122 = pneg %p121
      // Predicated region
      $region9: #{residual_block.5} parent=5 // pred_check
        _
      $region10: #{residual_block.5} parent=5 // pred_check_branch
        %124 = sbr.rel (%p121) target = $region12
      $region11: #{residual_block.5} parent=5 // pred_region
        %s125 = ssub.s32 %s12, 1
        // Predicated region
        $region13: #{residual_block.5} parent=11 // pred_check
          %p126 = pneg %p85
        $region14: #{residual_block.5} parent=11 // pred_check_branch
          %128 = sbr.rel (%p126) target = $region16
        $region15: #{residual_block.5} parent=11 // pred_region
          _
        $region16: #{residual_block.5} parent=11 // pred_fallthru
          _
      $region12: #{residual_block.5} parent=5 // pred_fallthru
        _
      %p129 = scmp.lt.s32.totalorder %s12, 2
      // Predicated region
      $region17: #{residual_block.5} parent=5 // pred_check
        %p130 = pneg %p129
      $region18: #{residual_block.5} parent=5 // pred_check_branch
        %132 = sbr.rel (%p130) target = $region20
      $region19: #{residual_block.5} parent=5 // pred_region
        // Predicated region
        $region21: #{residual_block.5} parent=19 // pred_check
          %p133 = pneg %p32
        $region22: #{residual_block.5} parent=19 // pred_check_branch
          %135 = sbr.rel (%p133) target = $region24
        $region23: #{residual_block.5} parent=19 // pred_region
          %p136 = scmp.lt.s32.totalorder %s12, 1
          %s137 = scalar_select %p136, %s12, 1
          %s138 = smul.addr %s137, 32
          %s139 = smul.addr %s138, 8
          %s140 = scalar_lea.vmem %s0, %s139
        $region24: #{residual_block.5} parent=19 // pred_fallthru
          _
        // Predicated region
        $region25: #{residual_block.5} parent=19 // pred_check
          %p141 = pneg %p58
        $region26: #{residual_block.5} parent=19 // pred_check_branch
          %143 = sbr.rel (%p141) target = $region28
        $region27: #{residual_block.5} parent=19 // pred_region
          %p144 = scmp.lt.s32.totalorder %s12, 1
          %s145 = scalar_select %p144, %s12, 1
          %s146 = smul.addr %s145, 32
          %s147 = smul.addr %s146, 8
          %s148 = scalar_lea.vmem %s1, %s147
        $region28: #{residual_block.5} parent=19 // pred_fallthru
          _
      $region20: #{residual_block.5} parent=5 // pred_fallthru
        _
      %p149 = scmp.le.s32.totalorder 1, %s12
      %p150 = scmp.lt.s32.totalorder %s12, 3
      %p151 = pnand %p149, %p150
      %p152 = pneg %p151
      // Predicated region
      $region29: #{residual_block.5} parent=5 // pred_check
        _
      $region30: #{residual_block.5} parent=5 // pred_check_branch
        %154 = sbr.rel (%p151) target = $region32
      $region31: #{residual_block.5} parent=5 // pred_region
        %s155 = ssub.s32 %s12, 1
        %p156 = scmp.lt.s32.totalorder %s17, 1
        %s157 = scalar_select %p156, %s17, 1
        %s158 = smul.addr %s157, 32
        %s159 = smul.addr %s158, 8
        %s160 = scalar_lea.vmem %s0, %s159
        %p161 = pneg %p38
        %p162 = pneg %p35
        %p163 = scmp.lt.s32.totalorder %s17, 1
        %s164 = scalar_select %p163, %s17, 1
        %s165 = smul.addr %s164, 32
        %s166 = smul.addr %s165, 8
        %s167 = scalar_lea.vmem %s1, %s166
        %p168 = pneg %p64
        %p169 = pneg %p61
        %p170 = pneg %p85
        %p171 = pneg %p82
        %p172 = pneg %p111
        %p173 = pneg %p108
        %s174 = sand.u32 %s98, 1
        %s175 = scalar_lea.sflag [#allocation3], %s174
        %s176 = sand.u32 %s98, 1
        %s177 = smul.addr %s176, 256
        %s178 = scalar_lea.vmem [#allocation2], %s177
        %p179 = scmp.lt.s32.totalorder %s17, 1
        %s180 = scalar_select %p179, %s17, 1
        %s181 = smul.addr %s180, 32
        %s182 = smul.addr %s181, 8
        %s183 = scalar_lea.vmem %s0, %s182
        %p184 = scmp.lt.s32.totalorder %s17, 1
        %s185 = scalar_select %p184, %s17, 1
        %s186 = smul.addr %s185, 32
        %s187 = smul.addr %s186, 8
        %s188 = scalar_lea.vmem %s1, %s187
        %v189 = vld [vmem:[%s2] sm:$0x1]
        %v190 = vld [vmem:[%s2 + $0x1] sm:$0x1]
        %v191 = vld [vmem:[%s183] sm:$0xff]
        %v192 = vld [vmem:[%s183 + $0x8] sm:$0xff]
        %v193 = vld [vmem:[%s183 + $0x10] sm:$0xff]
        %v194 = vld [vmem:[%s183 + $0x18] sm:$0xff]
        %v195 = vld [vmem:[%s183 + $0x20] sm:$0xff]
        %v196 = vld [vmem:[%s183 + $0x28] sm:$0xff]
        %v197 = vld [vmem:[%s183 + $0x30] sm:$0xff]
        %v198 = vld [vmem:[%s183 + $0x38] sm:$0xff]
        %v199 = vld [vmem:[%s183 + $0x40] sm:$0xff]
        %v200 = vld [vmem:[%s183 + $0x48] sm:$0xff]
        %v201 = vld [vmem:[%s183 + $0x50] sm:$0xff]
        %v202 = vld [vmem:[%s183 + $0x58] sm:$0xff]
        %v203 = vld [vmem:[%s183 + $0x60] sm:$0xff]
        %v204 = vld [vmem:[%s183 + $0x68] sm:$0xff]
        %v205 = vld [vmem:[%s183 + $0x70] sm:$0xff]
        %v206 = vld [vmem:[%s183 + $0x78] sm:$0xff]
        %v207 = vld [vmem:[%s183 + $0x80] sm:$0xff]
        %v208 = vld [vmem:[%s183 + $0x88] sm:$0xff]
        %v209 = vld [vmem:[%s183 + $0x90] sm:$0xff]
        %v210 = vld [vmem:[%s183 + $0x98] sm:$0xff]
        %v211 = vld [vmem:[%s183 + $0xa0] sm:$0xff]
        %v212 = vld [vmem:[%s183 + $0xa8] sm:$0xff]
        %v213 = vld [vmem:[%s183 + $0xb0] sm:$0xff]
        %v214 = vld [vmem:[%s183 + $0xb8] sm:$0xff]
        %v215 = vld [vmem:[%s183 + $0xc0] sm:$0xff]
        %v216 = vld [vmem:[%s183 + $0xc8] sm:$0xff]
        %v217 = vld [vmem:[%s183 + $0xd0] sm:$0xff]
        %v218 = vld [vmem:[%s183 + $0xd8] sm:$0xff]
        %v219 = vld [vmem:[%s183 + $0xe0] sm:$0xff]
        %v220 = vld [vmem:[%s183 + $0xe8] sm:$0xff]
        %v221 = vld [vmem:[%s183 + $0xf0] sm:$0xff]
        %v222 = vld [vmem:[%s183 + $0xf8] sm:$0xff]
        %v223 = vperm.slane %v189, 0
        %v224 = vmul.f32 %v191, %v223
        %v225 = vmul.f32 %v192, %v223
        %v226 = vmul.f32 %v193, %v223
        %v227 = vmul.f32 %v194, %v223
        %v228 = vmul.f32 %v195, %v223
        %v229 = vmul.f32 %v196, %v223
        %v230 = vmul.f32 %v197, %v223
        %v231 = vmul.f32 %v198, %v223
        %v232 = vmul.f32 %v199, %v223
        %v233 = vmul.f32 %v200, %v223
        %v234 = vmul.f32 %v201, %v223
        %v235 = vmul.f32 %v202, %v223
        %v236 = vmul.f32 %v203, %v223
        %v237 = vmul.f32 %v204, %v223
        %v238 = vmul.f32 %v205, %v223
        %v239 = vmul.f32 %v206, %v223
        %v240 = vmul.f32 %v207, %v223
        %v241 = vmul.f32 %v208, %v223
        %v242 = vmul.f32 %v209, %v223
        %v243 = vmul.f32 %v210, %v223
        %v244 = vmul.f32 %v211, %v223
        %v245 = vmul.f32 %v212, %v223
        %v246 = vmul.f32 %v213, %v223
        %v247 = vmul.f32 %v214, %v223
        %v248 = vmul.f32 %v215, %v223
        %v249 = vmul.f32 %v216, %v223
        %v250 = vmul.f32 %v217, %v223
        %v251 = vmul.f32 %v218, %v223
        %v252 = vmul.f32 %v219, %v223
        %v253 = vmul.f32 %v220, %v223
        %v254 = vmul.f32 %v221, %v223
        %v255 = vmul.f32 %v222, %v223
        %v256 = vperm.slane %v190, 0
        %v257 = vadd.f32 %v224, %v256
        %v258 = vadd.f32 %v225, %v256
        %v259 = vadd.f32 %v226, %v256
        %v260 = vadd.f32 %v227, %v256
        %v261 = vadd.f32 %v228, %v256
        %v262 = vadd.f32 %v229, %v256
        %v263 = vadd.f32 %v230, %v256
        %v264 = vadd.f32 %v231, %v256
        %v265 = vadd.f32 %v232, %v256
        %v266 = vadd.f32 %v233, %v256
        %v267 = vadd.f32 %v234, %v256
        %v268 = vadd.f32 %v235, %v256
        %v269 = vadd.f32 %v236, %v256
        %v270 = vadd.f32 %v237, %v256
        %v271 = vadd.f32 %v238, %v256
        %v272 = vadd.f32 %v239, %v256
        %v273 = vadd.f32 %v240, %v256
        %v274 = vadd.f32 %v241, %v256
        %v275 = vadd.f32 %v242, %v256
        %v276 = vadd.f32 %v243, %v256
        %v277 = vadd.f32 %v244, %v256
        %v278 = vadd.f32 %v245, %v256
        %v279 = vadd.f32 %v246, %v256
        %v280 = vadd.f32 %v247, %v256
        %v281 = vadd.f32 %v248, %v256
        %v282 = vadd.f32 %v249, %v256
        %v283 = vadd.f32 %v250, %v256
        %v284 = vadd.f32 %v251, %v256
        %v285 = vadd.f32 %v252, %v256
        %v286 = vadd.f32 %v253, %v256
        %v287 = vadd.f32 %v254, %v256
        %v288 = vadd.f32 %v255, %v256
        %v289 = vld [vmem:[%s188] sm:$0xff]
        %v290 = vld [vmem:[%s188 + $0x8] sm:$0xff]
        %v291 = vld [vmem:[%s188 + $0x10] sm:$0xff]
        %v292 = vld [vmem:[%s188 + $0x18] sm:$0xff]
        %v293 = vld [vmem:[%s188 + $0x20] sm:$0xff]
        %v294 = vld [vmem:[%s188 + $0x28] sm:$0xff]
        %v295 = vld [vmem:[%s188 + $0x30] sm:$0xff]
        %v296 = vld [vmem:[%s188 + $0x38] sm:$0xff]
        %v297 = vld [vmem:[%s188 + $0x40] sm:$0xff]
        %v298 = vld [vmem:[%s188 + $0x48] sm:$0xff]
        %v299 = vld [vmem:[%s188 + $0x50] sm:$0xff]
        %v300 = vld [vmem:[%s188 + $0x58] sm:$0xff]
        %v301 = vld [vmem:[%s188 + $0x60] sm:$0xff]
        %v302 = vld [vmem:[%s188 + $0x68] sm:$0xff]
        %v303 = vld [vmem:[%s188 + $0x70] sm:$0xff]
        %v304 = vld [vmem:[%s188 + $0x78] sm:$0xff]
        %v305 = vld [vmem:[%s188 + $0x80] sm:$0xff]
        %v306 = vld [vmem:[%s188 + $0x88] sm:$0xff]
        %v307 = vld [vmem:[%s188 + $0x90] sm:$0xff]
        %v308 = vld [vmem:[%s188 + $0x98] sm:$0xff]
        %v309 = vld [vmem:[%s188 + $0xa0] sm:$0xff]
        %v310 = vld [vmem:[%s188 + $0xa8] sm:$0xff]
        %v311 = vld [vmem:[%s188 + $0xb0] sm:$0xff]
        %v312 = vld [vmem:[%s188 + $0xb8] sm:$0xff]
        %v313 = vld [vmem:[%s188 + $0xc0] sm:$0xff]
        %v314 = vld [vmem:[%s188 + $0xc8] sm:$0xff]
        %v315 = vld [vmem:[%s188 + $0xd0] sm:$0xff]
        %v316 = vld [vmem:[%s188 + $0xd8] sm:$0xff]
        %v317 = vld [vmem:[%s188 + $0xe0] sm:$0xff]
        %v318 = vld [vmem:[%s188 + $0xe8] sm:$0xff]
        %v319 = vld [vmem:[%s188 + $0xf0] sm:$0xff]
        %v320 = vld [vmem:[%s188 + $0xf8] sm:$0xff]
        %v321 = vadd.f32 %v257, %v289
        %v322 = vadd.f32 %v258, %v290
        %v323 = vadd.f32 %v259, %v291
        %v324 = vadd.f32 %v260, %v292
        %v325 = vadd.f32 %v261, %v293
        %v326 = vadd.f32 %v262, %v294
        %v327 = vadd.f32 %v263, %v295
        %v328 = vadd.f32 %v264, %v296
        %v329 = vadd.f32 %v265, %v297
        %v330 = vadd.f32 %v266, %v298
        %v331 = vadd.f32 %v267, %v299
        %v332 = vadd.f32 %v268, %v300
        %v333 = vadd.f32 %v269, %v301
        %v334 = vadd.f32 %v270, %v302
        %v335 = vadd.f32 %v271, %v303
        %v336 = vadd.f32 %v272, %v304
        %v337 = vadd.f32 %v273, %v305
        %v338 = vadd.f32 %v274, %v306
        %v339 = vadd.f32 %v275, %v307
        %v340 = vadd.f32 %v276, %v308
        %v341 = vadd.f32 %v277, %v309
        %v342 = vadd.f32 %v278, %v310
        %v343 = vadd.f32 %v279, %v311
        %v344 = vadd.f32 %v280, %v312
        %v345 = vadd.f32 %v281, %v313
        %v346 = vadd.f32 %v282, %v314
        %v347 = vadd.f32 %v283, %v315
        %v348 = vadd.f32 %v284, %v316
        %v349 = vadd.f32 %v285, %v317
        %v350 = vadd.f32 %v286, %v318
        %v351 = vadd.f32 %v287, %v319
        %v352 = vadd.f32 %v288, %v320
        %v353 = vmax.f32 %v321, 0.0
        %v354 = vmax.f32 %v322, 0.0
        %v355 = vmax.f32 %v323, 0.0
        %v356 = vmax.f32 %v324, 0.0
        %v357 = vmax.f32 %v325, 0.0
        %v358 = vmax.f32 %v326, 0.0
        %v359 = vmax.f32 %v327, 0.0
        %v360 = vmax.f32 %v328, 0.0
        %v361 = vmax.f32 %v329, 0.0
        %v362 = vmax.f32 %v330, 0.0
        %v363 = vmax.f32 %v331, 0.0
        %v364 = vmax.f32 %v332, 0.0
        %v365 = vmax.f32 %v333, 0.0
        %v366 = vmax.f32 %v334, 0.0
        %v367 = vmax.f32 %v335, 0.0
        %v368 = vmax.f32 %v336, 0.0
        %v369 = vmax.f32 %v337, 0.0
        %v370 = vmax.f32 %v338, 0.0
        %v371 = vmax.f32 %v339, 0.0
        %v372 = vmax.f32 %v340, 0.0
        %v373 = vmax.f32 %v341, 0.0
        %v374 = vmax.f32 %v342, 0.0
        %v375 = vmax.f32 %v343, 0.0
        %v376 = vmax.f32 %v344, 0.0
        %v377 = vmax.f32 %v345, 0.0
        %v378 = vmax.f32 %v346, 0.0
        %v379 = vmax.f32 %v347, 0.0
        %v380 = vmax.f32 %v348, 0.0
        %v381 = vmax.f32 %v349, 0.0
        %v382 = vmax.f32 %v350, 0.0
        %v383 = vmax.f32 %v351, 0.0
        %v384 = vmax.f32 %v352, 0.0
        %385 = vst [vmem:[%s178] sm:$0xff] %v353
        %386 = vst [vmem:[%s178 + $0x8] sm:$0xff] %v354
        %387 = vst [vmem:[%s178 + $0x10] sm:$0xff] %v355
        %388 = vst [vmem:[%s178 + $0x18] sm:$0xff] %v356
        %389 = vst [vmem:[%s178 + $0x20] sm:$0xff] %v357
        %390 = vst [vmem:[%s178 + $0x28] sm:$0xff] %v358
        %391 = vst [vmem:[%s178 + $0x30] sm:$0xff] %v359
        %392 = vst [vmem:[%s178 + $0x38] sm:$0xff] %v360
        %393 = vst [vmem:[%s178 + $0x40] sm:$0xff] %v361
        %394 = vst [vmem:[%s178 + $0x48] sm:$0xff] %v362
        %395 = vst [vmem:[%s178 + $0x50] sm:$0xff] %v363
        %396 = vst [vmem:[%s178 + $0x58] sm:$0xff] %v364
        %397 = vst [vmem:[%s178 + $0x60] sm:$0xff] %v365
        %398 = vst [vmem:[%s178 + $0x68] sm:$0xff] %v366
        %399 = vst [vmem:[%s178 + $0x70] sm:$0xff] %v367
        %400 = vst [vmem:[%s178 + $0x78] sm:$0xff] %v368
        %401 = vst [vmem:[%s178 + $0x80] sm:$0xff] %v369
        %402 = vst [vmem:[%s178 + $0x88] sm:$0xff] %v370
        %403 = vst [vmem:[%s178 + $0x90] sm:$0xff] %v371
        %404 = vst [vmem:[%s178 + $0x98] sm:$0xff] %v372
        %405 = vst [vmem:[%s178 + $0xa0] sm:$0xff] %v373
        %406 = vst [vmem:[%s178 + $0xa8] sm:$0xff] %v374
        %407 = vst [vmem:[%s178 + $0xb0] sm:$0xff] %v375
        %408 = vst [vmem:[%s178 + $0xb8] sm:$0xff] %v376
        %409 = vst [vmem:[%s178 + $0xc0] sm:$0xff] %v377
        %410 = vst [vmem:[%s178 + $0xc8] sm:$0xff] %v378
        %411 = vst [vmem:[%s178 + $0xd0] sm:$0xff] %v379
        %412 = vst [vmem:[%s178 + $0xd8] sm:$0xff] %v380
        %413 = vst [vmem:[%s178 + $0xe0] sm:$0xff] %v381
        %414 = vst [vmem:[%s178 + $0xe8] sm:$0xff] %v382
        %415 = vst [vmem:[%s178 + $0xf0] sm:$0xff] %v383
        %416 = vst [vmem:[%s178 + $0xf8] sm:$0xff] %v384
        %s417 = sand.u32 %s98, 1
        %s418 = scalar_lea.sflag [#allocation3], %s417
        %s419 = sand.u32 %s98, 1
        %s420 = smul.addr %s419, 256
        %s421 = scalar_lea.vmem [#allocation2], %s420
        // Predicated region
        $region33: #{residual_block.5} parent=31 // pred_check
          %p422 = pneg %p108
        $region34: #{residual_block.5} parent=31 // pred_check_branch
          %424 = sbr.rel (%p422) target = $region36
        $region35: #{residual_block.5} parent=31 // pred_region
          %426 = vsyncadd %s418, 0
          %s427 = smul.addr %s17, 32
          %s428 = smul.addr %s427, 8
          %s429 = scalar_lea.hbm %s3, %s428
          %s430 = sshll.u32 %s421, 4
          %s431 = int_to_ptr.vmem [resolvable:$true] %s430
          %s432 = sshll.u32 %s429, 4
          %s433 = int_to_ptr.hbm [resolvable:$true] %s432
          %438 = dma.vmem_to_hbm [thread:$0]  %s431, 4096, %s433, %s418, 128, 128, 8
        $region36: #{residual_block.5} parent=31 // pred_fallthru
          _
      $region32: #{residual_block.5} parent=5 // pred_fallthru
        _
      %p439 = scmp.le.s32.totalorder 2, %s12
      // Predicated region
      $region37: #{residual_block.5} parent=5 // pred_check
        %p440 = pneg %p439
      $region38: #{residual_block.5} parent=5 // pred_check_branch
        %442 = sbr.rel (%p440) target = $region40
      $region39: #{residual_block.5} parent=5 // pred_region
        %s443 = ssub.s32 %s12, 2
        // Predicated region
        $region41: #{residual_block.5} parent=39 // pred_check
          %p444 = pneg %p114
        $region42: #{residual_block.5} parent=39 // pred_check_branch
          %446 = sbr.rel (%p444) target = $region44
        $region43: #{residual_block.5} parent=39 // pred_region
          %s447 = sand.u32 %s99, 1
          %s448 = scalar_lea.sflag [#allocation3], %s447
          %s449 = sand.u32 %s99, 1
          %s450 = smul.addr %s449, 256
          %s451 = scalar_lea.vmem [#allocation2], %s450
          %453 = dma.done %s448, 4096
        $region44: #{residual_block.5} parent=39 // pred_fallthru
          _
      $region40: #{residual_block.5} parent=5 // pred_fallthru
        _
    $region6: #{residual_block.5} parent=1 // loop_footer
      %s16 = sadd.s32 1, %s12
    $region7: #{residual_block.5} parent=1 // loop_footer_branch
      %11 = sbr.rel target = $region3
    $region8: #{residual_block.5} parent=1 // loop_exit
      _
    %454 = vsyncpa [#allocation3], 1
    %s455 = scalar_lea.sflag [#allocation3], 1
    %456 = vsyncpa %s455, 1

// kernel: residual_block.3
$region0: #{residual_block.3}
  #allocation0 [shape = 'u32[]', space=smem, size = 0x4, offset = 0x4, fixed_abs, tag = 'smem constant byte address 0x4 - core index']
  #allocation1 [shape = 'u32[72,128]{1,0:T(1,128)}', space=vmem, size = 0x9000, scoped, tag = 'internal scratch']
  #allocation2 [shape = 'f32[18,18,128]{2,1,0:T(8,128)}', space=vmem, size = 0x36000, scoped, tag = 'scratch operand']
  %s0 = inlined_call_operand.vmem [shape: f32[2,16,16,128], index: 0, kind: input, shape index: {}]
  %s1 = inlined_call_operand.vmem [shape: bf16[1152,128], index: 1, kind: input, shape index: {}]
  %s2 = inlined_call_operand.vmem [shape: f32[2,16,16,128], index: 2, kind: output, shape index: {0}]
  %s3 = inlined_call_operand.vmem [shape: f32[2,2,128], index: 3, kind: output, shape index: {1}]
  %4 = xla_tuple %s2, %s3
  %s5 = sld [smem:[#allocation0]]
  $region49: #{residual_block.3} parent=0
    _
  %s7 = ssub.s32 1, %s5
  %s8 = scalar_select 0, %s7, %s5
  loop: start=0, step=1, limit=4
  $region2: #{residual_block.3} parent=0 // loop_pre_header
    _
  $region3: #{residual_block.3} parent=0 // loop_header
    %s10 = sphi 0, %s14
    %p11 = scmp.ge.s32.totalorder %s10, 4
    %s20 = sphi 0, %s22
    %s23 = sphi 0, %s20
    %s24 = sphi 0, %s23
    %s40 = sphi 0, %s24
    %s44 = sphi 0, %s44
    %s46 = sphi 0, %s44
    %s47 = sphi 0, %s46
    %s61 = sphi 0, %s47
    %s67 = sphi 0, %s69
    %s70 = sphi 0, %s67
    %s71 = sphi 0, %s70
    %s87 = sphi 0, %s71
    %s93 = sphi 0, %s95
    %s96 = sphi 0, %s93
    %s97 = sphi 0, %s96
    %s113 = sphi 0, %s97
  $region4: #{residual_block.3} parent=0 // loop_header_branch
    %13 = sbr.rel (%p11) target = $region8
  $region5: #{residual_block.3} parent=0 // loop_body
    %s15 = ssub.s32 %s10, 1
    %s16 = ssub.s32 %s10, 2
    %s17 = sadd.s32 %s10, 1
    %s18 = ssub.s32 %s10, %s17
    %p19 = scmp.eq.s32.totalorder %s18, 0
    %s21 = sadd.s32 %s20, 1
    %s22 = scalar_select %p19, %s20, %s21
    %p25 = pneg %p19
    %p26 = scmp.eq.s32.totalorder %s10, 1
    %p27 = por %p25, %p26
    %p28 = scmp.ne.s32.totalorder %s20, %s23
    %p29 = scmp.eq.s32.totalorder %s10, 0
    %p30 = por %p28, %p29
    %p31 = scmp.ne.s32.totalorder %s20, %s23
    %p32 = scmp.eq.s32.totalorder %s15, 1
    %p33 = por %p31, %p32
    %p34 = scmp.ne.s32.totalorder %s23, %s24
    %p35 = scmp.eq.s32.totalorder %s15, 0
    %p36 = por %p34, %p35
    %p37 = scmp.ne.s32.totalorder %s23, %s24
    %p38 = scmp.eq.s32.totalorder %s16, 1
    %p39 = por %p37, %p38
    %p41 = scmp.ne.s32.totalorder %s24, %s40
    %p42 = scmp.eq.s32.totalorder %s16, 0
    %p43 = por %p41, %p42
    %s45 = sadd.s32 %s44, 1
    %p48 = scmp.eq.s32.totalorder %s10, 1
    %p49 = scmp.ne.s32.totalorder %s44, %s46
    %p50 = scmp.eq.s32.totalorder %s10, 0
    %p51 = por %p49, %p50
    %p52 = scmp.ne.s32.totalorder %s44, %s46
    %p53 = scmp.eq.s32.totalorder %s15, 1
    %p54 = por %p52, %p53
    %p55 = scmp.ne.s32.totalorder %s46, %s47
    %p56 = scmp.eq.s32.totalorder %s15, 0
    %p57 = por %p55, %p56
    %p58 = scmp.ne.s32.totalorder %s46, %s47
    %p59 = scmp.eq.s32.totalorder %s16, 1
    %p60 = por %p58, %p59
    %p62 = scmp.ne.s32.totalorder %s47, %s61
    %p63 = scmp.eq.s32.totalorder %s16, 0
    %p64 = por %p62, %p63
    %s65 = ssub.s32 %s10, %s17
    %p66 = scmp.eq.s32.totalorder %s65, 0
    %s68 = sadd.s32 %s67, 1
    %s69 = scalar_select %p66, %s67, %s68
    %p72 = pneg %p66
    %p73 = scmp.eq.s32.totalorder %s10, 1
    %p74 = por %p72, %p73
    %p75 = scmp.ne.s32.totalorder %s67, %s70
    %p76 = scmp.eq.s32.totalorder %s10, 0
    %p77 = por %p75, %p76
    %p78 = scmp.ne.s32.totalorder %s67, %s70
    %p79 = scmp.eq.s32.totalorder %s15, 1
    %p80 = por %p78, %p79
    %p81 = scmp.ne.s32.totalorder %s70, %s71
    %p82 = scmp.eq.s32.totalorder %s15, 0
    %p83 = por %p81, %p82
    %p84 = scmp.ne.s32.totalorder %s70, %s71
    %p85 = scmp.eq.s32.totalorder %s16, 1
    %p86 = por %p84, %p85
    %p88 = scmp.ne.s32.totalorder %s71, %s87
    %p89 = scmp.eq.s32.totalorder %s16, 0
    %p90 = por %p88, %p89
    %s91 = ssub.s32 %s10, %s17
    %p92 = scmp.eq.s32.totalorder %s91, 0
    %s94 = sadd.s32 %s93, 1
    %s95 = scalar_select %p92, %s93, %s94
    %p98 = pneg %p92
    %p99 = scmp.eq.s32.totalorder %s10, 1
    %p100 = por %p98, %p99
    %p101 = scmp.ne.s32.totalorder %s93, %s96
    %p102 = scmp.eq.s32.totalorder %s10, 0
    %p103 = por %p101, %p102
    %p104 = scmp.ne.s32.totalorder %s93, %s96
    %p105 = scmp.eq.s32.totalorder %s15, 1
    %p106 = por %p104, %p105
    %p107 = scmp.ne.s32.totalorder %s96, %s97
    %p108 = scmp.eq.s32.totalorder %s15, 0
    %p109 = por %p107, %p108
    %p110 = scmp.ne.s32.totalorder %s96, %s97
    %p111 = scmp.eq.s32.totalorder %s16, 1
    %p112 = por %p110, %p111
    %p114 = scmp.ne.s32.totalorder %s97, %s113
    %p115 = scmp.eq.s32.totalorder %s16, 0
    %p116 = por %p114, %p115
    %p117 = scmp.le.s32.totalorder 1, %s10
    %p118 = scmp.lt.s32.totalorder %s10, 3
    %p119 = pnand %p117, %p118
    %p120 = pneg %p119
    // Predicated region
    $region9: #{residual_block.3} parent=5 // pred_check
      _
    $region10: #{residual_block.3} parent=5 // pred_check_branch
      %122 = sbr.rel (%p119) target = $region12
    $region11: #{residual_block.3} parent=5 // pred_region
      %s123 = ssub.s32 %s10, 1
      // Predicated region
      $region13: #{residual_block.3} parent=11 // pred_check
        %p124 = pneg %p57
      $region14: #{residual_block.3} parent=11 // pred_check_branch
        %126 = sbr.rel (%p124) target = $region16
      $region15: #{residual_block.3} parent=11 // pred_region
        _
      $region16: #{residual_block.3} parent=11 // pred_fallthru
        _
    $region12: #{residual_block.3} parent=5 // pred_fallthru
      _
    %p127 = scmp.lt.s32.totalorder %s10, 2
    // Predicated region
    $region17: #{residual_block.3} parent=5 // pred_check
      %p128 = pneg %p127
    $region18: #{residual_block.3} parent=5 // pred_check_branch
      %130 = sbr.rel (%p128) target = $region20
    $region19: #{residual_block.3} parent=5 // pred_region
      // Predicated region
      $region21: #{residual_block.3} parent=19 // pred_check
        %p131 = pneg %p30
      $region22: #{residual_block.3} parent=19 // pred_check_branch
        %133 = sbr.rel (%p131) target = $region24
      $region23: #{residual_block.3} parent=19 // pred_region
        %p134 = scmp.lt.s32.totalorder %s10, 1
        %s135 = scalar_select %p134, %s10, 1
        %s136 = smul.addr %s135, 32
        %s137 = smul.addr %s136, 8
        %s138 = scalar_lea.vmem %s0, %s137
      $region24: #{residual_block.3} parent=19 // pred_fallthru
        _
    $region20: #{residual_block.3} parent=5 // pred_fallthru
      _
    %p139 = scmp.le.s32.totalorder 1, %s10
    %p140 = scmp.lt.s32.totalorder %s10, 3
    %p141 = pnand %p139, %p140
    %p142 = pneg %p141
    // Predicated region
    $region25: #{residual_block.3} parent=5 // pred_check
      _
    $region26: #{residual_block.3} parent=5 // pred_check_branch
      %144 = sbr.rel (%p141) target = $region28
    $region27: #{residual_block.3} parent=5 // pred_region
      %s145 = ssub.s32 %s10, 1
      %p146 = scmp.lt.s32.totalorder %s15, 1
      %s147 = scalar_select %p146, %s15, 1
      %s148 = smul.addr %s147, 32
      %s149 = smul.addr %s148, 8
      %s150 = scalar_lea.vmem %s0, %s149
      %p151 = pneg %p36
      %p152 = pneg %p33
      %p153 = pneg %p57
      %p154 = pneg %p54
      %p155 = pneg %p83
      %p156 = pneg %p80
      %p157 = scmp.lt.s32.totalorder %s15, 1
      %s158 = scalar_select %p157, %s15, 1
      %s159 = smul.addr %s158, 32
      %s160 = smul.addr %s159, 8
      %s161 = scalar_lea.vmem %s2, %s160
      %p162 = pneg %p109
      %p163 = pneg %p106
      %p164 = scmp.lt.s32.totalorder %s15, 1
      %s165 = scalar_select %p164, %s15, 1
      %s166 = smul.addr %s165, 2
      %s167 = scalar_lea.vmem %s3, %s166
      %p168 = scmp.lt.s32.totalorder %s15, 1
      %s169 = scalar_select %p168, %s15, 1
      %s170 = smul.addr %s169, 32
      %s171 = smul.addr %s170, 8
      %s172 = scalar_lea.vmem %s0, %s171
      %p173 = scmp.lt.s32.totalorder %s15, 1
      %s174 = scalar_select %p173, %s15, 1
      %s175 = smul.addr %s174, 32
      %s176 = smul.addr %s175, 8
      %s177 = scalar_lea.vmem %s2, %s176
      %p178 = scmp.lt.s32.totalorder %s15, 1
      %s179 = scalar_select %p178, %s15, 1
      %s180 = smul.addr %s179, 2
      %s181 = scalar_lea.vmem %s3, %s180
      %182 = vst [vmem:[#allocation2] sm:$0xff] 0.0
      %183 = vst [vmem:[#allocation2 + $0x8] sm:$0xff] 0.0
      %184 = vst [vmem:[#allocation2 + $0x10] sm:$0x3] 0.0
      %s185 = scalar_lea.vmem [#allocation2], 408
      %186 = vst [vmem:[%s185] sm:$0xff] 0.0
      %187 = vst [vmem:[%s185 + $0x8] sm:$0xff] 0.0
      %188 = vst [vmem:[%s185 + $0x10] sm:$0x3] 0.0
      %189 = vst [vmem:[#allocation2] sm:$0x1] 0.0
      %190 = vst [vmem:[#allocation2 + $0x18] sm:$0x1] 0.0
      %191 = vst [vmem:[#allocation2 + $0x30] sm:$0x1] 0.0
      %192 = vst [vmem:[#allocation2 + $0x48] sm:$0x1] 0.0
      %193 = vst [vmem:[#allocation2 + $0x60] sm:$0x1] 0.0
      %194 = vst [vmem:[#allocation2 + $0x78] sm:$0x1] 0.0
      %195 = vst [vmem:[#allocation2 + $0x90] sm:$0x1] 0.0
      %196 = vst [vmem:[#allocation2 + $0xa8] sm:$0x1] 0.0
      %197 = vst [vmem:[#allocation2 + $0xc0] sm:$0x1] 0.0
      %198 = vst [vmem:[#allocation2 + $0xd8] sm:$0x1] 0.0
      %199 = vst [vmem:[#allocation2 + $0xf0] sm:$0x1] 0.0
      %200 = vst [vmem:[#allocation2 + $0x108] sm:$0x1] 0.0
      %201 = vst [vmem:[#allocation2 + $0x120] sm:$0x1] 0.0
      %202 = vst [vmem:[#allocation2 + $0x138] sm:$0x1] 0.0
      %203 = vst [vmem:[#allocation2 + $0x150] sm:$0x1] 0.0
      %204 = vst [vmem:[#allocation2 + $0x168] sm:$0x1] 0.0
      %205 = vst [vmem:[#allocation2 + $0x180] sm:$0x1] 0.0
      %206 = vst [vmem:[#allocation2 + $0x198] sm:$0x1] 0.0
      %207 = vst [vmem:[#allocation2 + $0x11] sm:$0x1] 0.0
      %208 = vst [vmem:[#allocation2 + $0x29] sm:$0x1] 0.0
      %209 = vst [vmem:[#allocation2 + $0x41] sm:$0x1] 0.0
      %210 = vst [vmem:[#allocation2 + $0x59] sm:$0x1] 0.0
      %211 = vst [vmem:[#allocation2 + $0x71] sm:$0x1] 0.0
      %212 = vst [vmem:[#allocation2 + $0x89] sm:$0x1] 0.0
      %213 = vst [vmem:[#allocation2 + $0xa1] sm:$0x1] 0.0
      %214 = vst [vmem:[#allocation2 + $0xb9] sm:$0x1] 0.0
      %215 = vst [vmem:[#allocation2 + $0xd1] sm:$0x1] 0.0
      %216 = vst [vmem:[#allocation2 + $0xe9] sm:$0x1] 0.0
      %217 = vst [vmem:[#allocation2 + $0x101] sm:$0x1] 0.0
      %218 = vst [vmem:[#allocation2 + $0x119] sm:$0x1] 0.0
      %219 = vst [vmem:[#allocation2 + $0x131] sm:$0x1] 0.0
      %220 = vst [vmem:[#allocation2 + $0x149] sm:$0x1] 0.0
      %221 = vst [vmem:[#allocation2 + $0x161] sm:$0x1] 0.0
      %222 = vst [vmem:[#allocation2 + $0x179] sm:$0x1] 0.0
      %223 = vst [vmem:[#allocation2 + $0x191] sm:$0x1] 0.0
      %224 = vst [vmem:[#allocation2 + $0x1a9] sm:$0x1] 0.0
      %v225 = vld [vmem:[%s172] sm:$0xff]
      %v226 = vld [vmem:[%s172 + $0x8] sm:$0xff]
      %v227 = vld [vmem:[%s172 + $0x10] sm:$0xff]
      %v228 = vld [vmem:[%s172 + $0x18] sm:$0xff]
      %v229 = vld [vmem:[%s172 + $0x20] sm:$0xff]
      %v230 = vld [vmem:[%s172 + $0x28] sm:$0xff]
      %v231 = vld [vmem:[%s172 + $0x30] sm:$0xff]
      %v232 = vld [vmem:[%s172 + $0x38] sm:$0xff]
      %v233 = vld [vmem:[%s172 + $0x40] sm:$0xff]
      %v234 = vld [vmem:[%s172 + $0x48] sm:$0xff]
      %v235 = vld [vmem:[%s172 + $0x50] sm:$0xff]
      %v236 = vld [vmem:[%s172 + $0x58] sm:$0xff]
      %v237 = vld [vmem:[%s172 + $0x60] sm:$0xff]
      %v238 = vld [vmem:[%s172 + $0x68] sm:$0xff]
      %v239 = vld [vmem:[%s172 + $0x70] sm:$0xff]
      %v240 = vld [vmem:[%s172 + $0x78] sm:$0xff]
      %v241 = vld [vmem:[%s172 + $0x80] sm:$0xff]
      %v242 = vld [vmem:[%s172 + $0x88] sm:$0xff]
      %v243 = vld [vmem:[%s172 + $0x90] sm:$0xff]
      %v244 = vld [vmem:[%s172 + $0x98] sm:$0xff]
      %v245 = vld [vmem:[%s172 + $0xa0] sm:$0xff]
      %v246 = vld [vmem:[%s172 + $0xa8] sm:$0xff]
      %v247 = vld [vmem:[%s172 + $0xb0] sm:$0xff]
      %v248 = vld [vmem:[%s172 + $0xb8] sm:$0xff]
      %v249 = vld [vmem:[%s172 + $0xc0] sm:$0xff]
      %v250 = vld [vmem:[%s172 + $0xc8] sm:$0xff]
      %v251 = vld [vmem:[%s172 + $0xd0] sm:$0xff]
      %v252 = vld [vmem:[%s172 + $0xd8] sm:$0xff]
      %v253 = vld [vmem:[%s172 + $0xe0] sm:$0xff]
      %v254 = vld [vmem:[%s172 + $0xe8] sm:$0xff]
      %v255 = vld [vmem:[%s172 + $0xf0] sm:$0xff]
      %v256 = vld [vmem:[%s172 + $0xf8] sm:$0xff]
      %s257 = scalar_lea.vmem [#allocation2], 24
      %258 = vst [vmem:[%s257 + $0x1] sm:$0xff] %v225
      %259 = vst [vmem:[%s257 + $0x9] sm:$0xff] %v226
      %260 = vst [vmem:[%s257 + $0x19] sm:$0xff] %v227
      %261 = vst [vmem:[%s257 + $0x21] sm:$0xff] %v228
      %262 = vst [vmem:[%s257 + $0x31] sm:$0xff] %v229
      %263 = vst [vmem:[%s257 + $0x39] sm:$0xff] %v230
      %264 = vst [vmem:[%s257 + $0x49] sm:$0xff] %v231
      %265 = vst [vmem:[%s257 + $0x51] sm:$0xff] %v232
      %266 = vst [vmem:[%s257 + $0x61] sm:$0xff] %v233
      %267 = vst [vmem:[%s257 + $0x69] sm:$0xff] %v234
      %268 = vst [vmem:[%s257 + $0x79] sm:$0xff] %v235
      %269 = vst [vmem:[%s257 + $0x81] sm:$0xff] %v236
      %270 = vst [vmem:[%s257 + $0x91] sm:$0xff] %v237
      %271 = vst [vmem:[%s257 + $0x99] sm:$0xff] %v238
      %272 = vst [vmem:[%s257 + $0xa9] sm:$0xff] %v239
      %273 = vst [vmem:[%s257 + $0xb1] sm:$0xff] %v240
      %274 = vst [vmem:[%s257 + $0xc1] sm:$0xff] %v241
      %275 = vst [vmem:[%s257 + $0xc9] sm:$0xff] %v242
      %276 = vst [vmem:[%s257 + $0xd9] sm:$0xff] %v243
      %277 = vst [vmem:[%s257 + $0xe1] sm:$0xff] %v244
      %278 = vst [vmem:[%s257 + $0xf1] sm:$0xff] %v245
      %279 = vst [vmem:[%s257 + $0xf9] sm:$0xff] %v246
      %280 = vst [vmem:[%s257 + $0x109] sm:$0xff] %v247
      %281 = vst [vmem:[%s257 + $0x111] sm:$0xff] %v248
      %282 = vst [vmem:[%s257 + $0x121] sm:$0xff] %v249
      %283 = vst [vmem:[%s257 + $0x129] sm:$0xff] %v250
      %284 = vst [vmem:[%s257 + $0x139] sm:$0xff] %v251
      %285 = vst [vmem:[%s257 + $0x141] sm:$0xff] %v252
      %286 = vst [vmem:[%s257 + $0x151] sm:$0xff] %v253
      %287 = vst [vmem:[%s257 + $0x159] sm:$0xff] %v254
      %288 = vst [vmem:[%s257 + $0x169] sm:$0xff] %v255
      %289 = vst [vmem:[%s257 + $0x171] sm:$0xff] %v256
      %v290 = vld [vmem:[#allocation2] sm:$0xff]
      %v291 = vld [vmem:[#allocation2 + $0x8] sm:$0xff]
      %v292 = vld [vmem:[#allocation2 + $0x10] sm:$0x3]
      %v293 = vld [vmem:[#allocation2 + $0x18] sm:$0xff]
      %v294 = vld [vmem:[#allocation2 + $0x20] sm:$0xff]
      %v295 = vld [vmem:[#allocation2 + $0x28] sm:$0x3]
      %v296 = vld [vmem:[#allocation2 + $0x30] sm:$0xff]
      %v297 = vld [vmem:[#allocation2 + $0x38] sm:$0xff]
      %v298 = vld [vmem:[#allocation2 + $0x40] sm:$0x3]
      %v299 = vld [vmem:[#allocation2 + $0x48] sm:$0xff]
      %v300 = vld [vmem:[#allocation2 + $0x50] sm:$0xff]
      %v301 = vld [vmem:[#allocation2 + $0x58] sm:$0x3]
      %v302 = vld [vmem:[#allocation2 + $0x60] sm:$0xff]
      %v303 = vld [vmem:[#allocation2 + $0x68] sm:$0xff]
      %v304 = vld [vmem:[#allocation2 + $0x70] sm:$0x3]
      %v305 = vld [vmem:[#allocation2 + $0x78] sm:$0xff]
      %v306 = vld [vmem:[#allocation2 + $0x80] sm:$0xff]
      %v307 = vld [vmem:[#allocation2 + $0x88] sm:$0x3]
      %v308 = vld [vmem:[#allocation2 + $0x90] sm:$0xff]
      %v309 = vld [vmem:[#allocation2 + $0x98] sm:$0xff]
      %v310 = vld [vmem:[#allocation2 + $0xa0] sm:$0x3]
      %v311 = vld [vmem:[#allocation2 + $0xa8] sm:$0xff]
      %v312 = vld [vmem:[#allocation2 + $0xb0] sm:$0xff]
      %v313 = vld [vmem:[#allocation2 + $0xb8] sm:$0x3]
      %v314 = vld [vmem:[#allocation2 + $0xc0] sm:$0xff]
      %v315 = vld [vmem:[#allocation2 + $0xc8] sm:$0xff]
      %v316 = vld [vmem:[#allocation2 + $0xd0] sm:$0x3]
      %v317 = vld [vmem:[#allocation2 + $0xd8] sm:$0xff]
      %v318 = vld [vmem:[#allocation2 + $0xe0] sm:$0xff]
      %v319 = vld [vmem:[#allocation2 + $0xe8] sm:$0x3]
      %v320 = vld [vmem:[#allocation2 + $0xf0] sm:$0xff]
      %v321 = vld [vmem:[#allocation2 + $0xf8] sm:$0xff]
      %v322 = vld [vmem:[#allocation2 + $0x100] sm:$0x3]
      %v323 = vld [vmem:[#allocation2 + $0x108] sm:$0xff]
      %v324 = vld [vmem:[#allocation2 + $0x110] sm:$0xff]
      %v325 = vld [vmem:[#allocation2 + $0x118] sm:$0x3]
      %v326 = vld [vmem:[#allocation2 + $0x120] sm:$0xff]
      %v327 = vld [vmem:[#allocation2 + $0x128] sm:$0xff]
      %v328 = vld [vmem:[#allocation2 + $0x130] sm:$0x3]
      %v329 = vld [vmem:[#allocation2 + $0x138] sm:$0xff]
      %v330 = vld [vmem:[#allocation2 + $0x140] sm:$0xff]
      %v331 = vld [vmem:[#allocation2 + $0x148] sm:$0x3]
      %v332 = vld [vmem:[#allocation2 + $0x150] sm:$0xff]
      %v333 = vld [vmem:[#allocation2 + $0x158] sm:$0xff]
      %v334 = vld [vmem:[#allocation2 + $0x160] sm:$0x3]
      %v335 = vld [vmem:[#allocation2 + $0x168] sm:$0xff]
      %v336 = vld [vmem:[#allocation2 + $0x170] sm:$0xff]
      %v337 = vld [vmem:[#allocation2 + $0x178] sm:$0x3]
      %v338 = vld [vmem:[#allocation2 + $0x180] sm:$0xff]
      %v339 = vld [vmem:[#allocation2 + $0x188] sm:$0xff]
      %v340 = vld [vmem:[#allocation2 + $0x190] sm:$0x3]
      %v341 = vld [vmem:[#allocation2 + $0x198] sm:$0xff]
      %v342 = vld [vmem:[#allocation2 + $0x1a0] sm:$0xff]
      %v343 = vld [vmem:[#allocation2 + $0x1a8] sm:$0x3]
      %v344 = vpack.c.bf16 %v290, %v290
      %v345 = vpack.c.bf16 %v291, %v291
      %v346 = vpack.c.bf16 %v292, %v292
      %v347 = vpack.c.bf16 %v293, %v293
      %v348 = vpack.c.bf16 %v294, %v294
      %v349 = vpack.c.bf16 %v295, %v295
      %v350 = vpack.c.bf16 %v296, %v296
      %v351 = vpack.c.bf16 %v297, %v297
      %v352 = vpack.c.bf16 %v298, %v298
      %v353 = vpack.c.bf16 %v299, %v299
      %v354 = vpack.c.bf16 %v300, %v300
      %v355 = vpack.c.bf16 %v301, %v301
      %v356 = vpack.c.bf16 %v302, %v302
      %v357 = vpack.c.bf16 %v303, %v303
      %v358 = vpack.c.bf16 %v304, %v304
      %v359 = vpack.c.bf16 %v305, %v305
      %v360 = vpack.c.bf16 %v306, %v306
      %v361 = vpack.c.bf16 %v307, %v307
      %v362 = vpack.c.bf16 %v308, %v308
      %v363 = vpack.c.bf16 %v309, %v309
      %v364 = vpack.c.bf16 %v310, %v310
      %v365 = vpack.c.bf16 %v311, %v311
      %v366 = vpack.c.bf16 %v312, %v312
      %v367 = vpack.c.bf16 %v313, %v313
      %v368 = vpack.c.bf16 %v314, %v314
      %v369 = vpack.c.bf16 %v315, %v315
      %v370 = vpack.c.bf16 %v316, %v316
      %v371 = vpack.c.bf16 %v317, %v317
      %v372 = vpack.c.bf16 %v318, %v318
      %v373 = vpack.c.bf16 %v319, %v319
      %v374 = vpack.c.bf16 %v320, %v320
      %v375 = vpack.c.bf16 %v321, %v321
      %v376 = vpack.c.bf16 %v322, %v322
      %v377 = vpack.c.bf16 %v323, %v323
      %v378 = vpack.c.bf16 %v324, %v324
      %v379 = vpack.c.bf16 %v325, %v325
      %v380 = vpack.c.bf16 %v326, %v326
      %v381 = vpack.c.bf16 %v327, %v327
      %v382 = vpack.c.bf16 %v328, %v328
      %v383 = vpack.c.bf16 %v329, %v329
      %v384 = vpack.c.bf16 %v330, %v330
      %v385 = vpack.c.bf16 %v331, %v331
      %v386 = vpack.c.bf16 %v332, %v332
      %v387 = vpack.c.bf16 %v333, %v333
      %v388 = vpack.c.bf16 %v334, %v334
      %v389 = vpack.c.bf16 %v335, %v335
      %v390 = vpack.c.bf16 %v336, %v336
      %v391 = vpack.c.bf16 %v337, %v337
      %v392 = vpack.c.bf16 %v338, %v338
      %v393 = vpack.c.bf16 %v339, %v339
      %v394 = vpack.c.bf16 %v340, %v340
      %v395 = vpack.c.bf16 %v341, %v341
      %v396 = vpack.c.bf16 %v342, %v342
      %v397 = vpack.c.bf16 %v343, %v343
      %vm398 = vsmask.f32 3328
      %vm399 = vsmask.f32 7440
      %vm400 = vmor %vm398, %vm399
      %v402 = vshrl.u32 %v344, 16
      %v404 = vrot.slane %v402, 4
      %v405 = vshll.u32 %v344, 16
      %v407 = vrot.slane %v405, 5
      %v408 = vor.u32 %v404, %v407
      %v409 = vrot.slane %v408, 4
      %v411 = vshll.u32 %v345, 16
      %v413 = vrot.slane %v411, 5
      %v414 = vsel %vm400, %v409, %v413
      %v415 = vshrl.u32 %v345, 16
      %v417 = vrot.slane %v415, 4
      %v418 = vor.u32 %v417, %v413
      %v419 = vrot.slane %v418, 4
      %v421 = vshll.u32 %v346, 16
      %v423 = vrot.slane %v421, 5
      %v424 = vsel %vm400, %v419, %v423
      %v426 = vshrl.u32 %v347, 16
      %v428 = vrot.slane %v426, 4
      %v429 = vshll.u32 %v347, 16
      %v431 = vrot.slane %v429, 5
      %v432 = vor.u32 %v428, %v431
      %v433 = vrot.slane %v432, 4
      %v435 = vshll.u32 %v348, 16
      %v437 = vrot.slane %v435, 5
      %v438 = vsel %vm400, %v433, %v437
      %v439 = vshrl.u32 %v348, 16
      %v441 = vrot.slane %v439, 4
      %v442 = vor.u32 %v441, %v437
      %v443 = vrot.slane %v442, 4
      %v445 = vshll.u32 %v349, 16
      %v447 = vrot.slane %v445, 5
      %v448 = vsel %vm400, %v443, %v447
      %v450 = vshrl.u32 %v350, 16
      %v452 = vrot.slane %v450, 4
      %v453 = vshll.u32 %v350, 16
      %v455 = vrot.slane %v453, 5
      %v456 = vor.u32 %v452, %v455
      %v457 = vrot.slane %v456, 4
      %v459 = vshll.u32 %v351, 16
      %v461 = vrot.slane %v459, 5
      %v462 = vsel %vm400, %v457, %v461
      %v463 = vshrl.u32 %v351, 16
      %v465 = vrot.slane %v463, 4
      %v466 = vor.u32 %v465, %v461
      %v467 = vrot.slane %v466, 4
      %v469 = vshll.u32 %v352, 16
      %v471 = vrot.slane %v469, 5
      %v472 = vsel %vm400, %v467, %v471
      %v474 = vshrl.u32 %v353, 16
      %v476 = vrot.slane %v474, 4
      %v477 = vshll.u32 %v353, 16
      %v479 = vrot.slane %v477, 5
      %v480 = vor.u32 %v476, %v479
      %v481 = vrot.slane %v480, 4
      %v483 = vshll.u32 %v354, 16
      %v485 = vrot.slane %v483, 5
      %v486 = vsel %vm400, %v481, %v485
      %v487 = vshrl.u32 %v354, 16
      %v489 = vrot.slane %v487, 4
      %v490 = vor.u32 %v489, %v485
      %v491 = vrot.slane %v490, 4
      %v493 = vshll.u32 %v355, 16
      %v495 = vrot.slane %v493, 5
      %v496 = vsel %vm400, %v491, %v495
      %v498 = vshrl.u32 %v356, 16
      %v500 = vrot.slane %v498, 4
      %v501 = vshll.u32 %v356, 16
      %v503 = vrot.slane %v501, 5
      %v504 = vor.u32 %v500, %v503
      %v505 = vrot.slane %v504, 4
      %v507 = vshll.u32 %v357, 16
      %v509 = vrot.slane %v507, 5
      %v510 = vsel %vm400, %v505, %v509
      %v511 = vshrl.u32 %v357, 16
      %v513 = vrot.slane %v511, 4
      %v514 = vor.u32 %v513, %v509
      %v515 = vrot.slane %v514, 4
      %v517 = vshll.u32 %v358, 16
      %v519 = vrot.slane %v517, 5
      %v520 = vsel %vm400, %v515, %v519
      %v522 = vshrl.u32 %v359, 16
      %v524 = vrot.slane %v522, 4
      %v525 = vshll.u32 %v359, 16
      %v527 = vrot.slane %v525, 5
      %v528 = vor.u32 %v524, %v527
      %v529 = vrot.slane %v528, 4
      %v531 = vshll.u32 %v360, 16
      %v533 = vrot.slane %v531, 5
      %v534 = vsel %vm400, %v529, %v533
      %v535 = vshrl.u32 %v360, 16
      %v537 = vrot.slane %v535, 4
      %v538 = vor.u32 %v537, %v533
      %v539 = vrot.slane %v538, 4
      %v541 = vshll.u32 %v361, 16
      %v543 = vrot.slane %v541, 5
      %v544 = vsel %vm400, %v539, %v543
      %v546 = vshrl.u32 %v362, 16
      %v548 = vrot.slane %v546, 4
      %v549 = vshll.u32 %v362, 16
      %v551 = vrot.slane %v549, 5
      %v552 = vor.u32 %v548, %v551
      %v553 = vrot.slane %v552, 4
      %v555 = vshll.u32 %v363, 16
      %v557 = vrot.slane %v555, 5
      %v558 = vsel %vm400, %v553, %v557
      %v559 = vshrl.u32 %v363, 16
      %v561 = vrot.slane %v559, 4
      %v562 = vor.u32 %v561, %v557
      %v563 = vrot.slane %v562, 4
      %v565 = vshll.u32 %v364, 16
      %v567 = vrot.slane %v565, 5
      %v568 = vsel %vm400, %v563, %v567
      %v570 = vshrl.u32 %v365, 16
      %v572 = vrot.slane %v570, 4
      %v573 = vshll.u32 %v365, 16
      %v575 = vrot.slane %v573, 5
      %v576 = vor.u32 %v572, %v575
      %v577 = vrot.slane %v576, 4
      %v579 = vshll.u32 %v366, 16
      %v581 = vrot.slane %v579, 5
      %v582 = vsel %vm400, %v577, %v581
      %v583 = vshrl.u32 %v366, 16
      %v585 = vrot.slane %v583, 4
      %v586 = vor.u32 %v585, %v581
      %v587 = vrot.slane %v586, 4
      %v589 = vshll.u32 %v367, 16
      %v591 = vrot.slane %v589, 5
      %v592 = vsel %vm400, %v587, %v591
      %v594 = vshrl.u32 %v368, 16
      %v596 = vrot.slane %v594, 4
      %v597 = vshll.u32 %v368, 16
      %v599 = vrot.slane %v597, 5
      %v600 = vor.u32 %v596, %v599
      %v601 = vrot.slane %v600, 4
      %v603 = vshll.u32 %v369, 16
      %v605 = vrot.slane %v603, 5
      %v606 = vsel %vm400, %v601, %v605
      %v607 = vshrl.u32 %v369, 16
      %v609 = vrot.slane %v607, 4
      %v610 = vor.u32 %v609, %v605
      %v611 = vrot.slane %v610, 4
      %v613 = vshll.u32 %v370, 16
      %v615 = vrot.slane %v613, 5
      %v616 = vsel %vm400, %v611, %v615
      %v618 = vshrl.u32 %v371, 16
      %v620 = vrot.slane %v618, 4
      %v621 = vshll.u32 %v371, 16
      %v623 = vrot.slane %v621, 5
      %v624 = vor.u32 %v620, %v623
      %v625 = vrot.slane %v624, 4
      %v627 = vshll.u32 %v372, 16
      %v629 = vrot.slane %v627, 5
      %v630 = vsel %vm400, %v625, %v629
      %v631 = vshrl.u32 %v372, 16
      %v633 = vrot.slane %v631, 4
      %v634 = vor.u32 %v633, %v629
      %v635 = vrot.slane %v634, 4
      %v637 = vshll.u32 %v373, 16
      %v639 = vrot.slane %v637, 5
      %v640 = vsel %vm400, %v635, %v639
      %v642 = vshrl.u32 %v374, 16
      %v644 = vrot.slane %v642, 4
      %v645 = vshll.u32 %v374, 16
      %v647 = vrot.slane %v645, 5
      %v648 = vor.u32 %v644, %v647
      %v649 = vrot.slane %v648, 4
      %v651 = vshll.u32 %v375, 16
      %v653 = vrot.slane %v651, 5
      %v654 = vsel %vm400, %v649, %v653
      %v655 = vshrl.u32 %v375, 16
      %v657 = vrot.slane %v655, 4
      %v658 = vor.u32 %v657, %v653
      %v659 = vrot.slane %v658, 4
      %v661 = vshll.u32 %v376, 16
      %v663 = vrot.slane %v661, 5
      %v664 = vsel %vm400, %v659, %v663
      %v666 = vshrl.u32 %v377, 16
      %v668 = vrot.slane %v666, 4
      %v669 = vshll.u32 %v377, 16
      %v671 = vrot.slane %v669, 5
      %v672 = vor.u32 %v668, %v671
      %v673 = vrot.slane %v672, 4
      %v675 = vshll.u32 %v378, 16
      %v677 = vrot.slane %v675, 5
      %v678 = vsel %vm400, %v673, %v677
      %v679 = vshrl.u32 %v378, 16
      %v681 = vrot.slane %v679, 4
      %v682 = vor.u32 %v681, %v677
      %v683 = vrot.slane %v682, 4
      %v685 = vshll.u32 %v379, 16
      %v687 = vrot.slane %v685, 5
      %v688 = vsel %vm400, %v683, %v687
      %v690 = vshrl.u32 %v380, 16
      %v692 = vrot.slane %v690, 4
      %v693 = vshll.u32 %v380, 16
      %v695 = vrot.slane %v693, 5
      %v696 = vor.u32 %v692, %v695
      %v697 = vrot.slane %v696, 4
      %v699 = vshll.u32 %v381, 16
      %v701 = vrot.slane %v699, 5
      %v702 = vsel %vm400, %v697, %v701
      %v703 = vshrl.u32 %v381, 16
      %v705 = vrot.slane %v703, 4
      %v706 = vor.u32 %v705, %v701
      %v707 = vrot.slane %v706, 4
      %v709 = vshll.u32 %v382, 16
      %v711 = vrot.slane %v709, 5
      %v712 = vsel %vm400, %v707, %v711
      %v714 = vshrl.u32 %v383, 16
      %v716 = vrot.slane %v714, 4
      %v717 = vshll.u32 %v383, 16
      %v719 = vrot.slane %v717, 5
      %v720 = vor.u32 %v716, %v719
      %v721 = vrot.slane %v720, 4
      %v723 = vshll.u32 %v384, 16
      %v725 = vrot.slane %v723, 5
      %v726 = vsel %vm400, %v721, %v725
      %v727 = vshrl.u32 %v384, 16
      %v729 = vrot.slane %v727, 4
      %v730 = vor.u32 %v729, %v725
      %v731 = vrot.slane %v730, 4
      %v733 = vshll.u32 %v385, 16
      %v735 = vrot.slane %v733, 5
      %v736 = vsel %vm400, %v731, %v735
      %v738 = vshrl.u32 %v386, 16
      %v740 = vrot.slane %v738, 4
      %v741 = vshll.u32 %v386, 16
      %v743 = vrot.slane %v741, 5
      %v744 = vor.u32 %v740, %v743
      %v745 = vrot.slane %v744, 4
      %v747 = vshll.u32 %v387, 16
      %v749 = vrot.slane %v747, 5
      %v750 = vsel %vm400, %v745, %v749
      %v751 = vshrl.u32 %v387, 16
      %v753 = vrot.slane %v751, 4
      %v754 = vor.u32 %v753, %v749
      %v755 = vrot.slane %v754, 4
      %v757 = vshll.u32 %v388, 16
      %v759 = vrot.slane %v757, 5
      %v760 = vsel %vm400, %v755, %v759
      %v762 = vshrl.u32 %v389, 16
      %v764 = vrot.slane %v762, 4
      %v765 = vshll.u32 %v389, 16
      %v767 = vrot.slane %v765, 5
      %v768 = vor.u32 %v764, %v767
      %v769 = vrot.slane %v768, 4
      %v771 = vshll.u32 %v390, 16
      %v773 = vrot.slane %v771, 5
      %v774 = vsel %vm400, %v769, %v773
      %v775 = vshrl.u32 %v390, 16
      %v777 = vrot.slane %v775, 4
      %v778 = vor.u32 %v777, %v773
      %v779 = vrot.slane %v778, 4
      %v781 = vshll.u32 %v391, 16
      %v783 = vrot.slane %v781, 5
      %v784 = vsel %vm400, %v779, %v783
      %vm833 = vcmask 1042432
      %vm834 = vcmask 1046532
      %vm835 = vmor %vm833, %vm834
      %v836 = vrot.slane %v344, 5
      %v837 = vrot.slane %v836, 4
      %v838 = vrot.slane %v345, 5
      %v839 = vsel %vm835, %v837, %v838
      %v840 = vrot.slane %v838, 4
      %v841 = vrot.slane %v346, 5
      %v842 = vsel %vm835, %v840, %v841
      %v843 = vrot.slane %v347, 5
      %v844 = vrot.slane %v843, 4
      %v845 = vrot.slane %v348, 5
      %v846 = vsel %vm835, %v844, %v845
      %v847 = vrot.slane %v845, 4
      %v848 = vrot.slane %v349, 5
      %v849 = vsel %vm835, %v847, %v848
      %v850 = vrot.slane %v350, 5
      %v851 = vrot.slane %v850, 4
      %v852 = vrot.slane %v351, 5
      %v853 = vsel %vm835, %v851, %v852
      %v854 = vrot.slane %v852, 4
      %v855 = vrot.slane %v352, 5
      %v856 = vsel %vm835, %v854, %v855
      %v857 = vrot.slane %v353, 5
      %v858 = vrot.slane %v857, 4
      %v859 = vrot.slane %v354, 5
      %v860 = vsel %vm835, %v858, %v859
      %v861 = vrot.slane %v859, 4
      %v862 = vrot.slane %v355, 5
      %v863 = vsel %vm835, %v861, %v862
      %v864 = vrot.slane %v356, 5
      %v865 = vrot.slane %v864, 4
      %v866 = vrot.slane %v357, 5
      %v867 = vsel %vm835, %v865, %v866
      %v868 = vrot.slane %v866, 4
      %v869 = vrot.slane %v358, 5
      %v870 = vsel %vm835, %v868, %v869
      %v871 = vrot.slane %v359, 5
      %v872 = vrot.slane %v871, 4
      %v873 = vrot.slane %v360, 5
      %v874 = vsel %vm835, %v872, %v873
      %v875 = vrot.slane %v873, 4
      %v876 = vrot.slane %v361, 5
      %v877 = vsel %vm835, %v875, %v876
      %v878 = vrot.slane %v362, 5
      %v879 = vrot.slane %v878, 4
      %v880 = vrot.slane %v363, 5
      %v881 = vsel %vm835, %v879, %v880
      %v882 = vrot.slane %v880, 4
      %v883 = vrot.slane %v364, 5
      %v884 = vsel %vm835, %v882, %v883
      %v885 = vrot.slane %v365, 5
      %v886 = vrot.slane %v885, 4
      %v887 = vrot.slane %v366, 5
      %v888 = vsel %vm835, %v886, %v887
      %v889 = vrot.slane %v887, 4
      %v890 = vrot.slane %v367, 5
      %v891 = vsel %vm835, %v889, %v890
      %v892 = vrot.slane %v368, 5
      %v893 = vrot.slane %v892, 4
      %v894 = vrot.slane %v369, 5
      %v895 = vsel %vm835, %v893, %v894
      %v896 = vrot.slane %v894, 4
      %v897 = vrot.slane %v370, 5
      %v898 = vsel %vm835, %v896, %v897
      %v899 = vrot.slane %v371, 5
      %v900 = vrot.slane %v899, 4
      %v901 = vrot.slane %v372, 5
      %v902 = vsel %vm835, %v900, %v901
      %v903 = vrot.slane %v901, 4
      %v904 = vrot.slane %v373, 5
      %v905 = vsel %vm835, %v903, %v904
      %v906 = vrot.slane %v374, 5
      %v907 = vrot.slane %v906, 4
      %v908 = vrot.slane %v375, 5
      %v909 = vsel %vm835, %v907, %v908
      %v910 = vrot.slane %v908, 4
      %v911 = vrot.slane %v376, 5
      %v912 = vsel %vm835, %v910, %v911
      %v913 = vrot.slane %v377, 5
      %v914 = vrot.slane %v913, 4
      %v915 = vrot.slane %v378, 5
      %v916 = vsel %vm835, %v914, %v915
      %v917 = vrot.slane %v915, 4
      %v918 = vrot.slane %v379, 5
      %v919 = vsel %vm835, %v917, %v918
      %v920 = vrot.slane %v380, 5
      %v921 = vrot.slane %v920, 4
      %v922 = vrot.slane %v381, 5
      %v923 = vsel %vm835, %v921, %v922
      %v924 = vrot.slane %v922, 4
      %v925 = vrot.slane %v382, 5
      %v926 = vsel %vm835, %v924, %v925
      %v927 = vrot.slane %v383, 5
      %v928 = vrot.slane %v927, 4
      %v929 = vrot.slane %v384, 5
      %v930 = vsel %vm835, %v928, %v929
      %v931 = vrot.slane %v929, 4
      %v932 = vrot.slane %v385, 5
      %v933 = vsel %vm835, %v931, %v932
      %v934 = vrot.slane %v386, 5
      %v935 = vrot.slane %v934, 4
      %v936 = vrot.slane %v387, 5
      %v937 = vsel %vm835, %v935, %v936
      %v938 = vrot.slane %v936, 4
      %v939 = vrot.slane %v388, 5
      %v940 = vsel %vm835, %v938, %v939
      %v941 = vrot.slane %v389, 5
      %v942 = vrot.slane %v941, 4
      %v943 = vrot.slane %v390, 5
      %v944 = vsel %vm835, %v942, %v943
      %v945 = vrot.slane %v943, 4
      %v946 = vrot.slane %v391, 5
      %v947 = vsel %vm835, %v945, %v946
      %v949 = vshrl.u32 %v392, 16
      %v951 = vrot.slane %v949, 4
      %v952 = vshll.u32 %v392, 16
      %v954 = vrot.slane %v952, 5
      %v955 = vor.u32 %v951, %v954
      %v956 = vrot.slane %v955, 4
      %v958 = vshll.u32 %v393, 16
      %v960 = vrot.slane %v958, 5
      %v961 = vsel %vm400, %v956, %v960
      %v962 = vshrl.u32 %v393, 16
      %v964 = vrot.slane %v962, 4
      %v965 = vor.u32 %v964, %v960
      %v966 = vrot.slane %v965, 4
      %v968 = vshll.u32 %v394, 16
      %v970 = vrot.slane %v968, 5
      %v971 = vsel %vm400, %v966, %v970
      %v975 = vrot.slane %v392, 5
      %v976 = vrot.slane %v975, 4
      %v977 = vrot.slane %v393, 5
      %v978 = vsel %vm835, %v976, %v977
      %v979 = vrot.slane %v977, 4
      %v980 = vrot.slane %v394, 5
      %v981 = vsel %vm835, %v979, %v980
      %v983 = vshrl.u32 %v395, 16
      %v985 = vrot.slane %v983, 4
      %v986 = vshll.u32 %v395, 16
      %v988 = vrot.slane %v986, 5
      %v989 = vor.u32 %v985, %v988
      %v990 = vrot.slane %v989, 4
      %v992 = vshll.u32 %v396, 16
      %v994 = vrot.slane %v992, 5
      %v995 = vsel %vm400, %v990, %v994
      %v996 = vshrl.u32 %v396, 16
      %v998 = vrot.slane %v996, 4
      %v999 = vor.u32 %v998, %v994
      %v1000 = vrot.slane %v999, 4
      %v1002 = vshll.u32 %v397, 16
      %v1004 = vrot.slane %v1002, 5
      %v1005 = vsel %vm400, %v1000, %v1004
      %v1009 = vrot.slane %v395, 5
      %v1010 = vrot.slane %v1009, 4
      %v1011 = vrot.slane %v396, 5
      %v1012 = vsel %vm835, %v1010, %v1011
      %v1013 = vrot.slane %v1011, 4
      %v1014 = vrot.slane %v397, 5
      %v1015 = vsel %vm835, %v1013, %v1014
      %v1016 = vunpack.c.l.b16 %v344
      %v1017 = vunpack.c.l.b16 %v345
      %v1018 = vunpack.c.l.b16 %v347
      %v1019 = vunpack.c.l.b16 %v348
      %v1020 = vunpack.c.l.b16 %v350
      %v1021 = vunpack.c.l.b16 %v351
      %v1022 = vunpack.c.l.b16 %v353
      %v1023 = vunpack.c.l.b16 %v354
      %v1024 = vunpack.c.l.b16 %v356
      %v1025 = vunpack.c.l.b16 %v357
      %v1026 = vunpack.c.l.b16 %v359
      %v1027 = vunpack.c.l.b16 %v360
      %v1028 = vunpack.c.l.b16 %v362
      %v1029 = vunpack.c.l.b16 %v363
      %v1030 = vunpack.c.l.b16 %v365
      %v1031 = vunpack.c.l.b16 %v366
      %v1032 = vunpack.c.l.b16 %v368
      %v1033 = vunpack.c.l.b16 %v369
      %v1034 = vunpack.c.l.b16 %v371
      %v1035 = vunpack.c.l.b16 %v372
      %v1036 = vunpack.c.l.b16 %v374
      %v1037 = vunpack.c.l.b16 %v375
      %v1038 = vunpack.c.l.b16 %v377
      %v1039 = vunpack.c.l.b16 %v378
      %v1040 = vunpack.c.l.b16 %v380
      %v1041 = vunpack.c.l.b16 %v381
      %v1042 = vunpack.c.l.b16 %v383
      %v1043 = vunpack.c.l.b16 %v384
      %v1044 = vunpack.c.l.b16 %v386
      %v1045 = vunpack.c.l.b16 %v387
      %v1046 = vunpack.c.l.b16 %v389
      %v1047 = vunpack.c.l.b16 %v390
      %v1048 = vpack.c.b16 %v1017, %v1016
      %v1049 = vpack.c.b16 %v1019, %v1018
      %v1050 = vpack.c.b16 %v1021, %v1020
      %v1051 = vpack.c.b16 %v1023, %v1022
      %v1052 = vpack.c.b16 %v1025, %v1024
      %v1053 = vpack.c.b16 %v1027, %v1026
      %v1054 = vpack.c.b16 %v1029, %v1028
      %v1055 = vpack.c.b16 %v1031, %v1030
      %v1056 = vpack.c.b16 %v1033, %v1032
      %v1057 = vpack.c.b16 %v1035, %v1034
      %v1058 = vpack.c.b16 %v1037, %v1036
      %v1059 = vpack.c.b16 %v1039, %v1038
      %v1060 = vpack.c.b16 %v1041, %v1040
      %v1061 = vpack.c.b16 %v1043, %v1042
      %v1062 = vpack.c.b16 %v1045, %v1044
      %v1063 = vpack.c.b16 %v1047, %v1046
      %v1080 = vunpack.c.l.b16 %v414
      %v1081 = vunpack.c.l.b16 %v424
      %v1082 = vunpack.c.l.b16 %v438
      %v1083 = vunpack.c.l.b16 %v448
      %v1084 = vunpack.c.l.b16 %v462
      %v1085 = vunpack.c.l.b16 %v472
      %v1086 = vunpack.c.l.b16 %v486
      %v1087 = vunpack.c.l.b16 %v496
      %v1088 = vunpack.c.l.b16 %v510
      %v1089 = vunpack.c.l.b16 %v520
      %v1090 = vunpack.c.l.b16 %v534
      %v1091 = vunpack.c.l.b16 %v544
      %v1092 = vunpack.c.l.b16 %v558
      %v1093 = vunpack.c.l.b16 %v568
      %v1094 = vunpack.c.l.b16 %v582
      %v1095 = vunpack.c.l.b16 %v592
      %v1096 = vunpack.c.l.b16 %v606
      %v1097 = vunpack.c.l.b16 %v616
      %v1098 = vunpack.c.l.b16 %v630
      %v1099 = vunpack.c.l.b16 %v640
      %v1100 = vunpack.c.l.b16 %v654
      %v1101 = vunpack.c.l.b16 %v664
      %v1102 = vunpack.c.l.b16 %v678
      %v1103 = vunpack.c.l.b16 %v688
      %v1104 = vunpack.c.l.b16 %v702
      %v1105 = vunpack.c.l.b16 %v712
      %v1106 = vunpack.c.l.b16 %v726
      %v1107 = vunpack.c.l.b16 %v736
      %v1108 = vunpack.c.l.b16 %v750
      %v1109 = vunpack.c.l.b16 %v760
      %v1110 = vunpack.c.l.b16 %v774
      %v1111 = vunpack.c.l.b16 %v784
      %v1112 = vpack.c.b16 %v1081, %v1080
      %v1113 = vpack.c.b16 %v1083, %v1082
      %v1114 = vpack.c.b16 %v1085, %v1084
      %v1115 = vpack.c.b16 %v1087, %v1086
      %v1116 = vpack.c.b16 %v1089, %v1088
      %v1117 = vpack.c.b16 %v1091, %v1090
      %v1118 = vpack.c.b16 %v1093, %v1092
      %v1119 = vpack.c.b16 %v1095, %v1094
      %v1120 = vpack.c.b16 %v1097, %v1096
      %v1121 = vpack.c.b16 %v1099, %v1098
      %v1122 = vpack.c.b16 %v1101, %v1100
      %v1123 = vpack.c.b16 %v1103, %v1102
      %v1124 = vpack.c.b16 %v1105, %v1104
      %v1125 = vpack.c.b16 %v1107, %v1106
      %v1126 = vpack.c.b16 %v1109, %v1108
      %v1127 = vpack.c.b16 %v1111, %v1110
      %v1144 = vunpack.c.l.b16 %v839
      %v1145 = vunpack.c.l.b16 %v842
      %v1146 = vunpack.c.l.b16 %v846
      %v1147 = vunpack.c.l.b16 %v849
      %v1148 = vunpack.c.l.b16 %v853
      %v1149 = vunpack.c.l.b16 %v856
      %v1150 = vunpack.c.l.b16 %v860
      %v1151 = vunpack.c.l.b16 %v863
      %v1152 = vunpack.c.l.b16 %v867
      %v1153 = vunpack.c.l.b16 %v870
      %v1154 = vunpack.c.l.b16 %v874
      %v1155 = vunpack.c.l.b16 %v877
      %v1156 = vunpack.c.l.b16 %v881
      %v1157 = vunpack.c.l.b16 %v884
      %v1158 = vunpack.c.l.b16 %v888
      %v1159 = vunpack.c.l.b16 %v891
      %v1160 = vunpack.c.l.b16 %v895
      %v1161 = vunpack.c.l.b16 %v898
      %v1162 = vunpack.c.l.b16 %v902
      %v1163 = vunpack.c.l.b16 %v905
      %v1164 = vunpack.c.l.b16 %v909
      %v1165 = vunpack.c.l.b16 %v912
      %v1166 = vunpack.c.l.b16 %v916
      %v1167 = vunpack.c.l.b16 %v919
      %v1168 = vunpack.c.l.b16 %v923
      %v1169 = vunpack.c.l.b16 %v926
      %v1170 = vunpack.c.l.b16 %v930
      %v1171 = vunpack.c.l.b16 %v933
      %v1172 = vunpack.c.l.b16 %v937
      %v1173 = vunpack.c.l.b16 %v940
      %v1174 = vunpack.c.l.b16 %v944
      %v1175 = vunpack.c.l.b16 %v947
      %v1176 = vpack.c.b16 %v1145, %v1144
      %v1177 = vpack.c.b16 %v1147, %v1146
      %v1178 = vpack.c.b16 %v1149, %v1148
      %v1179 = vpack.c.b16 %v1151, %v1150
      %v1180 = vpack.c.b16 %v1153, %v1152
      %v1181 = vpack.c.b16 %v1155, %v1154
      %v1182 = vpack.c.b16 %v1157, %v1156
      %v1183 = vpack.c.b16 %v1159, %v1158
      %v1184 = vpack.c.b16 %v1161, %v1160
      %v1185 = vpack.c.b16 %v1163, %v1162
      %v1186 = vpack.c.b16 %v1165, %v1164
      %v1187 = vpack.c.b16 %v1167, %v1166
      %v1188 = vpack.c.b16 %v1169, %v1168
      %v1189 = vpack.c.b16 %v1171, %v1170
      %v1190 = vpack.c.b16 %v1173, %v1172
      %v1191 = vpack.c.b16 %v1175, %v1174
      %v1208 = vunpack.c.l.b16 %v392
      %v1209 = vunpack.c.l.b16 %v393
      %v1210 = vpack.c.b16 %v1209, %v1208
      %v1212 = vunpack.c.l.b16 %v961
      %v1213 = vunpack.c.l.b16 %v971
      %v1214 = vpack.c.b16 %v1213, %v1212
      %v1216 = vunpack.c.l.b16 %v978
      %v1217 = vunpack.c.l.b16 %v981
      %v1218 = vpack.c.b16 %v1217, %v1216
      %v1220 = vunpack.c.l.b16 %v395
      %v1221 = vunpack.c.l.b16 %v396
      %v1222 = vpack.c.b16 %v1221, %v1220
      %v1224 = vunpack.c.l.b16 %v995
      %v1225 = vunpack.c.l.b16 %v1005
      %v1226 = vpack.c.b16 %v1225, %v1224
      %v1228 = vunpack.c.l.b16 %v1012
      %v1229 = vunpack.c.l.b16 %v1015
      %v1230 = vpack.c.b16 %v1229, %v1228
      %v1232 = vld [vmem:[%s1] sm:$0xf]
      %v1233 = vld [vmem:[%s1 + $0x4] sm:$0xf]
      %v1234 = vld [vmem:[%s1 + $0x8] sm:$0xf]
      %v1235 = vld [vmem:[%s1 + $0xc] sm:$0xf]
      %v1236 = vld [vmem:[%s1 + $0x10] sm:$0xf]
      %v1237 = vld [vmem:[%s1 + $0x14] sm:$0xf]
      %v1238 = vld [vmem:[%s1 + $0x18] sm:$0xf]
      %v1239 = vld [vmem:[%s1 + $0x1c] sm:$0xf]
      %v1240 = vld [vmem:[%s1 + $0x20] sm:$0xf]
      %v1241 = vld [vmem:[%s1 + $0x24] sm:$0xf]
      %v1242 = vld [vmem:[%s1 + $0x28] sm:$0xf]
      %v1243 = vld [vmem:[%s1 + $0x2c] sm:$0xf]
      %v1244 = vld [vmem:[%s1 + $0x30] sm:$0xf]
      %v1245 = vld [vmem:[%s1 + $0x34] sm:$0xf]
      %v1246 = vld [vmem:[%s1 + $0x38] sm:$0xf]
      %v1247 = vld [vmem:[%s1 + $0x3c] sm:$0xf]
      %v1248 = vld [vmem:[%s1 + $0x40] sm:$0xf]
      %v1249 = vld [vmem:[%s1 + $0x44] sm:$0xf]
      %v1250 = vld [vmem:[%s1 + $0x48] sm:$0xf]
      %v1251 = vld [vmem:[%s1 + $0x4c] sm:$0xf]
      %v1252 = vld [vmem:[%s1 + $0x50] sm:$0xf]
      %v1253 = vld [vmem:[%s1 + $0x54] sm:$0xf]
      %v1254 = vld [vmem:[%s1 + $0x58] sm:$0xf]
      %v1255 = vld [vmem:[%s1 + $0x5c] sm:$0xf]
      %v1256 = vld [vmem:[%s1 + $0x60] sm:$0xf]
      %v1257 = vld [vmem:[%s1 + $0x64] sm:$0xf]
      %v1258 = vld [vmem:[%s1 + $0x68] sm:$0xf]
      %v1259 = vld [vmem:[%s1 + $0x6c] sm:$0xf]
      %v1260 = vld [vmem:[%s1 + $0x70] sm:$0xf]
      %v1261 = vld [vmem:[%s1 + $0x74] sm:$0xf]
      %v1262 = vld [vmem:[%s1 + $0x78] sm:$0xf]
      %v1263 = vld [vmem:[%s1 + $0x7c] sm:$0xf]
      %v1264 = vld [vmem:[%s1 + $0x80] sm:$0xf]
      %v1265 = vld [vmem:[%s1 + $0x84] sm:$0xf]
      %v1266 = vld [vmem:[%s1 + $0x88] sm:$0xf]
      %v1267 = vld [vmem:[%s1 + $0x8c] sm:$0xf]
      %v1268 = vld [vmem:[%s1 + $0x90] sm:$0xf]
      %v1269 = vld [vmem:[%s1 + $0x94] sm:$0xf]
      %v1270 = vld [vmem:[%s1 + $0x98] sm:$0xf]
      %v1271 = vld [vmem:[%s1 + $0x9c] sm:$0xf]
      %v1272 = vld [vmem:[%s1 + $0xa0] sm:$0xf]
      %v1273 = vld [vmem:[%s1 + $0xa4] sm:$0xf]
      %v1274 = vld [vmem:[%s1 + $0xa8] sm:$0xf]
      %v1275 = vld [vmem:[%s1 + $0xac] sm:$0xf]
      %v1276 = vld [vmem:[%s1 + $0xb0] sm:$0xf]
      %v1277 = vld [vmem:[%s1 + $0xb4] sm:$0xf]
      %v1278 = vld [vmem:[%s1 + $0xb8] sm:$0xf]
      %v1279 = vld [vmem:[%s1 + $0xbc] sm:$0xf]
      %v1280 = vld [vmem:[%s1 + $0xc0] sm:$0xf]
      %v1281 = vld [vmem:[%s1 + $0xc4] sm:$0xf]
      %v1282 = vld [vmem:[%s1 + $0xc8] sm:$0xf]
      %v1283 = vld [vmem:[%s1 + $0xcc] sm:$0xf]
      %v1284 = vld [vmem:[%s1 + $0xd0] sm:$0xf]
      %v1285 = vld [vmem:[%s1 + $0xd4] sm:$0xf]
      %v1286 = vld [vmem:[%s1 + $0xd8] sm:$0xf]
      %v1287 = vld [vmem:[%s1 + $0xdc] sm:$0xf]
      %v1288 = vld [vmem:[%s1 + $0xe0] sm:$0xf]
      %v1289 = vld [vmem:[%s1 + $0xe4] sm:$0xf]
      %v1290 = vld [vmem:[%s1 + $0xe8] sm:$0xf]
      %v1291 = vld [vmem:[%s1 + $0xec] sm:$0xf]
      %v1292 = vld [vmem:[%s1 + $0xf0] sm:$0xf]
      %v1293 = vld [vmem:[%s1 + $0xf4] sm:$0xf]
      %v1294 = vld [vmem:[%s1 + $0xf8] sm:$0xf]
      %v1295 = vld [vmem:[%s1 + $0xfc] sm:$0xf]
      %v1296 = vld [vmem:[%s1 + $0x100] sm:$0xf]
      %v1297 = vld [vmem:[%s1 + $0x104] sm:$0xf]
      %v1298 = vld [vmem:[%s1 + $0x108] sm:$0xf]
      %v1299 = vld [vmem:[%s1 + $0x10c] sm:$0xf]
      %v1300 = vld [vmem:[%s1 + $0x110] sm:$0xf]
      %v1301 = vld [vmem:[%s1 + $0x114] sm:$0xf]
      %v1302 = vld [vmem:[%s1 + $0x118] sm:$0xf]
      %v1303 = vld [vmem:[%s1 + $0x11c] sm:$0xf]
      %v1304 = vld [vmem:[%s1 + $0x120] sm:$0xf]
      %v1305 = vld [vmem:[%s1 + $0x124] sm:$0xf]
      %v1306 = vld [vmem:[%s1 + $0x128] sm:$0xf]
      %v1307 = vld [vmem:[%s1 + $0x12c] sm:$0xf]
      %v1308 = vld [vmem:[%s1 + $0x130] sm:$0xf]
      %v1309 = vld [vmem:[%s1 + $0x134] sm:$0xf]
      %v1310 = vld [vmem:[%s1 + $0x138] sm:$0xf]
      %v1311 = vld [vmem:[%s1 + $0x13c] sm:$0xf]
      %v1312 = vld [vmem:[%s1 + $0x140] sm:$0xf]
      %v1313 = vld [vmem:[%s1 + $0x144] sm:$0xf]
      %v1314 = vld [vmem:[%s1 + $0x148] sm:$0xf]
      %v1315 = vld [vmem:[%s1 + $0x14c] sm:$0xf]
      %v1316 = vld [vmem:[%s1 + $0x150] sm:$0xf]
      %v1317 = vld [vmem:[%s1 + $0x154] sm:$0xf]
      %v1318 = vld [vmem:[%s1 + $0x158] sm:$0xf]
      %v1319 = vld [vmem:[%s1 + $0x15c] sm:$0xf]
      %v1320 = vld [vmem:[%s1 + $0x160] sm:$0xf]
      %v1321 = vld [vmem:[%s1 + $0x164] sm:$0xf]
      %v1322 = vld [vmem:[%s1 + $0x168] sm:$0xf]
      %v1323 = vld [vmem:[%s1 + $0x16c] sm:$0xf]
      %v1324 = vld [vmem:[%s1 + $0x170] sm:$0xf]
      %v1325 = vld [vmem:[%s1 + $0x174] sm:$0xf]
      %v1326 = vld [vmem:[%s1 + $0x178] sm:$0xf]
      %v1327 = vld [vmem:[%s1 + $0x17c] sm:$0xf]
      %v1328 = vld [vmem:[%s1 + $0x180] sm:$0xf]
      %v1329 = vld [vmem:[%s1 + $0x184] sm:$0xf]
      %v1330 = vld [vmem:[%s1 + $0x188] sm:$0xf]
      %v1331 = vld [vmem:[%s1 + $0x18c] sm:$0xf]
      %v1332 = vld [vmem:[%s1 + $0x190] sm:$0xf]
      %v1333 = vld [vmem:[%s1 + $0x194] sm:$0xf]
      %v1334 = vld [vmem:[%s1 + $0x198] sm:$0xf]
      %v1335 = vld [vmem:[%s1 + $0x19c] sm:$0xf]
      %v1336 = vld [vmem:[%s1 + $0x1a0] sm:$0xf]
      %v1337 = vld [vmem:[%s1 + $0x1a4] sm:$0xf]
      %v1338 = vld [vmem:[%s1 + $0x1a8] sm:$0xf]
      %v1339 = vld [vmem:[%s1 + $0x1ac] sm:$0xf]
      %v1340 = vld [vmem:[%s1 + $0x1b0] sm:$0xf]
      %v1341 = vld [vmem:[%s1 + $0x1b4] sm:$0xf]
      %v1342 = vld [vmem:[%s1 + $0x1b8] sm:$0xf]
      %v1343 = vld [vmem:[%s1 + $0x1bc] sm:$0xf]
      %v1344 = vld [vmem:[%s1 + $0x1c0] sm:$0xf]
      %v1345 = vld [vmem:[%s1 + $0x1c4] sm:$0xf]
      %v1346 = vld [vmem:[%s1 + $0x1c8] sm:$0xf]
      %v1347 = vld [vmem:[%s1 + $0x1cc] sm:$0xf]
      %v1348 = vld [vmem:[%s1 + $0x1d0] sm:$0xf]
      %v1349 = vld [vmem:[%s1 + $0x1d4] sm:$0xf]
      %v1350 = vld [vmem:[%s1 + $0x1d8] sm:$0xf]
      %v1351 = vld [vmem:[%s1 + $0x1dc] sm:$0xf]
      %v1352 = vld [vmem:[%s1 + $0x1e0] sm:$0xf]
      %v1353 = vld [vmem:[%s1 + $0x1e4] sm:$0xf]
      %v1354 = vld [vmem:[%s1 + $0x1e8] sm:$0xf]
      %v1355 = vld [vmem:[%s1 + $0x1ec] sm:$0xf]
      %v1356 = vld [vmem:[%s1 + $0x1f0] sm:$0xf]
      %v1357 = vld [vmem:[%s1 + $0x1f4] sm:$0xf]
      %v1358 = vld [vmem:[%s1 + $0x1f8] sm:$0xf]
      %v1359 = vld [vmem:[%s1 + $0x1fc] sm:$0xf]
      %v1360 = vld [vmem:[%s1 + $0x200] sm:$0xf]
      %v1361 = vld [vmem:[%s1 + $0x204] sm:$0xf]
      %v1362 = vld [vmem:[%s1 + $0x208] sm:$0xf]
      %v1363 = vld [vmem:[%s1 + $0x20c] sm:$0xf]
      %v1364 = vld [vmem:[%s1 + $0x210] sm:$0xf]
      %v1365 = vld [vmem:[%s1 + $0x214] sm:$0xf]
      %v1366 = vld [vmem:[%s1 + $0x218] sm:$0xf]
      %v1367 = vld [vmem:[%s1 + $0x21c] sm:$0xf]
      %v1368 = vld [vmem:[%s1 + $0x220] sm:$0xf]
      %v1369 = vld [vmem:[%s1 + $0x224] sm:$0xf]
      %v1370 = vld [vmem:[%s1 + $0x228] sm:$0xf]
      %v1371 = vld [vmem:[%s1 + $0x22c] sm:$0xf]
      %v1372 = vld [vmem:[%s1 + $0x230] sm:$0xf]
      %v1373 = vld [vmem:[%s1 + $0x234] sm:$0xf]
      %v1374 = vld [vmem:[%s1 + $0x238] sm:$0xf]
      %v1375 = vld [vmem:[%s1 + $0x23c] sm:$0xf]
      %v1520 = vunpack.c.l.b16 %v1232
      %v1521 = vunpack.c.l.b16 %v1233
      %v1522 = vunpack.c.l.b16 %v1234
      %v1523 = vunpack.c.l.b16 %v1235
      %v1524 = vunpack.c.l.b16 %v1236
      %v1525 = vunpack.c.l.b16 %v1237
      %v1526 = vunpack.c.l.b16 %v1238
      %v1527 = vunpack.c.l.b16 %v1239
      %v1528 = vunpack.c.l.b16 %v1240
      %v1529 = vunpack.c.l.b16 %v1241
      %v1530 = vunpack.c.l.b16 %v1242
      %v1531 = vunpack.c.l.b16 %v1243
      %v1532 = vunpack.c.l.b16 %v1244
      %v1533 = vunpack.c.l.b16 %v1245
      %v1534 = vunpack.c.l.b16 %v1246
      %v1535 = vunpack.c.l.b16 %v1247
      %v1536 = vunpack.c.l.b16 %v1248
      %v1537 = vunpack.c.l.b16 %v1249
      %v1538 = vunpack.c.l.b16 %v1250
      %v1539 = vunpack.c.l.b16 %v1251
      %v1540 = vunpack.c.l.b16 %v1252
      %v1541 = vunpack.c.l.b16 %v1253
      %v1542 = vunpack.c.l.b16 %v1254
      %v1543 = vunpack.c.l.b16 %v1255
      %v1544 = vunpack.c.l.b16 %v1256
      %v1545 = vunpack.c.l.b16 %v1257
      %v1546 = vunpack.c.l.b16 %v1258
      %v1547 = vunpack.c.l.b16 %v1259
      %v1548 = vunpack.c.l.b16 %v1260
      %v1549 = vunpack.c.l.b16 %v1261
      %v1550 = vunpack.c.l.b16 %v1262
      %v1551 = vunpack.c.l.b16 %v1263
      %v1552 = vunpack.c.l.b16 %v1264
      %v1553 = vunpack.c.l.b16 %v1265
      %v1554 = vunpack.c.l.b16 %v1266
      %v1555 = vunpack.c.l.b16 %v1267
      %v1556 = vunpack.c.l.b16 %v1268
      %v1557 = vunpack.c.l.b16 %v1269
      %v1558 = vunpack.c.l.b16 %v1270
      %v1559 = vunpack.c.l.b16 %v1271
      %v1560 = vunpack.c.l.b16 %v1272
      %v1561 = vunpack.c.l.b16 %v1273
      %v1562 = vunpack.c.l.b16 %v1274
      %v1563 = vunpack.c.l.b16 %v1275
      %v1564 = vunpack.c.l.b16 %v1276
      %v1565 = vunpack.c.l.b16 %v1277
      %v1566 = vunpack.c.l.b16 %v1278
      %v1567 = vunpack.c.l.b16 %v1279
      %v1568 = vunpack.c.l.b16 %v1280
      %v1569 = vunpack.c.l.b16 %v1281
      %v1570 = vunpack.c.l.b16 %v1282
      %v1571 = vunpack.c.l.b16 %v1283
      %v1572 = vunpack.c.l.b16 %v1284
      %v1573 = vunpack.c.l.b16 %v1285
      %v1574 = vunpack.c.l.b16 %v1286
      %v1575 = vunpack.c.l.b16 %v1287
      %v1576 = vunpack.c.l.b16 %v1288
      %v1577 = vunpack.c.l.b16 %v1289
      %v1578 = vunpack.c.l.b16 %v1290
      %v1579 = vunpack.c.l.b16 %v1291
      %v1580 = vunpack.c.l.b16 %v1292
      %v1581 = vunpack.c.l.b16 %v1293
      %v1582 = vunpack.c.l.b16 %v1294
      %v1583 = vunpack.c.l.b16 %v1295
      %v1584 = vunpack.c.l.b16 %v1296
      %v1585 = vunpack.c.l.b16 %v1297
      %v1586 = vunpack.c.l.b16 %v1298
      %v1587 = vunpack.c.l.b16 %v1299
      %v1588 = vunpack.c.l.b16 %v1300
      %v1589 = vunpack.c.l.b16 %v1301
      %v1590 = vunpack.c.l.b16 %v1302
      %v1591 = vunpack.c.l.b16 %v1303
      %v1592 = vunpack.c.l.b16 %v1304
      %v1593 = vunpack.c.l.b16 %v1305
      %v1594 = vunpack.c.l.b16 %v1306
      %v1595 = vunpack.c.l.b16 %v1307
      %v1596 = vunpack.c.l.b16 %v1308
      %v1597 = vunpack.c.l.b16 %v1309
      %v1598 = vunpack.c.l.b16 %v1310
      %v1599 = vunpack.c.l.b16 %v1311
      %v1600 = vunpack.c.l.b16 %v1312
      %v1601 = vunpack.c.l.b16 %v1313
      %v1602 = vunpack.c.l.b16 %v1314
      %v1603 = vunpack.c.l.b16 %v1315
      %v1604 = vunpack.c.l.b16 %v1316
      %v1605 = vunpack.c.l.b16 %v1317
      %v1606 = vunpack.c.l.b16 %v1318
      %v1607 = vunpack.c.l.b16 %v1319
      %v1608 = vunpack.c.l.b16 %v1320
      %v1609 = vunpack.c.l.b16 %v1321
      %v1610 = vunpack.c.l.b16 %v1322
      %v1611 = vunpack.c.l.b16 %v1323
      %v1612 = vunpack.c.l.b16 %v1324
      %v1613 = vunpack.c.l.b16 %v1325
      %v1614 = vunpack.c.l.b16 %v1326
      %v1615 = vunpack.c.l.b16 %v1327
      %v1616 = vunpack.c.l.b16 %v1328
      %v1617 = vunpack.c.l.b16 %v1329
      %v1618 = vunpack.c.l.b16 %v1330
      %v1619 = vunpack.c.l.b16 %v1331
      %v1620 = vunpack.c.l.b16 %v1332
      %v1621 = vunpack.c.l.b16 %v1333
      %v1622 = vunpack.c.l.b16 %v1334
      %v1623 = vunpack.c.l.b16 %v1335
      %v1624 = vunpack.c.l.b16 %v1336
      %v1625 = vunpack.c.l.b16 %v1337
      %v1626 = vunpack.c.l.b16 %v1338
      %v1627 = vunpack.c.l.b16 %v1339
      %v1628 = vunpack.c.l.b16 %v1340
      %v1629 = vunpack.c.l.b16 %v1341
      %v1630 = vunpack.c.l.b16 %v1342
      %v1631 = vunpack.c.l.b16 %v1343
      %v1632 = vunpack.c.l.b16 %v1344
      %v1633 = vunpack.c.l.b16 %v1345
      %v1634 = vunpack.c.l.b16 %v1346
      %v1635 = vunpack.c.l.b16 %v1347
      %v1636 = vunpack.c.l.b16 %v1348
      %v1637 = vunpack.c.l.b16 %v1349
      %v1638 = vunpack.c.l.b16 %v1350
      %v1639 = vunpack.c.l.b16 %v1351
      %v1640 = vunpack.c.l.b16 %v1352
      %v1641 = vunpack.c.l.b16 %v1353
      %v1642 = vunpack.c.l.b16 %v1354
      %v1643 = vunpack.c.l.b16 %v1355
      %v1644 = vunpack.c.l.b16 %v1356
      %v1645 = vunpack.c.l.b16 %v1357
      %v1646 = vunpack.c.l.b16 %v1358
      %v1647 = vunpack.c.l.b16 %v1359
      %v1648 = vunpack.c.l.b16 %v1360
      %v1649 = vunpack.c.l.b16 %v1361
      %v1650 = vunpack.c.l.b16 %v1362
      %v1651 = vunpack.c.l.b16 %v1363
      %v1652 = vunpack.c.l.b16 %v1364
      %v1653 = vunpack.c.l.b16 %v1365
      %v1654 = vunpack.c.l.b16 %v1366
      %v1655 = vunpack.c.l.b16 %v1367
      %v1656 = vunpack.c.l.b16 %v1368
      %v1657 = vunpack.c.l.b16 %v1369
      %v1658 = vunpack.c.l.b16 %v1370
      %v1659 = vunpack.c.l.b16 %v1371
      %v1660 = vunpack.c.l.b16 %v1372
      %v1661 = vunpack.c.l.b16 %v1373
      %v1662 = vunpack.c.l.b16 %v1374
      %v1663 = vunpack.c.l.b16 %v1375
      %v1664 = vpack.c.b16 %v1521, %v1520
      %v1665 = vpack.c.b16 %v1523, %v1522
      %v1666 = vpack.c.b16 %v1525, %v1524
      %v1667 = vpack.c.b16 %v1527, %v1526
      %v1668 = vpack.c.b16 %v1529, %v1528
      %v1669 = vpack.c.b16 %v1531, %v1530
      %v1670 = vpack.c.b16 %v1533, %v1532
      %v1671 = vpack.c.b16 %v1535, %v1534
      %v1672 = vpack.c.b16 %v1537, %v1536
      %v1673 = vpack.c.b16 %v1539, %v1538
      %v1674 = vpack.c.b16 %v1541, %v1540
      %v1675 = vpack.c.b16 %v1543, %v1542
      %v1676 = vpack.c.b16 %v1545, %v1544
      %v1677 = vpack.c.b16 %v1547, %v1546
      %v1678 = vpack.c.b16 %v1549, %v1548
      %v1679 = vpack.c.b16 %v1551, %v1550
      %v1680 = vpack.c.b16 %v1553, %v1552
      %v1681 = vpack.c.b16 %v1555, %v1554
      %v1682 = vpack.c.b16 %v1557, %v1556
      %v1683 = vpack.c.b16 %v1559, %v1558
      %v1684 = vpack.c.b16 %v1561, %v1560
      %v1685 = vpack.c.b16 %v1563, %v1562
      %v1686 = vpack.c.b16 %v1565, %v1564
      %v1687 = vpack.c.b16 %v1567, %v1566
      %v1688 = vpack.c.b16 %v1569, %v1568
      %v1689 = vpack.c.b16 %v1571, %v1570
      %v1690 = vpack.c.b16 %v1573, %v1572
      %v1691 = vpack.c.b16 %v1575, %v1574
      %v1692 = vpack.c.b16 %v1577, %v1576
      %v1693 = vpack.c.b16 %v1579, %v1578
      %v1694 = vpack.c.b16 %v1581, %v1580
      %v1695 = vpack.c.b16 %v1583, %v1582
      %v1696 = vpack.c.b16 %v1585, %v1584
      %v1697 = vpack.c.b16 %v1587, %v1586
      %v1698 = vpack.c.b16 %v1589, %v1588
      %v1699 = vpack.c.b16 %v1591, %v1590
      %v1700 = vpack.c.b16 %v1593, %v1592
      %v1701 = vpack.c.b16 %v1595, %v1594
      %v1702 = vpack.c.b16 %v1597, %v1596
      %v1703 = vpack.c.b16 %v1599, %v1598
      %v1704 = vpack.c.b16 %v1601, %v1600
      %v1705 = vpack.c.b16 %v1603, %v1602
      %v1706 = vpack.c.b16 %v1605, %v1604
      %v1707 = vpack.c.b16 %v1607, %v1606
      %v1708 = vpack.c.b16 %v1609, %v1608
      %v1709 = vpack.c.b16 %v1611, %v1610
      %v1710 = vpack.c.b16 %v1613, %v1612
      %v1711 = vpack.c.b16 %v1615, %v1614
      %v1712 = vpack.c.b16 %v1617, %v1616
      %v1713 = vpack.c.b16 %v1619, %v1618
      %v1714 = vpack.c.b16 %v1621, %v1620
      %v1715 = vpack.c.b16 %v1623, %v1622
      %v1716 = vpack.c.b16 %v1625, %v1624
      %v1717 = vpack.c.b16 %v1627, %v1626
      %v1718 = vpack.c.b16 %v1629, %v1628
      %v1719 = vpack.c.b16 %v1631, %v1630
      %v1720 = vpack.c.b16 %v1633, %v1632
      %v1721 = vpack.c.b16 %v1635, %v1634
      %v1722 = vpack.c.b16 %v1637, %v1636
      %v1723 = vpack.c.b16 %v1639, %v1638
      %v1724 = vpack.c.b16 %v1641, %v1640
      %v1725 = vpack.c.b16 %v1643, %v1642
      %v1726 = vpack.c.b16 %v1645, %v1644
      %v1727 = vpack.c.b16 %v1647, %v1646
      %v1728 = vpack.c.b16 %v1649, %v1648
      %v1729 = vpack.c.b16 %v1651, %v1650
      %v1730 = vpack.c.b16 %v1653, %v1652
      %v1731 = vpack.c.b16 %v1655, %v1654
      %v1732 = vpack.c.b16 %v1657, %v1656
      %v1733 = vpack.c.b16 %v1659, %v1658
      %v1734 = vpack.c.b16 %v1661, %v1660
      %v1735 = vpack.c.b16 %v1663, %v1662
      %1808 = vmatpush.bf16.msra.mxu0 %v1671
      %1809 = vmatpush.bf16.msra.mxu0 %v1670
      %1810 = vmatpush.bf16.msra.mxu0 %v1669
      %1811 = vmatpush.bf16.msra.mxu0 %v1668
      %1812 = vmatpush.bf16.msra.mxu0 %v1667
      %1813 = vmatpush.bf16.msra.mxu0 %v1666
      %1814 = vmatpush.bf16.msra.mxu0 %v1665
      %1815 = vmatpush.bf16.msra.mxu0 %v1664
      %1816 = vmatmul.bf16.gmra.mxu0 %v1048
      %v1817 = vpop.f32.mrf.mxu0
      %v1818 = vadd.f32 0.0, %v1817
      %v1819 = vpop.f32.mrf.mxu0
      %v1820 = vadd.f32 0.0, %v1819
      %1821 = vmatmul.bf16.gmra.mxu0 %v1049
      %v1822 = vpop.f32.mrf.mxu0
      %v1823 = vadd.f32 0.0, %v1822
      %v1824 = vpop.f32.mrf.mxu0
      %v1825 = vadd.f32 0.0, %v1824
      %1826 = vmatmul.bf16.gmra.mxu0 %v1050
      %v1827 = vpop.f32.mrf.mxu0
      %v1828 = vadd.f32 0.0, %v1827
      %v1829 = vpop.f32.mrf.mxu0
      %v1830 = vadd.f32 0.0, %v1829
      %1831 = vmatmul.bf16.gmra.mxu0 %v1051
      %v1832 = vpop.f32.mrf.mxu0
      %v1833 = vadd.f32 0.0, %v1832
      %v1834 = vpop.f32.mrf.mxu0
      %v1835 = vadd.f32 0.0, %v1834
      %1836 = vmatmul.bf16.gmra.mxu0 %v1052
      %v1837 = vpop.f32.mrf.mxu0
      %v1838 = vadd.f32 0.0, %v1837
      %v1839 = vpop.f32.mrf.mxu0
      %v1840 = vadd.f32 0.0, %v1839
      %1841 = vmatmul.bf16.gmra.mxu0 %v1053
      %v1842 = vpop.f32.mrf.mxu0
      %v1843 = vadd.f32 0.0, %v1842
      %v1844 = vpop.f32.mrf.mxu0
      %v1845 = vadd.f32 0.0, %v1844
      %1846 = vmatmul.bf16.gmra.mxu0 %v1054
      %v1847 = vpop.f32.mrf.mxu0
      %v1848 = vadd.f32 0.0, %v1847
      %v1849 = vpop.f32.mrf.mxu0
      %v1850 = vadd.f32 0.0, %v1849
      %1851 = vmatmul.bf16.gmra.mxu0 %v1055
      %v1852 = vpop.f32.mrf.mxu0
      %v1853 = vadd.f32 0.0, %v1852
      %v1854 = vpop.f32.mrf.mxu0
      %v1855 = vadd.f32 0.0, %v1854
      %1856 = vmatmul.bf16.gmra.mxu0 %v1056
      %v1857 = vpop.f32.mrf.mxu0
      %v1858 = vadd.f32 0.0, %v1857
      %v1859 = vpop.f32.mrf.mxu0
      %v1860 = vadd.f32 0.0, %v1859
      %1861 = vmatmul.bf16.gmra.mxu0 %v1057
      %v1862 = vpop.f32.mrf.mxu0
      %v1863 = vadd.f32 0.0, %v1862
      %v1864 = vpop.f32.mrf.mxu0
      %v1865 = vadd.f32 0.0, %v1864
      %1866 = vmatmul.bf16.gmra.mxu0 %v1058
      %v1867 = vpop.f32.mrf.mxu0
      %v1868 = vadd.f32 0.0, %v1867
      %v1869 = vpop.f32.mrf.mxu0
      %v1870 = vadd.f32 0.0, %v1869
      %1871 = vmatmul.bf16.gmra.mxu0 %v1059
      %v1872 = vpop.f32.mrf.mxu0
      %v1873 = vadd.f32 0.0, %v1872
      %v1874 = vpop.f32.mrf.mxu0
      %v1875 = vadd.f32 0.0, %v1874
      %1876 = vmatmul.bf16.gmra.mxu0 %v1060
      %v1877 = vpop.f32.mrf.mxu0
      %v1878 = vadd.f32 0.0, %v1877
      %v1879 = vpop.f32.mrf.mxu0
      %v1880 = vadd.f32 0.0, %v1879
      %1881 = vmatmul.bf16.gmra.mxu0 %v1061
      %v1882 = vpop.f32.mrf.mxu0
      %v1883 = vadd.f32 0.0, %v1882
      %v1884 = vpop.f32.mrf.mxu0
      %v1885 = vadd.f32 0.0, %v1884
      %1886 = vmatmul.bf16.gmra.mxu0 %v1062
      %v1887 = vpop.f32.mrf.mxu0
      %v1888 = vadd.f32 0.0, %v1887
      %v1889 = vpop.f32.mrf.mxu0
      %v1890 = vadd.f32 0.0, %v1889
      %1891 = vmatmul.bf16.gmra.mxu0 %v1063
      %v1892 = vpop.f32.mrf.mxu0
      %v1893 = vadd.f32 0.0, %v1892
      %v1894 = vpop.f32.mrf.mxu0
      %v1895 = vadd.f32 0.0, %v1894
      %1896 = vdwg.mxu0
      %1897 = vmatpush.bf16.msra.mxu0 %v1679
      %1898 = vmatpush.bf16.msra.mxu0 %v1678
      %1899 = vmatpush.bf16.msra.mxu0 %v1677
      %1900 = vmatpush.bf16.msra.mxu0 %v1676
      %1901 = vmatpush.bf16.msra.mxu0 %v1675
      %1902 = vmatpush.bf16.msra.mxu0 %v1674
      %1903 = vmatpush.bf16.msra.mxu0 %v1673
      %1904 = vmatpush.bf16.msra.mxu0 %v1672
      %1905 = vmatmul.bf16.gmra.mxu0 %v1112
      %v1906 = vpop.f32.mrf.mxu0
      %v1907 = vadd.f32 %v1818, %v1906
      %v1908 = vpop.f32.mrf.mxu0
      %v1909 = vadd.f32 %v1820, %v1908
      %1910 = vmatmul.bf16.gmra.mxu0 %v1113
      %v1911 = vpop.f32.mrf.mxu0
      %v1912 = vadd.f32 %v1823, %v1911
      %v1913 = vpop.f32.mrf.mxu0
      %v1914 = vadd.f32 %v1825, %v1913
      %1915 = vmatmul.bf16.gmra.mxu0 %v1114
      %v1916 = vpop.f32.mrf.mxu0
      %v1917 = vadd.f32 %v1828, %v1916
      %v1918 = vpop.f32.mrf.mxu0
      %v1919 = vadd.f32 %v1830, %v1918
      %1920 = vmatmul.bf16.gmra.mxu0 %v1115
      %v1921 = vpop.f32.mrf.mxu0
      %v1922 = vadd.f32 %v1833, %v1921
      %v1923 = vpop.f32.mrf.mxu0
      %v1924 = vadd.f32 %v1835, %v1923
      %1925 = vmatmul.bf16.gmra.mxu0 %v1116
      %v1926 = vpop.f32.mrf.mxu0
      %v1927 = vadd.f32 %v1838, %v1926
      %v1928 = vpop.f32.mrf.mxu0
      %v1929 = vadd.f32 %v1840, %v1928
      %1930 = vmatmul.bf16.gmra.mxu0 %v1117
      %v1931 = vpop.f32.mrf.mxu0
      %v1932 = vadd.f32 %v1843, %v1931
      %v1933 = vpop.f32.mrf.mxu0
      %v1934 = vadd.f32 %v1845, %v1933
      %1935 = vmatmul.bf16.gmra.mxu0 %v1118
      %v1936 = vpop.f32.mrf.mxu0
      %v1937 = vadd.f32 %v1848, %v1936
      %v1938 = vpop.f32.mrf.mxu0
      %v1939 = vadd.f32 %v1850, %v1938
      %1940 = vmatmul.bf16.gmra.mxu0 %v1119
      %v1941 = vpop.f32.mrf.mxu0
      %v1942 = vadd.f32 %v1853, %v1941
      %v1943 = vpop.f32.mrf.mxu0
      %v1944 = vadd.f32 %v1855, %v1943
      %1945 = vmatmul.bf16.gmra.mxu0 %v1120
      %v1946 = vpop.f32.mrf.mxu0
      %v1947 = vadd.f32 %v1858, %v1946
      %v1948 = vpop.f32.mrf.mxu0
      %v1949 = vadd.f32 %v1860, %v1948
      %1950 = vmatmul.bf16.gmra.mxu0 %v1121
      %v1951 = vpop.f32.mrf.mxu0
      %v1952 = vadd.f32 %v1863, %v1951
      %v1953 = vpop.f32.mrf.mxu0
      %v1954 = vadd.f32 %v1865, %v1953
      %1955 = vmatmul.bf16.gmra.mxu0 %v1122
      %v1956 = vpop.f32.mrf.mxu0
      %v1957 = vadd.f32 %v1868, %v1956
      %v1958 = vpop.f32.mrf.mxu0
      %v1959 = vadd.f32 %v1870, %v1958
      %1960 = vmatmul.bf16.gmra.mxu0 %v1123
      %v1961 = vpop.f32.mrf.mxu0
      %v1962 = vadd.f32 %v1873, %v1961
      %v1963 = vpop.f32.mrf.mxu0
      %v1964 = vadd.f32 %v1875, %v1963
      %1965 = vmatmul.bf16.gmra.mxu0 %v1124
      %v1966 = vpop.f32.mrf.mxu0
      %v1967 = vadd.f32 %v1878, %v1966
      %v1968 = vpop.f32.mrf.mxu0
      %v1969 = vadd.f32 %v1880, %v1968
      %1970 = vmatmul.bf16.gmra.mxu0 %v1125
      %v1971 = vpop.f32.mrf.mxu0
      %v1972 = vadd.f32 %v1883, %v1971
      %v1973 = vpop.f32.mrf.mxu0
      %v1974 = vadd.f32 %v1885, %v1973
      %1975 = vmatmul.bf16.gmra.mxu0 %v1126
      %v1976 = vpop.f32.mrf.mxu0
      %v1977 = vadd.f32 %v1888, %v1976
      %v1978 = vpop.f32.mrf.mxu0
      %v1979 = vadd.f32 %v1890, %v1978
      %1980 = vmatmul.bf16.gmra.mxu0 %v1127
      %v1981 = vpop.f32.mrf.mxu0
      %v1982 = vadd.f32 %v1893, %v1981
      %v1983 = vpop.f32.mrf.mxu0
      %v1984 = vadd.f32 %v1895, %v1983
      %1985 = vdwg.mxu0
      %1986 = vmatpush.bf16.msra.mxu0 %v1687
      %1987 = vmatpush.bf16.msra.mxu0 %v1686
      %1988 = vmatpush.bf16.msra.mxu0 %v1685
      %1989 = vmatpush.bf16.msra.mxu0 %v1684
      %1990 = vmatpush.bf16.msra.mxu0 %v1683
      %1991 = vmatpush.bf16.msra.mxu0 %v1682
      %1992 = vmatpush.bf16.msra.mxu0 %v1681
      %1993 = vmatpush.bf16.msra.mxu0 %v1680
      %1994 = vmatmul.bf16.gmra.mxu0 %v1176
      %v1995 = vpop.f32.mrf.mxu0
      %v1996 = vadd.f32 %v1907, %v1995
      %v1997 = vpop.f32.mrf.mxu0
      %v1998 = vadd.f32 %v1909, %v1997
      %1999 = vmatmul.bf16.gmra.mxu0 %v1177
      %v2000 = vpop.f32.mrf.mxu0
      %v2001 = vadd.f32 %v1912, %v2000
      %v2002 = vpop.f32.mrf.mxu0
      %v2003 = vadd.f32 %v1914, %v2002
      %2004 = vmatmul.bf16.gmra.mxu0 %v1178
      %v2005 = vpop.f32.mrf.mxu0
      %v2006 = vadd.f32 %v1917, %v2005
      %v2007 = vpop.f32.mrf.mxu0
      %v2008 = vadd.f32 %v1919, %v2007
      %2009 = vmatmul.bf16.gmra.mxu0 %v1179
      %v2010 = vpop.f32.mrf.mxu0
      %v2011 = vadd.f32 %v1922, %v2010
      %v2012 = vpop.f32.mrf.mxu0
      %v2013 = vadd.f32 %v1924, %v2012
      %2014 = vmatmul.bf16.gmra.mxu0 %v1180
      %v2015 = vpop.f32.mrf.mxu0
      %v2016 = vadd.f32 %v1927, %v2015
      %v2017 = vpop.f32.mrf.mxu0
      %v2018 = vadd.f32 %v1929, %v2017
      %2019 = vmatmul.bf16.gmra.mxu0 %v1181
      %v2020 = vpop.f32.mrf.mxu0
      %v2021 = vadd.f32 %v1932, %v2020
      %v2022 = vpop.f32.mrf.mxu0
      %v2023 = vadd.f32 %v1934, %v2022
      %2024 = vmatmul.bf16.gmra.mxu0 %v1182
      %v2025 = vpop.f32.mrf.mxu0
      %v2026 = vadd.f32 %v1937, %v2025
      %v2027 = vpop.f32.mrf.mxu0
      %v2028 = vadd.f32 %v1939, %v2027
      %2029 = vmatmul.bf16.gmra.mxu0 %v1183
      %v2030 = vpop.f32.mrf.mxu0
      %v2031 = vadd.f32 %v1942, %v2030
      %v2032 = vpop.f32.mrf.mxu0
      %v2033 = vadd.f32 %v1944, %v2032
      %2034 = vmatmul.bf16.gmra.mxu0 %v1184
      %v2035 = vpop.f32.mrf.mxu0
      %v2036 = vadd.f32 %v1947, %v2035
      %v2037 = vpop.f32.mrf.mxu0
      %v2038 = vadd.f32 %v1949, %v2037
      %2039 = vmatmul.bf16.gmra.mxu0 %v1185
      %v2040 = vpop.f32.mrf.mxu0
      %v2041 = vadd.f32 %v1952, %v2040
      %v2042 = vpop.f32.mrf.mxu0
      %v2043 = vadd.f32 %v1954, %v2042
      %2044 = vmatmul.bf16.gmra.mxu0 %v1186
      %v2045 = vpop.f32.mrf.mxu0
      %v2046 = vadd.f32 %v1957, %v2045
      %v2047 = vpop.f32.mrf.mxu0
      %v2048 = vadd.f32 %v1959, %v2047
      %2049 = vmatmul.bf16.gmra.mxu0 %v1187
      %v2050 = vpop.f32.mrf.mxu0
      %v2051 = vadd.f32 %v1962, %v2050
      %v2052 = vpop.f32.mrf.mxu0
      %v2053 = vadd.f32 %v1964, %v2052
      %2054 = vmatmul.bf16.gmra.mxu0 %v1188
      %v2055 = vpop.f32.mrf.mxu0
      %v2056 = vadd.f32 %v1967, %v2055
      %v2057 = vpop.f32.mrf.mxu0
      %v2058 = vadd.f32 %v1969, %v2057
      %2059 = vmatmul.bf16.gmra.mxu0 %v1189
      %v2060 = vpop.f32.mrf.mxu0
      %v2061 = vadd.f32 %v1972, %v2060
      %v2062 = vpop.f32.mrf.mxu0
      %v2063 = vadd.f32 %v1974, %v2062
      %2064 = vmatmul.bf16.gmra.mxu0 %v1190
      %v2065 = vpop.f32.mrf.mxu0
      %v2066 = vadd.f32 %v1977, %v2065
      %v2067 = vpop.f32.mrf.mxu0
      %v2068 = vadd.f32 %v1979, %v2067
      %2069 = vmatmul.bf16.gmra.mxu0 %v1191
      %v2070 = vpop.f32.mrf.mxu0
      %v2071 = vadd.f32 %v1982, %v2070
      %v2072 = vpop.f32.mrf.mxu0
      %v2073 = vadd.f32 %v1984, %v2072
      %2074 = vdwg.mxu0
      %2075 = vmatpush.bf16.msra.mxu0 %v1695
      %2076 = vmatpush.bf16.msra.mxu0 %v1694
      %2077 = vmatpush.bf16.msra.mxu0 %v1693
      %2078 = vmatpush.bf16.msra.mxu0 %v1692
      %2079 = vmatpush.bf16.msra.mxu0 %v1691
      %2080 = vmatpush.bf16.msra.mxu0 %v1690
      %2081 = vmatpush.bf16.msra.mxu0 %v1689
      %2082 = vmatpush.bf16.msra.mxu0 %v1688
      %2083 = vmatmul.bf16.gmra.mxu0 %v1049
      %v2084 = vpop.f32.mrf.mxu0
      %v2085 = vadd.f32 %v1996, %v2084
      %v2086 = vpop.f32.mrf.mxu0
      %v2087 = vadd.f32 %v1998, %v2086
      %2088 = vmatmul.bf16.gmra.mxu0 %v1050
      %v2089 = vpop.f32.mrf.mxu0
      %v2090 = vadd.f32 %v2001, %v2089
      %v2091 = vpop.f32.mrf.mxu0
      %v2092 = vadd.f32 %v2003, %v2091
      %2093 = vmatmul.bf16.gmra.mxu0 %v1051
      %v2094 = vpop.f32.mrf.mxu0
      %v2095 = vadd.f32 %v2006, %v2094
      %v2096 = vpop.f32.mrf.mxu0
      %v2097 = vadd.f32 %v2008, %v2096
      %2098 = vmatmul.bf16.gmra.mxu0 %v1052
      %v2099 = vpop.f32.mrf.mxu0
      %v2100 = vadd.f32 %v2011, %v2099
      %v2101 = vpop.f32.mrf.mxu0
      %v2102 = vadd.f32 %v2013, %v2101
      %2103 = vmatmul.bf16.gmra.mxu0 %v1053
      %v2104 = vpop.f32.mrf.mxu0
      %v2105 = vadd.f32 %v2016, %v2104
      %v2106 = vpop.f32.mrf.mxu0
      %v2107 = vadd.f32 %v2018, %v2106
      %2108 = vmatmul.bf16.gmra.mxu0 %v1054
      %v2109 = vpop.f32.mrf.mxu0
      %v2110 = vadd.f32 %v2021, %v2109
      %v2111 = vpop.f32.mrf.mxu0
      %v2112 = vadd.f32 %v2023, %v2111
      %2113 = vmatmul.bf16.gmra.mxu0 %v1055
      %v2114 = vpop.f32.mrf.mxu0
      %v2115 = vadd.f32 %v2026, %v2114
      %v2116 = vpop.f32.mrf.mxu0
      %v2117 = vadd.f32 %v2028, %v2116
      %2118 = vmatmul.bf16.gmra.mxu0 %v1056
      %v2119 = vpop.f32.mrf.mxu0
      %v2120 = vadd.f32 %v2031, %v2119
      %v2121 = vpop.f32.mrf.mxu0
      %v2122 = vadd.f32 %v2033, %v2121
      %2123 = vmatmul.bf16.gmra.mxu0 %v1057
      %v2124 = vpop.f32.mrf.mxu0
      %v2125 = vadd.f32 %v2036, %v2124
      %v2126 = vpop.f32.mrf.mxu0
      %v2127 = vadd.f32 %v2038, %v2126
      %2128 = vmatmul.bf16.gmra.mxu0 %v1058
      %v2129 = vpop.f32.mrf.mxu0
      %v2130 = vadd.f32 %v2041, %v2129
      %v2131 = vpop.f32.mrf.mxu0
      %v2132 = vadd.f32 %v2043, %v2131
      %2133 = vmatmul.bf16.gmra.mxu0 %v1059
      %v2134 = vpop.f32.mrf.mxu0
      %v2135 = vadd.f32 %v2046, %v2134
      %v2136 = vpop.f32.mrf.mxu0
      %v2137 = vadd.f32 %v2048, %v2136
      %2138 = vmatmul.bf16.gmra.mxu0 %v1060
      %v2139 = vpop.f32.mrf.mxu0
      %v2140 = vadd.f32 %v2051, %v2139
      %v2141 = vpop.f32.mrf.mxu0
      %v2142 = vadd.f32 %v2053, %v2141
      %2143 = vmatmul.bf16.gmra.mxu0 %v1061
      %v2144 = vpop.f32.mrf.mxu0
      %v2145 = vadd.f32 %v2056, %v2144
      %v2146 = vpop.f32.mrf.mxu0
      %v2147 = vadd.f32 %v2058, %v2146
      %2148 = vmatmul.bf16.gmra.mxu0 %v1062
      %v2149 = vpop.f32.mrf.mxu0
      %v2150 = vadd.f32 %v2061, %v2149
      %v2151 = vpop.f32.mrf.mxu0
      %v2152 = vadd.f32 %v2063, %v2151
      %2153 = vmatmul.bf16.gmra.mxu0 %v1063
      %v2154 = vpop.f32.mrf.mxu0
      %v2155 = vadd.f32 %v2066, %v2154
      %v2156 = vpop.f32.mrf.mxu0
      %v2157 = vadd.f32 %v2068, %v2156
      %2158 = vmatmul.bf16.gmra.mxu0 %v1210
      %v2159 = vpop.f32.mrf.mxu0
      %v2160 = vadd.f32 %v2071, %v2159
      %v2161 = vpop.f32.mrf.mxu0
      %v2162 = vadd.f32 %v2073, %v2161
      %2163 = vdwg.mxu0
      %2164 = vmatpush.bf16.msra.mxu0 %v1703
      %2165 = vmatpush.bf16.msra.mxu0 %v1702
      %2166 = vmatpush.bf16.msra.mxu0 %v1701
      %2167 = vmatpush.bf16.msra.mxu0 %v1700
      %2168 = vmatpush.bf16.msra.mxu0 %v1699
      %2169 = vmatpush.bf16.msra.mxu0 %v1698
      %2170 = vmatpush.bf16.msra.mxu0 %v1697
      %2171 = vmatpush.bf16.msra.mxu0 %v1696
      %2172 = vmatmul.bf16.gmra.mxu0 %v1113
      %v2173 = vpop.f32.mrf.mxu0
      %v2174 = vadd.f32 %v2085, %v2173
      %v2175 = vpop.f32.mrf.mxu0
      %v2176 = vadd.f32 %v2087, %v2175
      %2177 = vmatmul.bf16.gmra.mxu0 %v1114
      %v2178 = vpop.f32.mrf.mxu0
      %v2179 = vadd.f32 %v2090, %v2178
      %v2180 = vpop.f32.mrf.mxu0
      %v2181 = vadd.f32 %v2092, %v2180
      %2182 = vmatmul.bf16.gmra.mxu0 %v1115
      %v2183 = vpop.f32.mrf.mxu0
      %v2184 = vadd.f32 %v2095, %v2183
      %v2185 = vpop.f32.mrf.mxu0
      %v2186 = vadd.f32 %v2097, %v2185
      %2187 = vmatmul.bf16.gmra.mxu0 %v1116
      %v2188 = vpop.f32.mrf.mxu0
      %v2189 = vadd.f32 %v2100, %v2188
      %v2190 = vpop.f32.mrf.mxu0
      %v2191 = vadd.f32 %v2102, %v2190
      %2192 = vmatmul.bf16.gmra.mxu0 %v1117
      %v2193 = vpop.f32.mrf.mxu0
      %v2194 = vadd.f32 %v2105, %v2193
      %v2195 = vpop.f32.mrf.mxu0
      %v2196 = vadd.f32 %v2107, %v2195
      %2197 = vmatmul.bf16.gmra.mxu0 %v1118
      %v2198 = vpop.f32.mrf.mxu0
      %v2199 = vadd.f32 %v2110, %v2198
      %v2200 = vpop.f32.mrf.mxu0
      %v2201 = vadd.f32 %v2112, %v2200
      %2202 = vmatmul.bf16.gmra.mxu0 %v1119
      %v2203 = vpop.f32.mrf.mxu0
      %v2204 = vadd.f32 %v2115, %v2203
      %v2205 = vpop.f32.mrf.mxu0
      %v2206 = vadd.f32 %v2117, %v2205
      %2207 = vmatmul.bf16.gmra.mxu0 %v1120
      %v2208 = vpop.f32.mrf.mxu0
      %v2209 = vadd.f32 %v2120, %v2208
      %v2210 = vpop.f32.mrf.mxu0
      %v2211 = vadd.f32 %v2122, %v2210
      %2212 = vmatmul.bf16.gmra.mxu0 %v1121
      %v2213 = vpop.f32.mrf.mxu0
      %v2214 = vadd.f32 %v2125, %v2213
      %v2215 = vpop.f32.mrf.mxu0
      %v2216 = vadd.f32 %v2127, %v2215
      %2217 = vmatmul.bf16.gmra.mxu0 %v1122
      %v2218 = vpop.f32.mrf.mxu0
      %v2219 = vadd.f32 %v2130, %v2218
      %v2220 = vpop.f32.mrf.mxu0
      %v2221 = vadd.f32 %v2132, %v2220
      %2222 = vmatmul.bf16.gmra.mxu0 %v1123
      %v2223 = vpop.f32.mrf.mxu0
      %v2224 = vadd.f32 %v2135, %v2223
      %v2225 = vpop.f32.mrf.mxu0
      %v2226 = vadd.f32 %v2137, %v2225
      %2227 = vmatmul.bf16.gmra.mxu0 %v1124
      %v2228 = vpop.f32.mrf.mxu0
      %v2229 = vadd.f32 %v2140, %v2228
      %v2230 = vpop.f32.mrf.mxu0
      %v2231 = vadd.f32 %v2142, %v2230
      %2232 = vmatmul.bf16.gmra.mxu0 %v1125
      %v2233 = vpop.f32.mrf.mxu0
      %v2234 = vadd.f32 %v2145, %v2233
      %v2235 = vpop.f32.mrf.mxu0
      %v2236 = vadd.f32 %v2147, %v2235
      %2237 = vmatmul.bf16.gmra.mxu0 %v1126
      %v2238 = vpop.f32.mrf.mxu0
      %v2239 = vadd.f32 %v2150, %v2238
      %v2240 = vpop.f32.mrf.mxu0
      %v2241 = vadd.f32 %v2152, %v2240
      %2242 = vmatmul.bf16.gmra.mxu0 %v1127
      %v2243 = vpop.f32.mrf.mxu0
      %v2244 = vadd.f32 %v2155, %v2243
      %v2245 = vpop.f32.mrf.mxu0
      %v2246 = vadd.f32 %v2157, %v2245
      %2247 = vmatmul.bf16.gmra.mxu0 %v1214
      %v2248 = vpop.f32.mrf.mxu0
      %v2249 = vadd.f32 %v2160, %v2248
      %v2250 = vpop.f32.mrf.mxu0
      %v2251 = vadd.f32 %v2162, %v2250
      %2252 = vdwg.mxu0
      %2253 = vmatpush.bf16.msra.mxu0 %v1711
      %2254 = vmatpush.bf16.msra.mxu0 %v1710
      %2255 = vmatpush.bf16.msra.mxu0 %v1709
      %2256 = vmatpush.bf16.msra.mxu0 %v1708
      %2257 = vmatpush.bf16.msra.mxu0 %v1707
      %2258 = vmatpush.bf16.msra.mxu0 %v1706
      %2259 = vmatpush.bf16.msra.mxu0 %v1705
      %2260 = vmatpush.bf16.msra.mxu0 %v1704
      %2261 = vmatmul.bf16.gmra.mxu0 %v1177
      %v2262 = vpop.f32.mrf.mxu0
      %v2263 = vadd.f32 %v2174, %v2262
      %v2264 = vpop.f32.mrf.mxu0
      %v2265 = vadd.f32 %v2176, %v2264
      %2266 = vmatmul.bf16.gmra.mxu0 %v1178
      %v2267 = vpop.f32.mrf.mxu0
      %v2268 = vadd.f32 %v2179, %v2267
      %v2269 = vpop.f32.mrf.mxu0
      %v2270 = vadd.f32 %v2181, %v2269
      %2271 = vmatmul.bf16.gmra.mxu0 %v1179
      %v2272 = vpop.f32.mrf.mxu0
      %v2273 = vadd.f32 %v2184, %v2272
      %v2274 = vpop.f32.mrf.mxu0
      %v2275 = vadd.f32 %v2186, %v2274
      %2276 = vmatmul.bf16.gmra.mxu0 %v1180
      %v2277 = vpop.f32.mrf.mxu0
      %v2278 = vadd.f32 %v2189, %v2277
      %v2279 = vpop.f32.mrf.mxu0
      %v2280 = vadd.f32 %v2191, %v2279
      %2281 = vmatmul.bf16.gmra.mxu0 %v1181
      %v2282 = vpop.f32.mrf.mxu0
      %v2283 = vadd.f32 %v2194, %v2282
      %v2284 = vpop.f32.mrf.mxu0
      %v2285 = vadd.f32 %v2196, %v2284
      %2286 = vmatmul.bf16.gmra.mxu0 %v1182
      %v2287 = vpop.f32.mrf.mxu0
      %v2288 = vadd.f32 %v2199, %v2287
      %v2289 = vpop.f32.mrf.mxu0
      %v2290 = vadd.f32 %v2201, %v2289
      %2291 = vmatmul.bf16.gmra.mxu0 %v1183
      %v2292 = vpop.f32.mrf.mxu0
      %v2293 = vadd.f32 %v2204, %v2292
      %v2294 = vpop.f32.mrf.mxu0
      %v2295 = vadd.f32 %v2206, %v2294
      %2296 = vmatmul.bf16.gmra.mxu0 %v1184
      %v2297 = vpop.f32.mrf.mxu0
      %v2298 = vadd.f32 %v2209, %v2297
      %v2299 = vpop.f32.mrf.mxu0
      %v2300 = vadd.f32 %v2211, %v2299
      %2301 = vmatmul.bf16.gmra.mxu0 %v1185
      %v2302 = vpop.f32.mrf.mxu0
      %v2303 = vadd.f32 %v2214, %v2302
      %v2304 = vpop.f32.mrf.mxu0
      %v2305 = vadd.f32 %v2216, %v2304
      %2306 = vmatmul.bf16.gmra.mxu0 %v1186
      %v2307 = vpop.f32.mrf.mxu0
      %v2308 = vadd.f32 %v2219, %v2307
      %v2309 = vpop.f32.mrf.mxu0
      %v2310 = vadd.f32 %v2221, %v2309
      %2311 = vmatmul.bf16.gmra.mxu0 %v1187
      %v2312 = vpop.f32.mrf.mxu0
      %v2313 = vadd.f32 %v2224, %v2312
      %v2314 = vpop.f32.mrf.mxu0
      %v2315 = vadd.f32 %v2226, %v2314
      %2316 = vmatmul.bf16.gmra.mxu0 %v1188
      %v2317 = vpop.f32.mrf.mxu0
      %v2318 = vadd.f32 %v2229, %v2317
      %v2319 = vpop.f32.mrf.mxu0
      %v2320 = vadd.f32 %v2231, %v2319
      %2321 = vmatmul.bf16.gmra.mxu0 %v1189
      %v2322 = vpop.f32.mrf.mxu0
      %v2323 = vadd.f32 %v2234, %v2322
      %v2324 = vpop.f32.mrf.mxu0
      %v2325 = vadd.f32 %v2236, %v2324
      %2326 = vmatmul.bf16.gmra.mxu0 %v1190
      %v2327 = vpop.f32.mrf.mxu0
      %v2328 = vadd.f32 %v2239, %v2327
      %v2329 = vpop.f32.mrf.mxu0
      %v2330 = vadd.f32 %v2241, %v2329
      %2331 = vmatmul.bf16.gmra.mxu0 %v1191
      %v2332 = vpop.f32.mrf.mxu0
      %v2333 = vadd.f32 %v2244, %v2332
      %v2334 = vpop.f32.mrf.mxu0
      %v2335 = vadd.f32 %v2246, %v2334
      %2336 = vmatmul.bf16.gmra.mxu0 %v1218
      %v2337 = vpop.f32.mrf.mxu0
      %v2338 = vadd.f32 %v2249, %v2337
      %v2339 = vpop.f32.mrf.mxu0
      %v2340 = vadd.f32 %v2251, %v2339
      %2341 = vdwg.mxu0
      %2342 = vmatpush.bf16.msra.mxu0 %v1719
      %2343 = vmatpush.bf16.msra.mxu0 %v1718
      %2344 = vmatpush.bf16.msra.mxu0 %v1717
      %2345 = vmatpush.bf16.msra.mxu0 %v1716
      %2346 = vmatpush.bf16.msra.mxu0 %v1715
      %2347 = vmatpush.bf16.msra.mxu0 %v1714
      %2348 = vmatpush.bf16.msra.mxu0 %v1713
      %2349 = vmatpush.bf16.msra.mxu0 %v1712
      %2350 = vmatmul.bf16.gmra.mxu0 %v1050
      %v2351 = vpop.f32.mrf.mxu0
      %v2352 = vadd.f32 %v2263, %v2351
      %v2353 = vpop.f32.mrf.mxu0
      %v2354 = vadd.f32 %v2265, %v2353
      %2355 = vmatmul.bf16.gmra.mxu0 %v1051
      %v2356 = vpop.f32.mrf.mxu0
      %v2357 = vadd.f32 %v2268, %v2356
      %v2358 = vpop.f32.mrf.mxu0
      %v2359 = vadd.f32 %v2270, %v2358
      %2360 = vmatmul.bf16.gmra.mxu0 %v1052
      %v2361 = vpop.f32.mrf.mxu0
      %v2362 = vadd.f32 %v2273, %v2361
      %v2363 = vpop.f32.mrf.mxu0
      %v2364 = vadd.f32 %v2275, %v2363
      %2365 = vmatmul.bf16.gmra.mxu0 %v1053
      %v2366 = vpop.f32.mrf.mxu0
      %v2367 = vadd.f32 %v2278, %v2366
      %v2368 = vpop.f32.mrf.mxu0
      %v2369 = vadd.f32 %v2280, %v2368
      %2370 = vmatmul.bf16.gmra.mxu0 %v1054
      %v2371 = vpop.f32.mrf.mxu0
      %v2372 = vadd.f32 %v2283, %v2371
      %v2373 = vpop.f32.mrf.mxu0
      %v2374 = vadd.f32 %v2285, %v2373
      %2375 = vmatmul.bf16.gmra.mxu0 %v1055
      %v2376 = vpop.f32.mrf.mxu0
      %v2377 = vadd.f32 %v2288, %v2376
      %v2378 = vpop.f32.mrf.mxu0
      %v2379 = vadd.f32 %v2290, %v2378
      %2380 = vmatmul.bf16.gmra.mxu0 %v1056
      %v2381 = vpop.f32.mrf.mxu0
      %v2382 = vadd.f32 %v2293, %v2381
      %v2383 = vpop.f32.mrf.mxu0
      %v2384 = vadd.f32 %v2295, %v2383
      %2385 = vmatmul.bf16.gmra.mxu0 %v1057
      %v2386 = vpop.f32.mrf.mxu0
      %v2387 = vadd.f32 %v2298, %v2386
      %v2388 = vpop.f32.mrf.mxu0
      %v2389 = vadd.f32 %v2300, %v2388
      %2390 = vmatmul.bf16.gmra.mxu0 %v1058
      %v2391 = vpop.f32.mrf.mxu0
      %v2392 = vadd.f32 %v2303, %v2391
      %v2393 = vpop.f32.mrf.mxu0
      %v2394 = vadd.f32 %v2305, %v2393
      %2395 = vmatmul.bf16.gmra.mxu0 %v1059
      %v2396 = vpop.f32.mrf.mxu0
      %v2397 = vadd.f32 %v2308, %v2396
      %v2398 = vpop.f32.mrf.mxu0
      %v2399 = vadd.f32 %v2310, %v2398
      %2400 = vmatmul.bf16.gmra.mxu0 %v1060
      %v2401 = vpop.f32.mrf.mxu0
      %v2402 = vadd.f32 %v2313, %v2401
      %v2403 = vpop.f32.mrf.mxu0
      %v2404 = vadd.f32 %v2315, %v2403
      %2405 = vmatmul.bf16.gmra.mxu0 %v1061
      %v2406 = vpop.f32.mrf.mxu0
      %v2407 = vadd.f32 %v2318, %v2406
      %v2408 = vpop.f32.mrf.mxu0
      %v2409 = vadd.f32 %v2320, %v2408
      %2410 = vmatmul.bf16.gmra.mxu0 %v1062
      %v2411 = vpop.f32.mrf.mxu0
      %v2412 = vadd.f32 %v2323, %v2411
      %v2413 = vpop.f32.mrf.mxu0
      %v2414 = vadd.f32 %v2325, %v2413
      %2415 = vmatmul.bf16.gmra.mxu0 %v1063
      %v2416 = vpop.f32.mrf.mxu0
      %v2417 = vadd.f32 %v2328, %v2416
      %v2418 = vpop.f32.mrf.mxu0
      %v2419 = vadd.f32 %v2330, %v2418
      %2420 = vmatmul.bf16.gmra.mxu0 %v1210
      %v2421 = vpop.f32.mrf.mxu0
      %v2422 = vadd.f32 %v2333, %v2421
      %v2423 = vpop.f32.mrf.mxu0
      %v2424 = vadd.f32 %v2335, %v2423
      %2425 = vmatmul.bf16.gmra.mxu0 %v1222
      %v2426 = vpop.f32.mrf.mxu0
      %v2427 = vadd.f32 %v2338, %v2426
      %v2428 = vpop.f32.mrf.mxu0
      %v2429 = vadd.f32 %v2340, %v2428
      %2430 = vdwg.mxu0
      %2431 = vmatpush.bf16.msra.mxu0 %v1727
      %2432 = vmatpush.bf16.msra.mxu0 %v1726
      %2433 = vmatpush.bf16.msra.mxu0 %v1725
      %2434 = vmatpush.bf16.msra.mxu0 %v1724
      %2435 = vmatpush.bf16.msra.mxu0 %v1723
      %2436 = vmatpush.bf16.msra.mxu0 %v1722
      %2437 = vmatpush.bf16.msra.mxu0 %v1721
      %2438 = vmatpush.bf16.msra.mxu0 %v1720
      %2439 = vmatmul.bf16.gmra.mxu0 %v1114
      %v2440 = vpop.f32.mrf.mxu0
      %v2441 = vadd.f32 %v2352, %v2440
      %v2442 = vpop.f32.mrf.mxu0
      %v2443 = vadd.f32 %v2354, %v2442
      %2444 = vmatmul.bf16.gmra.mxu0 %v1115
      %v2445 = vpop.f32.mrf.mxu0
      %v2446 = vadd.f32 %v2357, %v2445
      %v2447 = vpop.f32.mrf.mxu0
      %v2448 = vadd.f32 %v2359, %v2447
      %2449 = vmatmul.bf16.gmra.mxu0 %v1116
      %v2450 = vpop.f32.mrf.mxu0
      %v2451 = vadd.f32 %v2362, %v2450
      %v2452 = vpop.f32.mrf.mxu0
      %v2453 = vadd.f32 %v2364, %v2452
      %2454 = vmatmul.bf16.gmra.mxu0 %v1117
      %v2455 = vpop.f32.mrf.mxu0
      %v2456 = vadd.f32 %v2367, %v2455
      %v2457 = vpop.f32.mrf.mxu0
      %v2458 = vadd.f32 %v2369, %v2457
      %2459 = vmatmul.bf16.gmra.mxu0 %v1118
      %v2460 = vpop.f32.mrf.mxu0
      %v2461 = vadd.f32 %v2372, %v2460
      %v2462 = vpop.f32.mrf.mxu0
      %v2463 = vadd.f32 %v2374, %v2462
      %2464 = vmatmul.bf16.gmra.mxu0 %v1119
      %v2465 = vpop.f32.mrf.mxu0
      %v2466 = vadd.f32 %v2377, %v2465
      %v2467 = vpop.f32.mrf.mxu0
      %v2468 = vadd.f32 %v2379, %v2467
      %2469 = vmatmul.bf16.gmra.mxu0 %v1120
      %v2470 = vpop.f32.mrf.mxu0
      %v2471 = vadd.f32 %v2382, %v2470
      %v2472 = vpop.f32.mrf.mxu0
      %v2473 = vadd.f32 %v2384, %v2472
      %2474 = vmatmul.bf16.gmra.mxu0 %v1121
      %v2475 = vpop.f32.mrf.mxu0
      %v2476 = vadd.f32 %v2387, %v2475
      %v2477 = vpop.f32.mrf.mxu0
      %v2478 = vadd.f32 %v2389, %v2477
      %2479 = vmatmul.bf16.gmra.mxu0 %v1122
      %v2480 = vpop.f32.mrf.mxu0
      %v2481 = vadd.f32 %v2392, %v2480
      %v2482 = vpop.f32.mrf.mxu0
      %v2483 = vadd.f32 %v2394, %v2482
      %2484 = vmatmul.bf16.gmra.mxu0 %v1123
      %v2485 = vpop.f32.mrf.mxu0
      %v2486 = vadd.f32 %v2397, %v2485
      %v2487 = vpop.f32.mrf.mxu0
      %v2488 = vadd.f32 %v2399, %v2487
      %2489 = vmatmul.bf16.gmra.mxu0 %v1124
      %v2490 = vpop.f32.mrf.mxu0
      %v2491 = vadd.f32 %v2402, %v2490
      %v2492 = vpop.f32.mrf.mxu0
      %v2493 = vadd.f32 %v2404, %v2492
      %2494 = vmatmul.bf16.gmra.mxu0 %v1125
      %v2495 = vpop.f32.mrf.mxu0
      %v2496 = vadd.f32 %v2407, %v2495
      %v2497 = vpop.f32.mrf.mxu0
      %v2498 = vadd.f32 %v2409, %v2497
      %2499 = vmatmul.bf16.gmra.mxu0 %v1126
      %v2500 = vpop.f32.mrf.mxu0
      %v2501 = vadd.f32 %v2412, %v2500
      %v2502 = vpop.f32.mrf.mxu0
      %v2503 = vadd.f32 %v2414, %v2502
      %2504 = vmatmul.bf16.gmra.mxu0 %v1127
      %v2505 = vpop.f32.mrf.mxu0
      %v2506 = vadd.f32 %v2417, %v2505
      %v2507 = vpop.f32.mrf.mxu0
      %v2508 = vadd.f32 %v2419, %v2507
      %2509 = vmatmul.bf16.gmra.mxu0 %v1214
      %v2510 = vpop.f32.mrf.mxu0
      %v2511 = vadd.f32 %v2422, %v2510
      %v2512 = vpop.f32.mrf.mxu0
      %v2513 = vadd.f32 %v2424, %v2512
      %2514 = vmatmul.bf16.gmra.mxu0 %v1226
      %v2515 = vpop.f32.mrf.mxu0
      %v2516 = vadd.f32 %v2427, %v2515
      %v2517 = vpop.f32.mrf.mxu0
      %v2518 = vadd.f32 %v2429, %v2517
      %2519 = vdwg.mxu0
      %2520 = vmatpush.bf16.msra.mxu0 %v1735
      %2521 = vmatpush.bf16.msra.mxu0 %v1734
      %2522 = vmatpush.bf16.msra.mxu0 %v1733
      %2523 = vmatpush.bf16.msra.mxu0 %v1732
      %2524 = vmatpush.bf16.msra.mxu0 %v1731
      %2525 = vmatpush.bf16.msra.mxu0 %v1730
      %2526 = vmatpush.bf16.msra.mxu0 %v1729
      %2527 = vmatpush.bf16.msra.mxu0 %v1728
      %2528 = vmatmul.bf16.gmra.mxu0 %v1178
      %v2529 = vpop.f32.mrf.mxu0
      %v2530 = vadd.f32 %v2441, %v2529
      %v2531 = vpop.f32.mrf.mxu0
      %v2532 = vadd.f32 %v2443, %v2531
      %2533 = vmatmul.bf16.gmra.mxu0 %v1179
      %v2534 = vpop.f32.mrf.mxu0
      %v2535 = vadd.f32 %v2446, %v2534
      %v2536 = vpop.f32.mrf.mxu0
      %v2537 = vadd.f32 %v2448, %v2536
      %2538 = vmatmul.bf16.gmra.mxu0 %v1180
      %v2539 = vpop.f32.mrf.mxu0
      %v2540 = vadd.f32 %v2451, %v2539
      %v2541 = vpop.f32.mrf.mxu0
      %v2542 = vadd.f32 %v2453, %v2541
      %2543 = vmatmul.bf16.gmra.mxu0 %v1181
      %v2544 = vpop.f32.mrf.mxu0
      %v2545 = vadd.f32 %v2456, %v2544
      %v2546 = vpop.f32.mrf.mxu0
      %v2547 = vadd.f32 %v2458, %v2546
      %2548 = vmatmul.bf16.gmra.mxu0 %v1182
      %v2549 = vpop.f32.mrf.mxu0
      %v2550 = vadd.f32 %v2461, %v2549
      %v2551 = vpop.f32.mrf.mxu0
      %v2552 = vadd.f32 %v2463, %v2551
      %2553 = vmatmul.bf16.gmra.mxu0 %v1183
      %v2554 = vpop.f32.mrf.mxu0
      %v2555 = vadd.f32 %v2466, %v2554
      %v2556 = vpop.f32.mrf.mxu0
      %v2557 = vadd.f32 %v2468, %v2556
      %2558 = vmatmul.bf16.gmra.mxu0 %v1184
      %v2559 = vpop.f32.mrf.mxu0
      %v2560 = vadd.f32 %v2471, %v2559
      %v2561 = vpop.f32.mrf.mxu0
      %v2562 = vadd.f32 %v2473, %v2561
      %2563 = vmatmul.bf16.gmra.mxu0 %v1185
      %v2564 = vpop.f32.mrf.mxu0
      %v2565 = vadd.f32 %v2476, %v2564
      %v2566 = vpop.f32.mrf.mxu0
      %v2567 = vadd.f32 %v2478, %v2566
      %2568 = vmatmul.bf16.gmra.mxu0 %v1186
      %v2569 = vpop.f32.mrf.mxu0
      %v2570 = vadd.f32 %v2481, %v2569
      %v2571 = vpop.f32.mrf.mxu0
      %v2572 = vadd.f32 %v2483, %v2571
      %2573 = vmatmul.bf16.gmra.mxu0 %v1187
      %v2574 = vpop.f32.mrf.mxu0
      %v2575 = vadd.f32 %v2486, %v2574
      %v2576 = vpop.f32.mrf.mxu0
      %v2577 = vadd.f32 %v2488, %v2576
      %2578 = vmatmul.bf16.gmra.mxu0 %v1188
      %v2579 = vpop.f32.mrf.mxu0
      %v2580 = vadd.f32 %v2491, %v2579
      %v2581 = vpop.f32.mrf.mxu0
      %v2582 = vadd.f32 %v2493, %v2581
      %2583 = vmatmul.bf16.gmra.mxu0 %v1189
      %v2584 = vpop.f32.mrf.mxu0
      %v2585 = vadd.f32 %v2496, %v2584
      %v2586 = vpop.f32.mrf.mxu0
      %v2587 = vadd.f32 %v2498, %v2586
      %2588 = vmatmul.bf16.gmra.mxu0 %v1190
      %v2589 = vpop.f32.mrf.mxu0
      %v2590 = vadd.f32 %v2501, %v2589
      %v2591 = vpop.f32.mrf.mxu0
      %v2592 = vadd.f32 %v2503, %v2591
      %2593 = vmatmul.bf16.gmra.mxu0 %v1191
      %v2594 = vpop.f32.mrf.mxu0
      %v2595 = vadd.f32 %v2506, %v2594
      %v2596 = vpop.f32.mrf.mxu0
      %v2597 = vadd.f32 %v2508, %v2596
      %2598 = vmatmul.bf16.gmra.mxu0 %v1218
      %v2599 = vpop.f32.mrf.mxu0
      %v2600 = vadd.f32 %v2511, %v2599
      %v2601 = vpop.f32.mrf.mxu0
      %v2602 = vadd.f32 %v2513, %v2601
      %2603 = vmatmul.bf16.gmra.mxu0 %v1230
      %v2604 = vpop.f32.mrf.mxu0
      %v2605 = vadd.f32 %v2516, %v2604
      %v2606 = vpop.f32.mrf.mxu0
      %v2607 = vadd.f32 %v2518, %v2606
      %2608 = vdwg.mxu0
      %2609 = vst [vmem:[%s177] sm:$0xff] %v2530
      %2610 = vst [vmem:[%s177 + $0x8] sm:$0xff] %v2532
      %2611 = vst [vmem:[%s177 + $0x10] sm:$0xff] %v2535
      %2612 = vst [vmem:[%s177 + $0x18] sm:$0xff] %v2537
      %2613 = vst [vmem:[%s177 + $0x20] sm:$0xff] %v2540
      %2614 = vst [vmem:[%s177 + $0x28] sm:$0xff] %v2542
      %2615 = vst [vmem:[%s177 + $0x30] sm:$0xff] %v2545
      %2616 = vst [vmem:[%s177 + $0x38] sm:$0xff] %v2547
      %2617 = vst [vmem:[%s177 + $0x40] sm:$0xff] %v2550
      %2618 = vst [vmem:[%s177 + $0x48] sm:$0xff] %v2552
      %2619 = vst [vmem:[%s177 + $0x50] sm:$0xff] %v2555
      %2620 = vst [vmem:[%s177 + $0x58] sm:$0xff] %v2557
      %2621 = vst [vmem:[%s177 + $0x60] sm:$0xff] %v2560
      %2622 = vst [vmem:[%s177 + $0x68] sm:$0xff] %v2562
      %2623 = vst [vmem:[%s177 + $0x70] sm:$0xff] %v2565
      %2624 = vst [vmem:[%s177 + $0x78] sm:$0xff] %v2567
      %2625 = vst [vmem:[%s177 + $0x80] sm:$0xff] %v2570
      %2626 = vst [vmem:[%s177 + $0x88] sm:$0xff] %v2572
      %2627 = vst [vmem:[%s177 + $0x90] sm:$0xff] %v2575
      %2628 = vst [vmem:[%s177 + $0x98] sm:$0xff] %v2577
      %2629 = vst [vmem:[%s177 + $0xa0] sm:$0xff] %v2580
      %2630 = vst [vmem:[%s177 + $0xa8] sm:$0xff] %v2582
      %2631 = vst [vmem:[%s177 + $0xb0] sm:$0xff] %v2585
      %2632 = vst [vmem:[%s177 + $0xb8] sm:$0xff] %v2587
      %2633 = vst [vmem:[%s177 + $0xc0] sm:$0xff] %v2590
      %2634 = vst [vmem:[%s177 + $0xc8] sm:$0xff] %v2592
      %2635 = vst [vmem:[%s177 + $0xd0] sm:$0xff] %v2595
      %2636 = vst [vmem:[%s177 + $0xd8] sm:$0xff] %v2597
      %2637 = vst [vmem:[%s177 + $0xe0] sm:$0xff] %v2600
      %2638 = vst [vmem:[%s177 + $0xe8] sm:$0xff] %v2602
      %2639 = vst [vmem:[%s177 + $0xf0] sm:$0xff] %v2605
      %2640 = vst [vmem:[%s177 + $0xf8] sm:$0xff] %v2607
      %v2641 = vadd.f32 %v2530, %v2532
      %v2642 = vadd.f32 %v2641, %v2535
      %v2643 = vadd.f32 %v2642, %v2537
      %v2644 = vadd.f32 %v2643, %v2540
      %v2645 = vadd.f32 %v2644, %v2542
      %v2646 = vadd.f32 %v2645, %v2545
      %v2647 = vadd.f32 %v2646, %v2547
      %v2648 = vadd.f32 %v2647, %v2550
      %v2649 = vadd.f32 %v2648, %v2552
      %v2650 = vadd.f32 %v2649, %v2555
      %v2651 = vadd.f32 %v2650, %v2557
      %v2652 = vadd.f32 %v2651, %v2560
      %v2653 = vadd.f32 %v2652, %v2562
      %v2654 = vadd.f32 %v2653, %v2565
      %v2655 = vadd.f32 %v2654, %v2567
      %v2656 = vadd.f32 %v2655, %v2570
      %v2657 = vadd.f32 %v2656, %v2572
      %v2658 = vadd.f32 %v2657, %v2575
      %v2659 = vadd.f32 %v2658, %v2577
      %v2660 = vadd.f32 %v2659, %v2580
      %v2661 = vadd.f32 %v2660, %v2582
      %v2662 = vadd.f32 %v2661, %v2585
      %v2663 = vadd.f32 %v2662, %v2587
      %v2664 = vadd.f32 %v2663, %v2590
      %v2665 = vadd.f32 %v2664, %v2592
      %v2666 = vadd.f32 %v2665, %v2595
      %v2667 = vadd.f32 %v2666, %v2597
      %v2668 = vadd.f32 %v2667, %v2600
      %v2669 = vadd.f32 %v2668, %v2602
      %v2670 = vadd.f32 %v2669, %v2605
      %v2671 = vadd.f32 %v2670, %v2607
      %v2672 = vrot.slane %v2671, 4
      %v2673 = vadd.f32 %v2671, %v2672
      %v2674 = vrot.slane %v2673, 2
      %v2675 = vadd.f32 %v2673, %v2674
      %v2676 = vrot.slane %v2675, 1
      %v2677 = vadd.f32 %v2675, %v2676
      %v2678 = vmul.f32 %v2530, %v2530
      %v2679 = vmul.f32 %v2532, %v2532
      %v2680 = vmul.f32 %v2535, %v2535
      %v2681 = vmul.f32 %v2537, %v2537
      %v2682 = vmul.f32 %v2540, %v2540
      %v2683 = vmul.f32 %v2542, %v2542
      %v2684 = vmul.f32 %v2545, %v2545
      %v2685 = vmul.f32 %v2547, %v2547
      %v2686 = vmul.f32 %v2550, %v2550
      %v2687 = vmul.f32 %v2552, %v2552
      %v2688 = vmul.f32 %v2555, %v2555
      %v2689 = vmul.f32 %v2557, %v2557
      %v2690 = vmul.f32 %v2560, %v2560
      %v2691 = vmul.f32 %v2562, %v2562
      %v2692 = vmul.f32 %v2565, %v2565
      %v2693 = vmul.f32 %v2567, %v2567
      %v2694 = vmul.f32 %v2570, %v2570
      %v2695 = vmul.f32 %v2572, %v2572
      %v2696 = vmul.f32 %v2575, %v2575
      %v2697 = vmul.f32 %v2577, %v2577
      %v2698 = vmul.f32 %v2580, %v2580
      %v2699 = vmul.f32 %v2582, %v2582
      %v2700 = vmul.f32 %v2585, %v2585
      %v2701 = vmul.f32 %v2587, %v2587
      %v2702 = vmul.f32 %v2590, %v2590
      %v2703 = vmul.f32 %v2592, %v2592
      %v2704 = vmul.f32 %v2595, %v2595
      %v2705 = vmul.f32 %v2597, %v2597
      %v2706 = vmul.f32 %v2600, %v2600
      %v2707 = vmul.f32 %v2602, %v2602
      %v2708 = vmul.f32 %v2605, %v2605
      %v2709 = vmul.f32 %v2607, %v2607
      %v2710 = vadd.f32 %v2678, %v2679
      %v2711 = vadd.f32 %v2710, %v2680
      %v2712 = vadd.f32 %v2711, %v2681
      %v2713 = vadd.f32 %v2712, %v2682
      %v2714 = vadd.f32 %v2713, %v2683
      %v2715 = vadd.f32 %v2714, %v2684
      %v2716 = vadd.f32 %v2715, %v2685
      %v2717 = vadd.f32 %v2716, %v2686
      %v2718 = vadd.f32 %v2717, %v2687
      %v2719 = vadd.f32 %v2718, %v2688
      %v2720 = vadd.f32 %v2719, %v2689
      %v2721 = vadd.f32 %v2720, %v2690
      %v2722 = vadd.f32 %v2721, %v2691
      %v2723 = vadd.f32 %v2722, %v2692
      %v2724 = vadd.f32 %v2723, %v2693
      %v2725 = vadd.f32 %v2724, %v2694
      %v2726 = vadd.f32 %v2725, %v2695
      %v2727 = vadd.f32 %v2726, %v2696
      %v2728 = vadd.f32 %v2727, %v2697
      %v2729 = vadd.f32 %v2728, %v2698
      %v2730 = vadd.f32 %v2729, %v2699
      %v2731 = vadd.f32 %v2730, %v2700
      %v2732 = vadd.f32 %v2731, %v2701
      %v2733 = vadd.f32 %v2732, %v2702
      %v2734 = vadd.f32 %v2733, %v2703
      %v2735 = vadd.f32 %v2734, %v2704
      %v2736 = vadd.f32 %v2735, %v2705
      %v2737 = vadd.f32 %v2736, %v2706
      %v2738 = vadd.f32 %v2737, %v2707
      %v2739 = vadd.f32 %v2738, %v2708
      %v2740 = vadd.f32 %v2739, %v2709
      %v2741 = vrot.slane %v2740, 4
      %v2742 = vadd.f32 %v2740, %v2741
      %v2743 = vrot.slane %v2742, 2
      %v2744 = vadd.f32 %v2742, %v2743
      %v2745 = vrot.slane %v2744, 1
      %v2746 = vadd.f32 %v2744, %v2745
      %vm2747 = vcmask 1040384
      %v2748 = vsel %vm2747, %v2677, %v2746
      %2749 = vst [vmem:[%s181] sm:$0x3] %v2748
      %p2750 = scmp.lt.s32.totalorder %s15, 1
      %s2751 = scalar_select %p2750, %s15, 1
      %s2752 = smul.addr %s2751, 32
      %s2753 = smul.addr %s2752, 8
      %s2754 = scalar_lea.vmem %s2, %s2753
      %p2755 = scmp.lt.s32.totalorder %s15, 1
      %s2756 = scalar_select %p2755, %s15, 1
      %s2757 = smul.addr %s2756, 2
      %s2758 = scalar_lea.vmem %s3, %s2757
      // Predicated region
      $region29: #{residual_block.3} parent=27 // pred_check
        %p2759 = pneg %p80
      $region30: #{residual_block.3} parent=27 // pred_check_branch
        %2761 = sbr.rel (%p2759) target = $region32
      $region31: #{residual_block.3} parent=27 // pred_region
        _
      $region32: #{residual_block.3} parent=27 // pred_fallthru
        _
      // Predicated region
      $region33: #{residual_block.3} parent=27 // pred_check
        %p2762 = pneg %p106
      $region34: #{residual_block.3} parent=27 // pred_check_branch
        %2764 = sbr.rel (%p2762) target = $region36
      $region35: #{residual_block.3} parent=27 // pred_region
        _
      $region36: #{residual_block.3} parent=27 // pred_fallthru
        _
    $region28: #{residual_block.3} parent=5 // pred_fallthru
      _
    %p2765 = scmp.le.s32.totalorder 2, %s10
    // Predicated region
    $region37: #{residual_block.3} parent=5 // pred_check
      %p2766 = pneg %p2765
    $region38: #{residual_block.3} parent=5 // pred_check_branch
      %2768 = sbr.rel (%p2766) target = $region40
    $region39: #{residual_block.3} parent=5 // pred_region
      %s2769 = ssub.s32 %s10, 2
      // Predicated region
      $region41: #{residual_block.3} parent=39 // pred_check
        %p2770 = pneg %p86
      $region42: #{residual_block.3} parent=39 // pred_check_branch
        %2772 = sbr.rel (%p2770) target = $region44
      $region43: #{residual_block.3} parent=39 // pred_region
        %p2773 = scmp.lt.s32.totalorder %s16, 1
        %s2774 = scalar_select %p2773, %s16, 1
        %s2775 = smul.addr %s2774, 32
        %s2776 = smul.addr %s2775, 8
        %s2777 = scalar_lea.vmem %s2, %s2776
      $region44: #{residual_block.3} parent=39 // pred_fallthru
        _
      // Predicated region
      $region45: #{residual_block.3} parent=39 // pred_check
        %p2778 = pneg %p112
      $region46: #{residual_block.3} parent=39 // pred_check_branch
        %2780 = sbr.rel (%p2778) target = $region48
      $region47: #{residual_block.3} parent=39 // pred_region
        %p2781 = scmp.lt.s32.totalorder %s16, 1
        %s2782 = scalar_select %p2781, %s16, 1
        %s2783 = smul.addr %s2782, 2
        %s2784 = scalar_lea.vmem %s3, %s2783
      $region48: #{residual_block.3} parent=39 // pred_fallthru
        _
    $region40: #{residual_block.3} parent=5 // pred_fallthru
      _
  $region6: #{residual_block.3} parent=0 // loop_footer
    %s14 = sadd.s32 1, %s10
  $region7: #{residual_block.3} parent=0 // loop_footer_branch
    %9 = sbr.rel target = $region3
  $region8: #{residual_block.3} parent=0 // loop_exit
    _

// kernel: residual_block.4
$region0: #{residual_block.4}
  #allocation0 [shape = 'u32[]', space=smem, size = 0x4, offset = 0x4, fixed_abs, tag = 'smem constant byte address 0x4 - core index']
  #allocation1 [shape = 'u32[72,128]{1,0:T(1,128)}', space=vmem, size = 0x9000, scoped, tag = 'internal scratch']
  #allocation2 [shape = 'f32[18,18,128]{2,1,0:T(8,128)}', space=vmem, size = 0x36000, scoped, tag = 'scratch operand']
  %s0 = inlined_call_operand.vmem [shape: f32[2,16,16,128], index: 0, kind: input, shape index: {}]
  %s1 = inlined_call_operand.vmem [shape: f32[2,128], index: 1, kind: input, shape index: {}]
  %s2 = inlined_call_operand.vmem [shape: bf16[1152,128], index: 2, kind: input, shape index: {}]
  %s3 = inlined_call_operand.vmem [shape: f32[2,16,16,128], index: 3, kind: output, shape index: {0}]
  %s4 = inlined_call_operand.vmem [shape: f32[2,2,128], index: 4, kind: output, shape index: {1}]
  %5 = xla_tuple %s3, %s4
  %s6 = sld [smem:[#allocation0]]
  $region53: #{residual_block.4} parent=0
    _
  %s8 = ssub.s32 1, %s6
  %s9 = scalar_select 0, %s8, %s6
  loop: start=0, step=1, limit=4
  $region2: #{residual_block.4} parent=0 // loop_pre_header
    _
  $region3: #{residual_block.4} parent=0 // loop_header
    %s11 = sphi 0, %s15
    %p12 = scmp.ge.s32.totalorder %s11, 4
    %s21 = sphi 0, %s23
    %s24 = sphi 0, %s21
    %s25 = sphi 0, %s24
    %s41 = sphi 0, %s25
    %s45 = sphi 0, %s45
    %s47 = sphi 0, %s45
    %s48 = sphi 0, %s47
    %s62 = sphi 0, %s48
    %s66 = sphi 0, %s66
    %s68 = sphi 0, %s66
    %s69 = sphi 0, %s68
    %s83 = sphi 0, %s69
    %s89 = sphi 0, %s91
    %s92 = sphi 0, %s89
    %s93 = sphi 0, %s92
    %s109 = sphi 0, %s93
    %s115 = sphi 0, %s117
    %s118 = sphi 0, %s115
    %s119 = sphi 0, %s118
    %s135 = sphi 0, %s119
  $region4: #{residual_block.4} parent=0 // loop_header_branch
    %14 = sbr.rel (%p12) target = $region8
  $region5: #{residual_block.4} parent=0 // loop_body
    %s16 = ssub.s32 %s11, 1
    %s17 = ssub.s32 %s11, 2
    %s18 = sadd.s32 %s11, 1
    %s19 = ssub.s32 %s11, %s18
    %p20 = scmp.eq.s32.totalorder %s19, 0
    %s22 = sadd.s32 %s21, 1
    %s23 = scalar_select %p20, %s21, %s22
    %p26 = pneg %p20
    %p27 = scmp.eq.s32.totalorder %s11, 1
    %p28 = por %p26, %p27
    %p29 = scmp.ne.s32.totalorder %s21, %s24
    %p30 = scmp.eq.s32.totalorder %s11, 0
    %p31 = por %p29, %p30
    %p32 = scmp.ne.s32.totalorder %s21, %s24
    %p33 = scmp.eq.s32.totalorder %s16, 1
    %p34 = por %p32, %p33
    %p35 = scmp.ne.s32.totalorder %s24, %s25
    %p36 = scmp.eq.s32.totalorder %s16, 0
    %p37 = por %p35, %p36
    %p38 = scmp.ne.s32.totalorder %s24, %s25
    %p39 = scmp.eq.s32.totalorder %s17, 1
    %p40 = por %p38, %p39
    %p42 = scmp.ne.s32.totalorder %s25, %s41
    %p43 = scmp.eq.s32.totalorder %s17, 0
    %p44 = por %p42, %p43
    %s46 = sadd.s32 %s45, 1
    %p49 = scmp.eq.s32.totalorder %s11, 1
    %p50 = scmp.ne.s32.totalorder %s45, %s47
    %p51 = scmp.eq.s32.totalorder %s11, 0
    %p52 = por %p50, %p51
    %p53 = scmp.ne.s32.totalorder %s45, %s47
    %p54 = scmp.eq.s32.totalorder %s16, 1
    %p55 = por %p53, %p54
    %p56 = scmp.ne.s32.totalorder %s47, %s48
    %p57 = scmp.eq.s32.totalorder %s16, 0
    %p58 = por %p56, %p57
    %p59 = scmp.ne.s32.totalorder %s47, %s48
    %p60 = scmp.eq.s32.totalorder %s17, 1
    %p61 = por %p59, %p60
    %p63 = scmp.ne.s32.totalorder %s48, %s62
    %p64 = scmp.eq.s32.totalorder %s17, 0
    %p65 = por %p63, %p64
    %s67 = sadd.s32 %s66, 1
    %p70 = scmp.eq.s32.totalorder %s11, 1
    %p71 = scmp.ne.s32.totalorder %s66, %s68
    %p72 = scmp.eq.s32.totalorder %s11, 0
    %p73 = por %p71, %p72
    %p74 = scmp.ne.s32.totalorder %s66, %s68
    %p75 = scmp.eq.s32.totalorder %s16, 1
    %p76 = por %p74, %p75
    %p77 = scmp.ne.s32.totalorder %s68, %s69
    %p78 = scmp.eq.s32.totalorder %s16, 0
    %p79 = por %p77, %p78
    %p80 = scmp.ne.s32.totalorder %s68, %s69
    %p81 = scmp.eq.s32.totalorder %s17, 1
    %p82 = por %p80, %p81
    %p84 = scmp.ne.s32.totalorder %s69, %s83
    %p85 = scmp.eq.s32.totalorder %s17, 0
    %p86 = por %p84, %p85
    %s87 = ssub.s32 %s11, %s18
    %p88 = scmp.eq.s32.totalorder %s87, 0
    %s90 = sadd.s32 %s89, 1
    %s91 = scalar_select %p88, %s89, %s90
    %p94 = pneg %p88
    %p95 = scmp.eq.s32.totalorder %s11, 1
    %p96 = por %p94, %p95
    %p97 = scmp.ne.s32.totalorder %s89, %s92
    %p98 = scmp.eq.s32.totalorder %s11, 0
    %p99 = por %p97, %p98
    %p100 = scmp.ne.s32.totalorder %s89, %s92
    %p101 = scmp.eq.s32.totalorder %s16, 1
    %p102 = por %p100, %p101
    %p103 = scmp.ne.s32.totalorder %s92, %s93
    %p104 = scmp.eq.s32.totalorder %s16, 0
    %p105 = por %p103, %p104
    %p106 = scmp.ne.s32.totalorder %s92, %s93
    %p107 = scmp.eq.s32.totalorder %s17, 1
    %p108 = por %p106, %p107
    %p110 = scmp.ne.s32.totalorder %s93, %s109
    %p111 = scmp.eq.s32.totalorder %s17, 0
    %p112 = por %p110, %p111
    %s113 = ssub.s32 %s11, %s18
    %p114 = scmp.eq.s32.totalorder %s113, 0
    %s116 = sadd.s32 %s115, 1
    %s117 = scalar_select %p114, %s115, %s116
    %p120 = pneg %p114
    %p121 = scmp.eq.s32.totalorder %s11, 1
    %p122 = por %p120, %p121
    %p123 = scmp.ne.s32.totalorder %s115, %s118
    %p124 = scmp.eq.s32.totalorder %s11, 0
    %p125 = por %p123, %p124
    %p126 = scmp.ne.s32.totalorder %s115, %s118
    %p127 = scmp.eq.s32.totalorder %s16, 1
    %p128 = por %p126, %p127
    %p129 = scmp.ne.s32.totalorder %s118, %s119
    %p130 = scmp.eq.s32.totalorder %s16, 0
    %p131 = por %p129, %p130
    %p132 = scmp.ne.s32.totalorder %s118, %s119
    %p133 = scmp.eq.s32.totalorder %s17, 1
    %p134 = por %p132, %p133
    %p136 = scmp.ne.s32.totalorder %s119, %s135
    %p137 = scmp.eq.s32.totalorder %s17, 0
    %p138 = por %p136, %p137
    %p139 = scmp.le.s32.totalorder 1, %s11
    %p140 = scmp.lt.s32.totalorder %s11, 3
    %p141 = pnand %p139, %p140
    %p142 = pneg %p141
    // Predicated region
    $region9: #{residual_block.4} parent=5 // pred_check
      _
    $region10: #{residual_block.4} parent=5 // pred_check_branch
      %144 = sbr.rel (%p141) target = $region12
    $region11: #{residual_block.4} parent=5 // pred_region
      %s145 = ssub.s32 %s11, 1
      // Predicated region
      $region13: #{residual_block.4} parent=11 // pred_check
        %p146 = pneg %p58
      $region14: #{residual_block.4} parent=11 // pred_check_branch
        %148 = sbr.rel (%p146) target = $region16
      $region15: #{residual_block.4} parent=11 // pred_region
        _
      $region16: #{residual_block.4} parent=11 // pred_fallthru
        _
      // Predicated region
      $region17: #{residual_block.4} parent=11 // pred_check
        %p149 = pneg %p79
      $region18: #{residual_block.4} parent=11 // pred_check_branch
        %151 = sbr.rel (%p149) target = $region20
      $region19: #{residual_block.4} parent=11 // pred_region
        _
      $region20: #{residual_block.4} parent=11 // pred_fallthru
        _
    $region12: #{residual_block.4} parent=5 // pred_fallthru
      _
    %p152 = scmp.lt.s32.totalorder %s11, 2
    // Predicated region
    $region21: #{residual_block.4} parent=5 // pred_check
      %p153 = pneg %p152
    $region22: #{residual_block.4} parent=5 // pred_check_branch
      %155 = sbr.rel (%p153) target = $region24
    $region23: #{residual_block.4} parent=5 // pred_region
      // Predicated region
      $region25: #{residual_block.4} parent=23 // pred_check
        %p156 = pneg %p31
      $region26: #{residual_block.4} parent=23 // pred_check_branch
        %158 = sbr.rel (%p156) target = $region28
      $region27: #{residual_block.4} parent=23 // pred_region
        %p159 = scmp.lt.s32.totalorder %s11, 1
        %s160 = scalar_select %p159, %s11, 1
        %s161 = smul.addr %s160, 32
        %s162 = smul.addr %s161, 8
        %s163 = scalar_lea.vmem %s0, %s162
      $region28: #{residual_block.4} parent=23 // pred_fallthru
        _
    $region24: #{residual_block.4} parent=5 // pred_fallthru
      _
    %p164 = scmp.le.s32.totalorder 1, %s11
    %p165 = scmp.lt.s32.totalorder %s11, 3
    %p166 = pnand %p164, %p165
    %p167 = pneg %p166
    // Predicated region
    $region29: #{residual_block.4} parent=5 // pred_check
      _
    $region30: #{residual_block.4} parent=5 // pred_check_branch
      %169 = sbr.rel (%p166) target = $region32
    $region31: #{residual_block.4} parent=5 // pred_region
      %s170 = ssub.s32 %s11, 1
      %p171 = scmp.lt.s32.totalorder %s16, 1
      %s172 = scalar_select %p171, %s16, 1
      %s173 = smul.addr %s172, 32
      %s174 = smul.addr %s173, 8
      %s175 = scalar_lea.vmem %s0, %s174
      %p176 = pneg %p37
      %p177 = pneg %p34
      %p178 = pneg %p58
      %p179 = pneg %p55
      %p180 = pneg %p79
      %p181 = pneg %p76
      %p182 = pneg %p105
      %p183 = pneg %p102
      %p184 = scmp.lt.s32.totalorder %s16, 1
      %s185 = scalar_select %p184, %s16, 1
      %s186 = smul.addr %s185, 32
      %s187 = smul.addr %s186, 8
      %s188 = scalar_lea.vmem %s3, %s187
      %p189 = pneg %p131
      %p190 = pneg %p128
      %p191 = scmp.lt.s32.totalorder %s16, 1
      %s192 = scalar_select %p191, %s16, 1
      %s193 = smul.addr %s192, 2
      %s194 = scalar_lea.vmem %s4, %s193
      %p195 = scmp.lt.s32.totalorder %s16, 1
      %s196 = scalar_select %p195, %s16, 1
      %s197 = smul.addr %s196, 32
      %s198 = smul.addr %s197, 8
      %s199 = scalar_lea.vmem %s0, %s198
      %p200 = scmp.lt.s32.totalorder %s16, 1
      %s201 = scalar_select %p200, %s16, 1
      %s202 = smul.addr %s201, 32
      %s203 = smul.addr %s202, 8
      %s204 = scalar_lea.vmem %s3, %s203
      %p205 = scmp.lt.s32.totalorder %s16, 1
      %s206 = scalar_select %p205, %s16, 1
      %s207 = smul.addr %s206, 2
      %s208 = scalar_lea.vmem %s4, %s207
      %v209 = vld [vmem:[%s1] sm:$0x1]
      %v210 = vld [vmem:[%s1 + $0x1] sm:$0x1]
      %v211 = vld [vmem:[%s199] sm:$0xff]
      %v212 = vld [vmem:[%s199 + $0x8] sm:$0xff]
      %v213 = vld [vmem:[%s199 + $0x10] sm:$0xff]
      %v214 = vld [vmem:[%s199 + $0x18] sm:$0xff]
      %v215 = vld [vmem:[%s199 + $0x20] sm:$0xff]
      %v216 = vld [vmem:[%s199 + $0x28] sm:$0xff]
      %v217 = vld [vmem:[%s199 + $0x30] sm:$0xff]
      %v218 = vld [vmem:[%s199 + $0x38] sm:$0xff]
      %v219 = vld [vmem:[%s199 + $0x40] sm:$0xff]
      %v220 = vld [vmem:[%s199 + $0x48] sm:$0xff]
      %v221 = vld [vmem:[%s199 + $0x50] sm:$0xff]
      %v222 = vld [vmem:[%s199 + $0x58] sm:$0xff]
      %v223 = vld [vmem:[%s199 + $0x60] sm:$0xff]
      %v224 = vld [vmem:[%s199 + $0x68] sm:$0xff]
      %v225 = vld [vmem:[%s199 + $0x70] sm:$0xff]
      %v226 = vld [vmem:[%s199 + $0x78] sm:$0xff]
      %v227 = vld [vmem:[%s199 + $0x80] sm:$0xff]
      %v228 = vld [vmem:[%s199 + $0x88] sm:$0xff]
      %v229 = vld [vmem:[%s199 + $0x90] sm:$0xff]
      %v230 = vld [vmem:[%s199 + $0x98] sm:$0xff]
      %v231 = vld [vmem:[%s199 + $0xa0] sm:$0xff]
      %v232 = vld [vmem:[%s199 + $0xa8] sm:$0xff]
      %v233 = vld [vmem:[%s199 + $0xb0] sm:$0xff]
      %v234 = vld [vmem:[%s199 + $0xb8] sm:$0xff]
      %v235 = vld [vmem:[%s199 + $0xc0] sm:$0xff]
      %v236 = vld [vmem:[%s199 + $0xc8] sm:$0xff]
      %v237 = vld [vmem:[%s199 + $0xd0] sm:$0xff]
      %v238 = vld [vmem:[%s199 + $0xd8] sm:$0xff]
      %v239 = vld [vmem:[%s199 + $0xe0] sm:$0xff]
      %v240 = vld [vmem:[%s199 + $0xe8] sm:$0xff]
      %v241 = vld [vmem:[%s199 + $0xf0] sm:$0xff]
      %v242 = vld [vmem:[%s199 + $0xf8] sm:$0xff]
      %v243 = vperm.slane %v209, 0
      %v244 = vmul.f32 %v211, %v243
      %v245 = vmul.f32 %v212, %v243
      %v246 = vmul.f32 %v213, %v243
      %v247 = vmul.f32 %v214, %v243
      %v248 = vmul.f32 %v215, %v243
      %v249 = vmul.f32 %v216, %v243
      %v250 = vmul.f32 %v217, %v243
      %v251 = vmul.f32 %v218, %v243
      %v252 = vmul.f32 %v219, %v243
      %v253 = vmul.f32 %v220, %v243
      %v254 = vmul.f32 %v221, %v243
      %v255 = vmul.f32 %v222, %v243
      %v256 = vmul.f32 %v223, %v243
      %v257 = vmul.f32 %v224, %v243
      %v258 = vmul.f32 %v225, %v243
      %v259 = vmul.f32 %v226, %v243
      %v260 = vmul.f32 %v227, %v243
      %v261 = vmul.f32 %v228, %v243
      %v262 = vmul.f32 %v229, %v243
      %v263 = vmul.f32 %v230, %v243
      %v264 = vmul.f32 %v231, %v243
      %v265 = vmul.f32 %v232, %v243
      %v266 = vmul.f32 %v233, %v243
      %v267 = vmul.f32 %v234, %v243
      %v268 = vmul.f32 %v235, %v243
      %v269 = vmul.f32 %v236, %v243
      %v270 = vmul.f32 %v237, %v243
      %v271 = vmul.f32 %v238, %v243
      %v272 = vmul.f32 %v239, %v243
      %v273 = vmul.f32 %v240, %v243
      %v274 = vmul.f32 %v241, %v243
      %v275 = vmul.f32 %v242, %v243
      %v276 = vperm.slane %v210, 0
      %v277 = vadd.f32 %v244, %v276
      %v278 = vadd.f32 %v245, %v276
      %v279 = vadd.f32 %v246, %v276
      %v280 = vadd.f32 %v247, %v276
      %v281 = vadd.f32 %v248, %v276
      %v282 = vadd.f32 %v249, %v276
      %v283 = vadd.f32 %v250, %v276
      %v284 = vadd.f32 %v251, %v276
      %v285 = vadd.f32 %v252, %v276
      %v286 = vadd.f32 %v253, %v276
      %v287 = vadd.f32 %v254, %v276
      %v288 = vadd.f32 %v255, %v276
      %v289 = vadd.f32 %v256, %v276
      %v290 = vadd.f32 %v257, %v276
      %v291 = vadd.f32 %v258, %v276
      %v292 = vadd.f32 %v259, %v276
      %v293 = vadd.f32 %v260, %v276
      %v294 = vadd.f32 %v261, %v276
      %v295 = vadd.f32 %v262, %v276
      %v296 = vadd.f32 %v263, %v276
      %v297 = vadd.f32 %v264, %v276
      %v298 = vadd.f32 %v265, %v276
      %v299 = vadd.f32 %v266, %v276
      %v300 = vadd.f32 %v267, %v276
      %v301 = vadd.f32 %v268, %v276
      %v302 = vadd.f32 %v269, %v276
      %v303 = vadd.f32 %v270, %v276
      %v304 = vadd.f32 %v271, %v276
      %v305 = vadd.f32 %v272, %v276
      %v306 = vadd.f32 %v273, %v276
      %v307 = vadd.f32 %v274, %v276
      %v308 = vadd.f32 %v275, %v276
      %v309 = vmax.f32 %v277, 0.0
      %v310 = vmax.f32 %v278, 0.0
      %v311 = vmax.f32 %v279, 0.0
      %v312 = vmax.f32 %v280, 0.0
      %v313 = vmax.f32 %v281, 0.0
      %v314 = vmax.f32 %v282, 0.0
      %v315 = vmax.f32 %v283, 0.0
      %v316 = vmax.f32 %v284, 0.0
      %v317 = vmax.f32 %v285, 0.0
      %v318 = vmax.f32 %v286, 0.0
      %v319 = vmax.f32 %v287, 0.0
      %v320 = vmax.f32 %v288, 0.0
      %v321 = vmax.f32 %v289, 0.0
      %v322 = vmax.f32 %v290, 0.0
      %v323 = vmax.f32 %v291, 0.0
      %v324 = vmax.f32 %v292, 0.0
      %v325 = vmax.f32 %v293, 0.0
      %v326 = vmax.f32 %v294, 0.0
      %v327 = vmax.f32 %v295, 0.0
      %v328 = vmax.f32 %v296, 0.0
      %v329 = vmax.f32 %v297, 0.0
      %v330 = vmax.f32 %v298, 0.0
      %v331 = vmax.f32 %v299, 0.0
      %v332 = vmax.f32 %v300, 0.0
      %v333 = vmax.f32 %v301, 0.0
      %v334 = vmax.f32 %v302, 0.0
      %v335 = vmax.f32 %v303, 0.0
      %v336 = vmax.f32 %v304, 0.0
      %v337 = vmax.f32 %v305, 0.0
      %v338 = vmax.f32 %v306, 0.0
      %v339 = vmax.f32 %v307, 0.0
      %v340 = vmax.f32 %v308, 0.0
      %341 = vst [vmem:[#allocation2] sm:$0xff] 0.0
      %342 = vst [vmem:[#allocation2 + $0x8] sm:$0xff] 0.0
      %343 = vst [vmem:[#allocation2 + $0x10] sm:$0x3] 0.0
      %s344 = scalar_lea.vmem [#allocation2], 408
      %345 = vst [vmem:[%s344] sm:$0xff] 0.0
      %346 = vst [vmem:[%s344 + $0x8] sm:$0xff] 0.0
      %347 = vst [vmem:[%s344 + $0x10] sm:$0x3] 0.0
      %348 = vst [vmem:[#allocation2] sm:$0x1] 0.0
      %349 = vst [vmem:[#allocation2 + $0x18] sm:$0x1] 0.0
      %350 = vst [vmem:[#allocation2 + $0x30] sm:$0x1] 0.0
      %351 = vst [vmem:[#allocation2 + $0x48] sm:$0x1] 0.0
      %352 = vst [vmem:[#allocation2 + $0x60] sm:$0x1] 0.0
      %353 = vst [vmem:[#allocation2 + $0x78] sm:$0x1] 0.0
      %354 = vst [vmem:[#allocation2 + $0x90] sm:$0x1] 0.0
      %355 = vst [vmem:[#allocation2 + $0xa8] sm:$0x1] 0.0
      %356 = vst [vmem:[#allocation2 + $0xc0] sm:$0x1] 0.0
      %357 = vst [vmem:[#allocation2 + $0xd8] sm:$0x1] 0.0
      %358 = vst [vmem:[#allocation2 + $0xf0] sm:$0x1] 0.0
      %359 = vst [vmem:[#allocation2 + $0x108] sm:$0x1] 0.0
      %360 = vst [vmem:[#allocation2 + $0x120] sm:$0x1] 0.0
      %361 = vst [vmem:[#allocation2 + $0x138] sm:$0x1] 0.0
      %362 = vst [vmem:[#allocation2 + $0x150] sm:$0x1] 0.0
      %363 = vst [vmem:[#allocation2 + $0x168] sm:$0x1] 0.0
      %364 = vst [vmem:[#allocation2 + $0x180] sm:$0x1] 0.0
      %365 = vst [vmem:[#allocation2 + $0x198] sm:$0x1] 0.0
      %366 = vst [vmem:[#allocation2 + $0x11] sm:$0x1] 0.0
      %367 = vst [vmem:[#allocation2 + $0x29] sm:$0x1] 0.0
      %368 = vst [vmem:[#allocation2 + $0x41] sm:$0x1] 0.0
      %369 = vst [vmem:[#allocation2 + $0x59] sm:$0x1] 0.0
      %370 = vst [vmem:[#allocation2 + $0x71] sm:$0x1] 0.0
      %371 = vst [vmem:[#allocation2 + $0x89] sm:$0x1] 0.0
      %372 = vst [vmem:[#allocation2 + $0xa1] sm:$0x1] 0.0
      %373 = vst [vmem:[#allocation2 + $0xb9] sm:$0x1] 0.0
      %374 = vst [vmem:[#allocation2 + $0xd1] sm:$0x1] 0.0
      %375 = vst [vmem:[#allocation2 + $0xe9] sm:$0x1] 0.0
      %376 = vst [vmem:[#allocation2 + $0x101] sm:$0x1] 0.0
      %377 = vst [vmem:[#allocation2 + $0x119] sm:$0x1] 0.0
      %378 = vst [vmem:[#allocation2 + $0x131] sm:$0x1] 0.0
      %379 = vst [vmem:[#allocation2 + $0x149] sm:$0x1] 0.0
      %380 = vst [vmem:[#allocation2 + $0x161] sm:$0x1] 0.0
      %381 = vst [vmem:[#allocation2 + $0x179] sm:$0x1] 0.0
      %382 = vst [vmem:[#allocation2 + $0x191] sm:$0x1] 0.0
      %383 = vst [vmem:[#allocation2 + $0x1a9] sm:$0x1] 0.0
      %s384 = scalar_lea.vmem [#allocation2], 24
      %385 = vst [vmem:[%s384 + $0x1] sm:$0xff] %v309
      %386 = vst [vmem:[%s384 + $0x9] sm:$0xff] %v310
      %387 = vst [vmem:[%s384 + $0x19] sm:$0xff] %v311
      %388 = vst [vmem:[%s384 + $0x21] sm:$0xff] %v312
      %389 = vst [vmem:[%s384 + $0x31] sm:$0xff] %v313
      %390 = vst [vmem:[%s384 + $0x39] sm:$0xff] %v314
      %391 = vst [vmem:[%s384 + $0x49] sm:$0xff] %v315
      %392 = vst [vmem:[%s384 + $0x51] sm:$0xff] %v316
      %393 = vst [vmem:[%s384 + $0x61] sm:$0xff] %v317
      %394 = vst [vmem:[%s384 + $0x69] sm:$0xff] %v318
      %395 = vst [vmem:[%s384 + $0x79] sm:$0xff] %v319
      %396 = vst [vmem:[%s384 + $0x81] sm:$0xff] %v320
      %397 = vst [vmem:[%s384 + $0x91] sm:$0xff] %v321
      %398 = vst [vmem:[%s384 + $0x99] sm:$0xff] %v322
      %399 = vst [vmem:[%s384 + $0xa9] sm:$0xff] %v323
      %400 = vst [vmem:[%s384 + $0xb1] sm:$0xff] %v324
      %401 = vst [vmem:[%s384 + $0xc1] sm:$0xff] %v325
      %402 = vst [vmem:[%s384 + $0xc9] sm:$0xff] %v326
      %403 = vst [vmem:[%s384 + $0xd9] sm:$0xff] %v327
      %404 = vst [vmem:[%s384 + $0xe1] sm:$0xff] %v328
      %405 = vst [vmem:[%s384 + $0xf1] sm:$0xff] %v329
      %406 = vst [vmem:[%s384 + $0xf9] sm:$0xff] %v330
      %407 = vst [vmem:[%s384 + $0x109] sm:$0xff] %v331
      %408 = vst [vmem:[%s384 + $0x111] sm:$0xff] %v332
      %409 = vst [vmem:[%s384 + $0x121] sm:$0xff] %v333
      %410 = vst [vmem:[%s384 + $0x129] sm:$0xff] %v334
      %411 = vst [vmem:[%s384 + $0x139] sm:$0xff] %v335
      %412 = vst [vmem:[%s384 + $0x141] sm:$0xff] %v336
      %413 = vst [vmem:[%s384 + $0x151] sm:$0xff] %v337
      %414 = vst [vmem:[%s384 + $0x159] sm:$0xff] %v338
      %415 = vst [vmem:[%s384 + $0x169] sm:$0xff] %v339
      %416 = vst [vmem:[%s384 + $0x171] sm:$0xff] %v340
      %v417 = vld [vmem:[#allocation2] sm:$0xff]
      %v418 = vld [vmem:[#allocation2 + $0x8] sm:$0xff]
      %v419 = vld [vmem:[#allocation2 + $0x10] sm:$0x3]
      %v420 = vld [vmem:[#allocation2 + $0x18] sm:$0xff]
      %v421 = vld [vmem:[#allocation2 + $0x20] sm:$0xff]
      %v422 = vld [vmem:[#allocation2 + $0x28] sm:$0x3]
      %v423 = vld [vmem:[#allocation2 + $0x30] sm:$0xff]
      %v424 = vld [vmem:[#allocation2 + $0x38] sm:$0xff]
      %v425 = vld [vmem:[#allocation2 + $0x40] sm:$0x3]
      %v426 = vld [vmem:[#allocation2 + $0x48] sm:$0xff]
      %v427 = vld [vmem:[#allocation2 + $0x50] sm:$0xff]
      %v428 = vld [vmem:[#allocation2 + $0x58] sm:$0x3]
      %v429 = vld [vmem:[#allocation2 + $0x60] sm:$0xff]
      %v430 = vld [vmem:[#allocation2 + $0x68] sm:$0xff]
      %v431 = vld [vmem:[#allocation2 + $0x70] sm:$0x3]
      %v432 = vld [vmem:[#allocation2 + $0x78] sm:$0xff]
      %v433 = vld [vmem:[#allocation2 + $0x80] sm:$0xff]
      %v434 = vld [vmem:[#allocation2 + $0x88] sm:$0x3]
      %v435 = vld [vmem:[#allocation2 + $0x90] sm:$0xff]
      %v436 = vld [vmem:[#allocation2 + $0x98] sm:$0xff]
      %v437 = vld [vmem:[#allocation2 + $0xa0] sm:$0x3]
      %v438 = vld [vmem:[#allocation2 + $0xa8] sm:$0xff]
      %v439 = vld [vmem:[#allocation2 + $0xb0] sm:$0xff]
      %v440 = vld [vmem:[#allocation2 + $0xb8] sm:$0x3]
      %v441 = vld [vmem:[#allocation2 + $0xc0] sm:$0xff]
      %v442 = vld [vmem:[#allocation2 + $0xc8] sm:$0xff]
      %v443 = vld [vmem:[#allocation2 + $0xd0] sm:$0x3]
      %v444 = vld [vmem:[#allocation2 + $0xd8] sm:$0xff]
      %v445 = vld [vmem:[#allocation2 + $0xe0] sm:$0xff]
      %v446 = vld [vmem:[#allocation2 + $0xe8] sm:$0x3]
      %v447 = vld [vmem:[#allocation2 + $0xf0] sm:$0xff]
      %v448 = vld [vmem:[#allocation2 + $0xf8] sm:$0xff]
      %v449 = vld [vmem:[#allocation2 + $0x100] sm:$0x3]
      %v450 = vld [vmem:[#allocation2 + $0x108] sm:$0xff]
      %v451 = vld [vmem:[#allocation2 + $0x110] sm:$0xff]
      %v452 = vld [vmem:[#allocation2 + $0x118] sm:$0x3]
      %v453 = vld [vmem:[#allocation2 + $0x120] sm:$0xff]
      %v454 = vld [vmem:[#allocation2 + $0x128] sm:$0xff]
      %v455 = vld [vmem:[#allocation2 + $0x130] sm:$0x3]
      %v456 = vld [vmem:[#allocation2 + $0x138] sm:$0xff]
      %v457 = vld [vmem:[#allocation2 + $0x140] sm:$0xff]
      %v458 = vld [vmem:[#allocation2 + $0x148] sm:$0x3]
      %v459 = vld [vmem:[#allocation2 + $0x150] sm:$0xff]
      %v460 = vld [vmem:[#allocation2 + $0x158] sm:$0xff]
      %v461 = vld [vmem:[#allocation2 + $0x160] sm:$0x3]
      %v462 = vld [vmem:[#allocation2 + $0x168] sm:$0xff]
      %v463 = vld [vmem:[#allocation2 + $0x170] sm:$0xff]
      %v464 = vld [vmem:[#allocation2 + $0x178] sm:$0x3]
      %v465 = vld [vmem:[#allocation2 + $0x180] sm:$0xff]
      %v466 = vld [vmem:[#allocation2 + $0x188] sm:$0xff]
      %v467 = vld [vmem:[#allocation2 + $0x190] sm:$0x3]
      %v468 = vld [vmem:[#allocation2 + $0x198] sm:$0xff]
      %v469 = vld [vmem:[#allocation2 + $0x1a0] sm:$0xff]
      %v470 = vld [vmem:[#allocation2 + $0x1a8] sm:$0x3]
      %v471 = vpack.c.bf16 %v417, %v417
      %v472 = vpack.c.bf16 %v418, %v418
      %v473 = vpack.c.bf16 %v419, %v419
      %v474 = vpack.c.bf16 %v420, %v420
      %v475 = vpack.c.bf16 %v421, %v421
      %v476 = vpack.c.bf16 %v422, %v422
      %v477 = vpack.c.bf16 %v423, %v423
      %v478 = vpack.c.bf16 %v424, %v424
      %v479 = vpack.c.bf16 %v425, %v425
      %v480 = vpack.c.bf16 %v426, %v426
      %v481 = vpack.c.bf16 %v427, %v427
      %v482 = vpack.c.bf16 %v428, %v428
      %v483 = vpack.c.bf16 %v429, %v429
      %v484 = vpack.c.bf16 %v430, %v430
      %v485 = vpack.c.bf16 %v431, %v431
      %v486 = vpack.c.bf16 %v432, %v432
      %v487 = vpack.c.bf16 %v433, %v433
      %v488 = vpack.c.bf16 %v434, %v434
      %v489 = vpack.c.bf16 %v435, %v435
      %v490 = vpack.c.bf16 %v436, %v436
      %v491 = vpack.c.bf16 %v437, %v437
      %v492 = vpack.c.bf16 %v438, %v438
      %v493 = vpack.c.bf16 %v439, %v439
      %v494 = vpack.c.bf16 %v440, %v440
      %v495 = vpack.c.bf16 %v441, %v441
      %v496 = vpack.c.bf16 %v442, %v442
      %v497 = vpack.c.bf16 %v443, %v443
      %v498 = vpack.c.bf16 %v444, %v444
      %v499 = vpack.c.bf16 %v445, %v445
      %v500 = vpack.c.bf16 %v446, %v446
      %v501 = vpack.c.bf16 %v447, %v447
      %v502 = vpack.c.bf16 %v448, %v448
      %v503 = vpack.c.bf16 %v449, %v449
      %v504 = vpack.c.bf16 %v450, %v450
      %v505 = vpack.c.bf16 %v451, %v451
      %v506 = vpack.c.bf16 %v452, %v452
      %v507 = vpack.c.bf16 %v453, %v453
      %v508 = vpack.c.bf16 %v454, %v454
      %v509 = vpack.c.bf16 %v455, %v455
      %v510 = vpack.c.bf16 %v456, %v456
      %v511 = vpack.c.bf16 %v457, %v457
      %v512 = vpack.c.bf16 %v458, %v458
      %v513 = vpack.c.bf16 %v459, %v459
      %v514 = vpack.c.bf16 %v460, %v460
      %v515 = vpack.c.bf16 %v461, %v461
      %v516 = vpack.c.bf16 %v462, %v462
      %v517 = vpack.c.bf16 %v463, %v463
      %v518 = vpack.c.bf16 %v464, %v464
      %v519 = vpack.c.bf16 %v465, %v465
      %v520 = vpack.c.bf16 %v466, %v466
      %v521 = vpack.c.bf16 %v467, %v467
      %v522 = vpack.c.bf16 %v468, %v468
      %v523 = vpack.c.bf16 %v469, %v469
      %v524 = vpack.c.bf16 %v470, %v470
      %vm525 = vsmask.f32 3328
      %vm526 = vsmask.f32 7440
      %vm527 = vmor %vm525, %vm526
      %v529 = vshrl.u32 %v471, 16
      %v531 = vrot.slane %v529, 4
      %v532 = vshll.u32 %v471, 16
      %v534 = vrot.slane %v532, 5
      %v535 = vor.u32 %v531, %v534
      %v536 = vrot.slane %v535, 4
      %v538 = vshll.u32 %v472, 16
      %v540 = vrot.slane %v538, 5
      %v541 = vsel %vm527, %v536, %v540
      %v542 = vshrl.u32 %v472, 16
      %v544 = vrot.slane %v542, 4
      %v545 = vor.u32 %v544, %v540
      %v546 = vrot.slane %v545, 4
      %v548 = vshll.u32 %v473, 16
      %v550 = vrot.slane %v548, 5
      %v551 = vsel %vm527, %v546, %v550
      %v553 = vshrl.u32 %v474, 16
      %v555 = vrot.slane %v553, 4
      %v556 = vshll.u32 %v474, 16
      %v558 = vrot.slane %v556, 5
      %v559 = vor.u32 %v555, %v558
      %v560 = vrot.slane %v559, 4
      %v562 = vshll.u32 %v475, 16
      %v564 = vrot.slane %v562, 5
      %v565 = vsel %vm527, %v560, %v564
      %v566 = vshrl.u32 %v475, 16
      %v568 = vrot.slane %v566, 4
      %v569 = vor.u32 %v568, %v564
      %v570 = vrot.slane %v569, 4
      %v572 = vshll.u32 %v476, 16
      %v574 = vrot.slane %v572, 5
      %v575 = vsel %vm527, %v570, %v574
      %v577 = vshrl.u32 %v477, 16
      %v579 = vrot.slane %v577, 4
      %v580 = vshll.u32 %v477, 16
      %v582 = vrot.slane %v580, 5
      %v583 = vor.u32 %v579, %v582
      %v584 = vrot.slane %v583, 4
      %v586 = vshll.u32 %v478, 16
      %v588 = vrot.slane %v586, 5
      %v589 = vsel %vm527, %v584, %v588
      %v590 = vshrl.u32 %v478, 16
      %v592 = vrot.slane %v590, 4
      %v593 = vor.u32 %v592, %v588
      %v594 = vrot.slane %v593, 4
      %v596 = vshll.u32 %v479, 16
      %v598 = vrot.slane %v596, 5
      %v599 = vsel %vm527, %v594, %v598
      %v601 = vshrl.u32 %v480, 16
      %v603 = vrot.slane %v601, 4
      %v604 = vshll.u32 %v480, 16
      %v606 = vrot.slane %v604, 5
      %v607 = vor.u32 %v603, %v606
      %v608 = vrot.slane %v607, 4
      %v610 = vshll.u32 %v481, 16
      %v612 = vrot.slane %v610, 5
      %v613 = vsel %vm527, %v608, %v612
      %v614 = vshrl.u32 %v481, 16
      %v616 = vrot.slane %v614, 4
      %v617 = vor.u32 %v616, %v612
      %v618 = vrot.slane %v617, 4
      %v620 = vshll.u32 %v482, 16
      %v622 = vrot.slane %v620, 5
      %v623 = vsel %vm527, %v618, %v622
      %v625 = vshrl.u32 %v483, 16
      %v627 = vrot.slane %v625, 4
      %v628 = vshll.u32 %v483, 16
      %v630 = vrot.slane %v628, 5
      %v631 = vor.u32 %v627, %v630
      %v632 = vrot.slane %v631, 4
      %v634 = vshll.u32 %v484, 16
      %v636 = vrot.slane %v634, 5
      %v637 = vsel %vm527, %v632, %v636
      %v638 = vshrl.u32 %v484, 16
      %v640 = vrot.slane %v638, 4
      %v641 = vor.u32 %v640, %v636
      %v642 = vrot.slane %v641, 4
      %v644 = vshll.u32 %v485, 16
      %v646 = vrot.slane %v644, 5
      %v647 = vsel %vm527, %v642, %v646
      %v649 = vshrl.u32 %v486, 16
      %v651 = vrot.slane %v649, 4
      %v652 = vshll.u32 %v486, 16
      %v654 = vrot.slane %v652, 5
      %v655 = vor.u32 %v651, %v654
      %v656 = vrot.slane %v655, 4
      %v658 = vshll.u32 %v487, 16
      %v660 = vrot.slane %v658, 5
      %v661 = vsel %vm527, %v656, %v660
      %v662 = vshrl.u32 %v487, 16
      %v664 = vrot.slane %v662, 4
      %v665 = vor.u32 %v664, %v660
      %v666 = vrot.slane %v665, 4
      %v668 = vshll.u32 %v488, 16
      %v670 = vrot.slane %v668, 5
      %v671 = vsel %vm527, %v666, %v670
      %v673 = vshrl.u32 %v489, 16
      %v675 = vrot.slane %v673, 4
      %v676 = vshll.u32 %v489, 16
      %v678 = vrot.slane %v676, 5
      %v679 = vor.u32 %v675, %v678
      %v680 = vrot.slane %v679, 4
      %v682 = vshll.u32 %v490, 16
      %v684 = vrot.slane %v682, 5
      %v685 = vsel %vm527, %v680, %v684
      %v686 = vshrl.u32 %v490, 16
      %v688 = vrot.slane %v686, 4
      %v689 = vor.u32 %v688, %v684
      %v690 = vrot.slane %v689, 4
      %v692 = vshll.u32 %v491, 16
      %v694 = vrot.slane %v692, 5
      %v695 = vsel %vm527, %v690, %v694
      %v697 = vshrl.u32 %v492, 16
      %v699 = vrot.slane %v697, 4
      %v700 = vshll.u32 %v492, 16
      %v702 = vrot.slane %v700, 5
      %v703 = vor.u32 %v699, %v702
      %v704 = vrot.slane %v703, 4
      %v706 = vshll.u32 %v493, 16
      %v708 = vrot.slane %v706, 5
      %v709 = vsel %vm527, %v704, %v708
      %v710 = vshrl.u32 %v493, 16
      %v712 = vrot.slane %v710, 4
      %v713 = vor.u32 %v712, %v708
      %v714 = vrot.slane %v713, 4
      %v716 = vshll.u32 %v494, 16
      %v718 = vrot.slane %v716, 5
      %v719 = vsel %vm527, %v714, %v718
      %v721 = vshrl.u32 %v495, 16
      %v723 = vrot.slane %v721, 4
      %v724 = vshll.u32 %v495, 16
      %v726 = vrot.slane %v724, 5
      %v727 = vor.u32 %v723, %v726
      %v728 = vrot.slane %v727, 4
      %v730 = vshll.u32 %v496, 16
      %v732 = vrot.slane %v730, 5
      %v733 = vsel %vm527, %v728, %v732
      %v734 = vshrl.u32 %v496, 16
      %v736 = vrot.slane %v734, 4
      %v737 = vor.u32 %v736, %v732
      %v738 = vrot.slane %v737, 4
      %v740 = vshll.u32 %v497, 16
      %v742 = vrot.slane %v740, 5
      %v743 = vsel %vm527, %v738, %v742
      %v745 = vshrl.u32 %v498, 16
      %v747 = vrot.slane %v745, 4
      %v748 = vshll.u32 %v498, 16
      %v750 = vrot.slane %v748, 5
      %v751 = vor.u32 %v747, %v750
      %v752 = vrot.slane %v751, 4
      %v754 = vshll.u32 %v499, 16
      %v756 = vrot.slane %v754, 5
      %v757 = vsel %vm527, %v752, %v756
      %v758 = vshrl.u32 %v499, 16
      %v760 = vrot.slane %v758, 4
      %v761 = vor.u32 %v760, %v756
      %v762 = vrot.slane %v761, 4
      %v764 = vshll.u32 %v500, 16
      %v766 = vrot.slane %v764, 5
      %v767 = vsel %vm527, %v762, %v766
      %v769 = vshrl.u32 %v501, 16
      %v771 = vrot.slane %v769, 4
      %v772 = vshll.u32 %v501, 16
      %v774 = vrot.slane %v772, 5
      %v775 = vor.u32 %v771, %v774
      %v776 = vrot.slane %v775, 4
      %v778 = vshll.u32 %v502, 16
      %v780 = vrot.slane %v778, 5
      %v781 = vsel %vm527, %v776, %v780
      %v782 = vshrl.u32 %v502, 16
      %v784 = vrot.slane %v782, 4
      %v785 = vor.u32 %v784, %v780
      %v786 = vrot.slane %v785, 4
      %v788 = vshll.u32 %v503, 16
      %v790 = vrot.slane %v788, 5
      %v791 = vsel %vm527, %v786, %v790
      %v793 = vshrl.u32 %v504, 16
      %v795 = vrot.slane %v793, 4
      %v796 = vshll.u32 %v504, 16
      %v798 = vrot.slane %v796, 5
      %v799 = vor.u32 %v795, %v798
      %v800 = vrot.slane %v799, 4
      %v802 = vshll.u32 %v505, 16
      %v804 = vrot.slane %v802, 5
      %v805 = vsel %vm527, %v800, %v804
      %v806 = vshrl.u32 %v505, 16
      %v808 = vrot.slane %v806, 4
      %v809 = vor.u32 %v808, %v804
      %v810 = vrot.slane %v809, 4
      %v812 = vshll.u32 %v506, 16
      %v814 = vrot.slane %v812, 5
      %v815 = vsel %vm527, %v810, %v814
      %v817 = vshrl.u32 %v507, 16
      %v819 = vrot.slane %v817, 4
      %v820 = vshll.u32 %v507, 16
      %v822 = vrot.slane %v820, 5
      %v823 = vor.u32 %v819, %v822
      %v824 = vrot.slane %v823, 4
      %v826 = vshll.u32 %v508, 16
      %v828 = vrot.slane %v826, 5
      %v829 = vsel %vm527, %v824, %v828
      %v830 = vshrl.u32 %v508, 16
      %v832 = vrot.slane %v830, 4
      %v833 = vor.u32 %v832, %v828
      %v834 = vrot.slane %v833, 4
      %v836 = vshll.u32 %v509, 16
      %v838 = vrot.slane %v836, 5
      %v839 = vsel %vm527, %v834, %v838
      %v841 = vshrl.u32 %v510, 16
      %v843 = vrot.slane %v841, 4
      %v844 = vshll.u32 %v510, 16
      %v846 = vrot.slane %v844, 5
      %v847 = vor.u32 %v843, %v846
      %v848 = vrot.slane %v847, 4
      %v850 = vshll.u32 %v511, 16
      %v852 = vrot.slane %v850, 5
      %v853 = vsel %vm527, %v848, %v852
      %v854 = vshrl.u32 %v511, 16
      %v856 = vrot.slane %v854, 4
      %v857 = vor.u32 %v856, %v852
      %v858 = vrot.slane %v857, 4
      %v860 = vshll.u32 %v512, 16
      %v862 = vrot.slane %v860, 5
      %v863 = vsel %vm527, %v858, %v862
      %v865 = vshrl.u32 %v513, 16
      %v867 = vrot.slane %v865, 4
      %v868 = vshll.u32 %v513, 16
      %v870 = vrot.slane %v868, 5
      %v871 = vor.u32 %v867, %v870
      %v872 = vrot.slane %v871, 4
      %v874 = vshll.u32 %v514, 16
      %v876 = vrot.slane %v874, 5
      %v877 = vsel %vm527, %v872, %v876
      %v878 = vshrl.u32 %v514, 16
      %v880 = vrot.slane %v878, 4
      %v881 = vor.u32 %v880, %v876
      %v882 = vrot.slane %v881, 4
      %v884 = vshll.u32 %v515, 16
      %v886 = vrot.slane %v884, 5
      %v887 = vsel %vm527, %v882, %v886
      %v889 = vshrl.u32 %v516, 16
      %v891 = vrot.slane %v889, 4
      %v892 = vshll.u32 %v516, 16
      %v894 = vrot.slane %v892, 5
      %v895 = vor.u32 %v891, %v894
      %v896 = vrot.slane %v895, 4
      %v898 = vshll.u32 %v517, 16
      %v900 = vrot.slane %v898, 5
      %v901 = vsel %vm527, %v896, %v900
      %v902 = vshrl.u32 %v517, 16
      %v904 = vrot.slane %v902, 4
      %v905 = vor.u32 %v904, %v900
      %v906 = vrot.slane %v905, 4
      %v908 = vshll.u32 %v518, 16
      %v910 = vrot.slane %v908, 5
      %v911 = vsel %vm527, %v906, %v910
      %vm960 = vcmask 1042432
      %vm961 = vcmask 1046532
      %vm962 = vmor %vm960, %vm961
      %v963 = vrot.slane %v471, 5
      %v964 = vrot.slane %v963, 4
      %v965 = vrot.slane %v472, 5
      %v966 = vsel %vm962, %v964, %v965
      %v967 = vrot.slane %v965, 4
      %v968 = vrot.slane %v473, 5
      %v969 = vsel %vm962, %v967, %v968
      %v970 = vrot.slane %v474, 5
      %v971 = vrot.slane %v970, 4
      %v972 = vrot.slane %v475, 5
      %v973 = vsel %vm962, %v971, %v972
      %v974 = vrot.slane %v972, 4
      %v975 = vrot.slane %v476, 5
      %v976 = vsel %vm962, %v974, %v975
      %v977 = vrot.slane %v477, 5
      %v978 = vrot.slane %v977, 4
      %v979 = vrot.slane %v478, 5
      %v980 = vsel %vm962, %v978, %v979
      %v981 = vrot.slane %v979, 4
      %v982 = vrot.slane %v479, 5
      %v983 = vsel %vm962, %v981, %v982
      %v984 = vrot.slane %v480, 5
      %v985 = vrot.slane %v984, 4
      %v986 = vrot.slane %v481, 5
      %v987 = vsel %vm962, %v985, %v986
      %v988 = vrot.slane %v986, 4
      %v989 = vrot.slane %v482, 5
      %v990 = vsel %vm962, %v988, %v989
      %v991 = vrot.slane %v483, 5
      %v992 = vrot.slane %v991, 4
      %v993 = vrot.slane %v484, 5
      %v994 = vsel %vm962, %v992, %v993
      %v995 = vrot.slane %v993, 4
      %v996 = vrot.slane %v485, 5
      %v997 = vsel %vm962, %v995, %v996
      %v998 = vrot.slane %v486, 5
      %v999 = vrot.slane %v998, 4
      %v1000 = vrot.slane %v487, 5
      %v1001 = vsel %vm962, %v999, %v1000
      %v1002 = vrot.slane %v1000, 4
      %v1003 = vrot.slane %v488, 5
      %v1004 = vsel %vm962, %v1002, %v1003
      %v1005 = vrot.slane %v489, 5
      %v1006 = vrot.slane %v1005, 4
      %v1007 = vrot.slane %v490, 5
      %v1008 = vsel %vm962, %v1006, %v1007
      %v1009 = vrot.slane %v1007, 4
      %v1010 = vrot.slane %v491, 5
      %v1011 = vsel %vm962, %v1009, %v1010
      %v1012 = vrot.slane %v492, 5
      %v1013 = vrot.slane %v1012, 4
      %v1014 = vrot.slane %v493, 5
      %v1015 = vsel %vm962, %v1013, %v1014
      %v1016 = vrot.slane %v1014, 4
      %v1017 = vrot.slane %v494, 5
      %v1018 = vsel %vm962, %v1016, %v1017
      %v1019 = vrot.slane %v495, 5
      %v1020 = vrot.slane %v1019, 4
      %v1021 = vrot.slane %v496, 5
      %v1022 = vsel %vm962, %v1020, %v1021
      %v1023 = vrot.slane %v1021, 4
      %v1024 = vrot.slane %v497, 5
      %v1025 = vsel %vm962, %v1023, %v1024
      %v1026 = vrot.slane %v498, 5
      %v1027 = vrot.slane %v1026, 4
      %v1028 = vrot.slane %v499, 5
      %v1029 = vsel %vm962, %v1027, %v1028
      %v1030 = vrot.slane %v1028, 4
      %v1031 = vrot.slane %v500, 5
      %v1032 = vsel %vm962, %v1030, %v1031
      %v1033 = vrot.slane %v501, 5
      %v1034 = vrot.slane %v1033, 4
      %v1035 = vrot.slane %v502, 5
      %v1036 = vsel %vm962, %v1034, %v1035
      %v1037 = vrot.slane %v1035, 4
      %v1038 = vrot.slane %v503, 5
      %v1039 = vsel %vm962, %v1037, %v1038
      %v1040 = vrot.slane %v504, 5
      %v1041 = vrot.slane %v1040, 4
      %v1042 = vrot.slane %v505, 5
      %v1043 = vsel %vm962, %v1041, %v1042
      %v1044 = vrot.slane %v1042, 4
      %v1045 = vrot.slane %v506, 5
      %v1046 = vsel %vm962, %v1044, %v1045
      %v1047 = vrot.slane %v507, 5
      %v1048 = vrot.slane %v1047, 4
      %v1049 = vrot.slane %v508, 5
      %v1050 = vsel %vm962, %v1048, %v1049
      %v1051 = vrot.slane %v1049, 4
      %v1052 = vrot.slane %v509, 5
      %v1053 = vsel %vm962, %v1051, %v1052
      %v1054 = vrot.slane %v510, 5
      %v1055 = vrot.slane %v1054, 4
      %v1056 = vrot.slane %v511, 5
      %v1057 = vsel %vm962, %v1055, %v1056
      %v1058 = vrot.slane %v1056, 4
      %v1059 = vrot.slane %v512, 5
      %v1060 = vsel %vm962, %v1058, %v1059
      %v1061 = vrot.slane %v513, 5
      %v1062 = vrot.slane %v1061, 4
      %v1063 = vrot.slane %v514, 5
      %v1064 = vsel %vm962, %v1062, %v1063
      %v1065 = vrot.slane %v1063, 4
      %v1066 = vrot.slane %v515, 5
      %v1067 = vsel %vm962, %v1065, %v1066
      %v1068 = vrot.slane %v516, 5
      %v1069 = vrot.slane %v1068, 4
      %v1070 = vrot.slane %v517, 5
      %v1071 = vsel %vm962, %v1069, %v1070
      %v1072 = vrot.slane %v1070, 4
      %v1073 = vrot.slane %v518, 5
      %v1074 = vsel %vm962, %v1072, %v1073
      %v1076 = vshrl.u32 %v519, 16
      %v1078 = vrot.slane %v1076, 4
      %v1079 = vshll.u32 %v519, 16
      %v1081 = vrot.slane %v1079, 5
      %v1082 = vor.u32 %v1078, %v1081
      %v1083 = vrot.slane %v1082, 4
      %v1085 = vshll.u32 %v520, 16
      %v1087 = vrot.slane %v1085, 5
      %v1088 = vsel %vm527, %v1083, %v1087
      %v1089 = vshrl.u32 %v520, 16
      %v1091 = vrot.slane %v1089, 4
      %v1092 = vor.u32 %v1091, %v1087
      %v1093 = vrot.slane %v1092, 4
      %v1095 = vshll.u32 %v521, 16
      %v1097 = vrot.slane %v1095, 5
      %v1098 = vsel %vm527, %v1093, %v1097
      %v1102 = vrot.slane %v519, 5
      %v1103 = vrot.slane %v1102, 4
      %v1104 = vrot.slane %v520, 5
      %v1105 = vsel %vm962, %v1103, %v1104
      %v1106 = vrot.slane %v1104, 4
      %v1107 = vrot.slane %v521, 5
      %v1108 = vsel %vm962, %v1106, %v1107
      %v1110 = vshrl.u32 %v522, 16
      %v1112 = vrot.slane %v1110, 4
      %v1113 = vshll.u32 %v522, 16
      %v1115 = vrot.slane %v1113, 5
      %v1116 = vor.u32 %v1112, %v1115
      %v1117 = vrot.slane %v1116, 4
      %v1119 = vshll.u32 %v523, 16
      %v1121 = vrot.slane %v1119, 5
      %v1122 = vsel %vm527, %v1117, %v1121
      %v1123 = vshrl.u32 %v523, 16
      %v1125 = vrot.slane %v1123, 4
      %v1126 = vor.u32 %v1125, %v1121
      %v1127 = vrot.slane %v1126, 4
      %v1129 = vshll.u32 %v524, 16
      %v1131 = vrot.slane %v1129, 5
      %v1132 = vsel %vm527, %v1127, %v1131
      %v1136 = vrot.slane %v522, 5
      %v1137 = vrot.slane %v1136, 4
      %v1138 = vrot.slane %v523, 5
      %v1139 = vsel %vm962, %v1137, %v1138
      %v1140 = vrot.slane %v1138, 4
      %v1141 = vrot.slane %v524, 5
      %v1142 = vsel %vm962, %v1140, %v1141
      %v1143 = vunpack.c.l.b16 %v471
      %v1144 = vunpack.c.l.b16 %v472
      %v1145 = vunpack.c.l.b16 %v474
      %v1146 = vunpack.c.l.b16 %v475
      %v1147 = vunpack.c.l.b16 %v477
      %v1148 = vunpack.c.l.b16 %v478
      %v1149 = vunpack.c.l.b16 %v480
      %v1150 = vunpack.c.l.b16 %v481
      %v1151 = vunpack.c.l.b16 %v483
      %v1152 = vunpack.c.l.b16 %v484
      %v1153 = vunpack.c.l.b16 %v486
      %v1154 = vunpack.c.l.b16 %v487
      %v1155 = vunpack.c.l.b16 %v489
      %v1156 = vunpack.c.l.b16 %v490
      %v1157 = vunpack.c.l.b16 %v492
      %v1158 = vunpack.c.l.b16 %v493
      %v1159 = vunpack.c.l.b16 %v495
      %v1160 = vunpack.c.l.b16 %v496
      %v1161 = vunpack.c.l.b16 %v498
      %v1162 = vunpack.c.l.b16 %v499
      %v1163 = vunpack.c.l.b16 %v501
      %v1164 = vunpack.c.l.b16 %v502
      %v1165 = vunpack.c.l.b16 %v504
      %v1166 = vunpack.c.l.b16 %v505
      %v1167 = vunpack.c.l.b16 %v507
      %v1168 = vunpack.c.l.b16 %v508
      %v1169 = vunpack.c.l.b16 %v510
      %v1170 = vunpack.c.l.b16 %v511
      %v1171 = vunpack.c.l.b16 %v513
      %v1172 = vunpack.c.l.b16 %v514
      %v1173 = vunpack.c.l.b16 %v516
      %v1174 = vunpack.c.l.b16 %v517
      %v1175 = vpack.c.b16 %v1144, %v1143
      %v1176 = vpack.c.b16 %v1146, %v1145
      %v1177 = vpack.c.b16 %v1148, %v1147
      %v1178 = vpack.c.b16 %v1150, %v1149
      %v1179 = vpack.c.b16 %v1152, %v1151
      %v1180 = vpack.c.b16 %v1154, %v1153
      %v1181 = vpack.c.b16 %v1156, %v1155
      %v1182 = vpack.c.b16 %v1158, %v1157
      %v1183 = vpack.c.b16 %v1160, %v1159
      %v1184 = vpack.c.b16 %v1162, %v1161
      %v1185 = vpack.c.b16 %v1164, %v1163
      %v1186 = vpack.c.b16 %v1166, %v1165
      %v1187 = vpack.c.b16 %v1168, %v1167
      %v1188 = vpack.c.b16 %v1170, %v1169
      %v1189 = vpack.c.b16 %v1172, %v1171
      %v1190 = vpack.c.b16 %v1174, %v1173
      %v1207 = vunpack.c.l.b16 %v541
      %v1208 = vunpack.c.l.b16 %v551
      %v1209 = vunpack.c.l.b16 %v565
      %v1210 = vunpack.c.l.b16 %v575
      %v1211 = vunpack.c.l.b16 %v589
      %v1212 = vunpack.c.l.b16 %v599
      %v1213 = vunpack.c.l.b16 %v613
      %v1214 = vunpack.c.l.b16 %v623
      %v1215 = vunpack.c.l.b16 %v637
      %v1216 = vunpack.c.l.b16 %v647
      %v1217 = vunpack.c.l.b16 %v661
      %v1218 = vunpack.c.l.b16 %v671
      %v1219 = vunpack.c.l.b16 %v685
      %v1220 = vunpack.c.l.b16 %v695
      %v1221 = vunpack.c.l.b16 %v709
      %v1222 = vunpack.c.l.b16 %v719
      %v1223 = vunpack.c.l.b16 %v733
      %v1224 = vunpack.c.l.b16 %v743
      %v1225 = vunpack.c.l.b16 %v757
      %v1226 = vunpack.c.l.b16 %v767
      %v1227 = vunpack.c.l.b16 %v781
      %v1228 = vunpack.c.l.b16 %v791
      %v1229 = vunpack.c.l.b16 %v805
      %v1230 = vunpack.c.l.b16 %v815
      %v1231 = vunpack.c.l.b16 %v829
      %v1232 = vunpack.c.l.b16 %v839
      %v1233 = vunpack.c.l.b16 %v853
      %v1234 = vunpack.c.l.b16 %v863
      %v1235 = vunpack.c.l.b16 %v877
      %v1236 = vunpack.c.l.b16 %v887
      %v1237 = vunpack.c.l.b16 %v901
      %v1238 = vunpack.c.l.b16 %v911
      %v1239 = vpack.c.b16 %v1208, %v1207
      %v1240 = vpack.c.b16 %v1210, %v1209
      %v1241 = vpack.c.b16 %v1212, %v1211
      %v1242 = vpack.c.b16 %v1214, %v1213
      %v1243 = vpack.c.b16 %v1216, %v1215
      %v1244 = vpack.c.b16 %v1218, %v1217
      %v1245 = vpack.c.b16 %v1220, %v1219
      %v1246 = vpack.c.b16 %v1222, %v1221
      %v1247 = vpack.c.b16 %v1224, %v1223
      %v1248 = vpack.c.b16 %v1226, %v1225
      %v1249 = vpack.c.b16 %v1228, %v1227
      %v1250 = vpack.c.b16 %v1230, %v1229
      %v1251 = vpack.c.b16 %v1232, %v1231
      %v1252 = vpack.c.b16 %v1234, %v1233
      %v1253 = vpack.c.b16 %v1236, %v1235
      %v1254 = vpack.c.b16 %v1238, %v1237
      %v1271 = vunpack.c.l.b16 %v966
      %v1272 = vunpack.c.l.b16 %v969
      %v1273 = vunpack.c.l.b16 %v973
      %v1274 = vunpack.c.l.b16 %v976
      %v1275 = vunpack.c.l.b16 %v980
      %v1276 = vunpack.c.l.b16 %v983
      %v1277 = vunpack.c.l.b16 %v987
      %v1278 = vunpack.c.l.b16 %v990
      %v1279 = vunpack.c.l.b16 %v994
      %v1280 = vunpack.c.l.b16 %v997
      %v1281 = vunpack.c.l.b16 %v1001
      %v1282 = vunpack.c.l.b16 %v1004
      %v1283 = vunpack.c.l.b16 %v1008
      %v1284 = vunpack.c.l.b16 %v1011
      %v1285 = vunpack.c.l.b16 %v1015
      %v1286 = vunpack.c.l.b16 %v1018
      %v1287 = vunpack.c.l.b16 %v1022
      %v1288 = vunpack.c.l.b16 %v1025
      %v1289 = vunpack.c.l.b16 %v1029
      %v1290 = vunpack.c.l.b16 %v1032
      %v1291 = vunpack.c.l.b16 %v1036
      %v1292 = vunpack.c.l.b16 %v1039
      %v1293 = vunpack.c.l.b16 %v1043
      %v1294 = vunpack.c.l.b16 %v1046
      %v1295 = vunpack.c.l.b16 %v1050
      %v1296 = vunpack.c.l.b16 %v1053
      %v1297 = vunpack.c.l.b16 %v1057
      %v1298 = vunpack.c.l.b16 %v1060
      %v1299 = vunpack.c.l.b16 %v1064
      %v1300 = vunpack.c.l.b16 %v1067
      %v1301 = vunpack.c.l.b16 %v1071
      %v1302 = vunpack.c.l.b16 %v1074
      %v1303 = vpack.c.b16 %v1272, %v1271
      %v1304 = vpack.c.b16 %v1274, %v1273
      %v1305 = vpack.c.b16 %v1276, %v1275
      %v1306 = vpack.c.b16 %v1278, %v1277
      %v1307 = vpack.c.b16 %v1280, %v1279
      %v1308 = vpack.c.b16 %v1282, %v1281
      %v1309 = vpack.c.b16 %v1284, %v1283
      %v1310 = vpack.c.b16 %v1286, %v1285
      %v1311 = vpack.c.b16 %v1288, %v1287
      %v1312 = vpack.c.b16 %v1290, %v1289
      %v1313 = vpack.c.b16 %v1292, %v1291
      %v1314 = vpack.c.b16 %v1294, %v1293
      %v1315 = vpack.c.b16 %v1296, %v1295
      %v1316 = vpack.c.b16 %v1298, %v1297
      %v1317 = vpack.c.b16 %v1300, %v1299
      %v1318 = vpack.c.b16 %v1302, %v1301
      %v1335 = vunpack.c.l.b16 %v519
      %v1336 = vunpack.c.l.b16 %v520
      %v1337 = vpack.c.b16 %v1336, %v1335
      %v1339 = vunpack.c.l.b16 %v1088
      %v1340 = vunpack.c.l.b16 %v1098
      %v1341 = vpack.c.b16 %v1340, %v1339
      %v1343 = vunpack.c.l.b16 %v1105
      %v1344 = vunpack.c.l.b16 %v1108
      %v1345 = vpack.c.b16 %v1344, %v1343
      %v1347 = vunpack.c.l.b16 %v522
      %v1348 = vunpack.c.l.b16 %v523
      %v1349 = vpack.c.b16 %v1348, %v1347
      %v1351 = vunpack.c.l.b16 %v1122
      %v1352 = vunpack.c.l.b16 %v1132
      %v1353 = vpack.c.b16 %v1352, %v1351
      %v1355 = vunpack.c.l.b16 %v1139
      %v1356 = vunpack.c.l.b16 %v1142
      %v1357 = vpack.c.b16 %v1356, %v1355
      %v1359 = vld [vmem:[%s2] sm:$0xf]
      %v1360 = vld [vmem:[%s2 + $0x4] sm:$0xf]
      %v1361 = vld [vmem:[%s2 + $0x8] sm:$0xf]
      %v1362 = vld [vmem:[%s2 + $0xc] sm:$0xf]
      %v1363 = vld [vmem:[%s2 + $0x10] sm:$0xf]
      %v1364 = vld [vmem:[%s2 + $0x14] sm:$0xf]
      %v1365 = vld [vmem:[%s2 + $0x18] sm:$0xf]
      %v1366 = vld [vmem:[%s2 + $0x1c] sm:$0xf]
      %v1367 = vld [vmem:[%s2 + $0x20] sm:$0xf]
      %v1368 = vld [vmem:[%s2 + $0x24] sm:$0xf]
      %v1369 = vld [vmem:[%s2 + $0x28] sm:$0xf]
      %v1370 = vld [vmem:[%s2 + $0x2c] sm:$0xf]
      %v1371 = vld [vmem:[%s2 + $0x30] sm:$0xf]
      %v1372 = vld [vmem:[%s2 + $0x34] sm:$0xf]
      %v1373 = vld [vmem:[%s2 + $0x38] sm:$0xf]
      %v1374 = vld [vmem:[%s2 + $0x3c] sm:$0xf]
      %v1375 = vld [vmem:[%s2 + $0x40] sm:$0xf]
      %v1376 = vld [vmem:[%s2 + $0x44] sm:$0xf]
      %v1377 = vld [vmem:[%s2 + $0x48] sm:$0xf]
      %v1378 = vld [vmem:[%s2 + $0x4c] sm:$0xf]
      %v1379 = vld [vmem:[%s2 + $0x50] sm:$0xf]
      %v1380 = vld [vmem:[%s2 + $0x54] sm:$0xf]
      %v1381 = vld [vmem:[%s2 + $0x58] sm:$0xf]
      %v1382 = vld [vmem:[%s2 + $0x5c] sm:$0xf]
      %v1383 = vld [vmem:[%s2 + $0x60] sm:$0xf]
      %v1384 = vld [vmem:[%s2 + $0x64] sm:$0xf]
      %v1385 = vld [vmem:[%s2 + $0x68] sm:$0xf]
      %v1386 = vld [vmem:[%s2 + $0x6c] sm:$0xf]
      %v1387 = vld [vmem:[%s2 + $0x70] sm:$0xf]
      %v1388 = vld [vmem:[%s2 + $0x74] sm:$0xf]
      %v1389 = vld [vmem:[%s2 + $0x78] sm:$0xf]
      %v1390 = vld [vmem:[%s2 + $0x7c] sm:$0xf]
      %v1391 = vld [vmem:[%s2 + $0x80] sm:$0xf]
      %v1392 = vld [vmem:[%s2 + $0x84] sm:$0xf]
      %v1393 = vld [vmem:[%s2 + $0x88] sm:$0xf]
      %v1394 = vld [vmem:[%s2 + $0x8c] sm:$0xf]
      %v1395 = vld [vmem:[%s2 + $0x90] sm:$0xf]
      %v1396 = vld [vmem:[%s2 + $0x94] sm:$0xf]
      %v1397 = vld [vmem:[%s2 + $0x98] sm:$0xf]
      %v1398 = vld [vmem:[%s2 + $0x9c] sm:$0xf]
      %v1399 = vld [vmem:[%s2 + $0xa0] sm:$0xf]
      %v1400 = vld [vmem:[%s2 + $0xa4] sm:$0xf]
      %v1401 = vld [vmem:[%s2 + $0xa8] sm:$0xf]
      %v1402 = vld [vmem:[%s2 + $0xac] sm:$0xf]
      %v1403 = vld [vmem:[%s2 + $0xb0] sm:$0xf]
      %v1404 = vld [vmem:[%s2 + $0xb4] sm:$0xf]
      %v1405 = vld [vmem:[%s2 + $0xb8] sm:$0xf]
      %v1406 = vld [vmem:[%s2 + $0xbc] sm:$0xf]
      %v1407 = vld [vmem:[%s2 + $0xc0] sm:$0xf]
      %v1408 = vld [vmem:[%s2 + $0xc4] sm:$0xf]
      %v1409 = vld [vmem:[%s2 + $0xc8] sm:$0xf]
      %v1410 = vld [vmem:[%s2 + $0xcc] sm:$0xf]
      %v1411 = vld [vmem:[%s2 + $0xd0] sm:$0xf]
      %v1412 = vld [vmem:[%s2 + $0xd4] sm:$0xf]
      %v1413 = vld [vmem:[%s2 + $0xd8] sm:$0xf]
      %v1414 = vld [vmem:[%s2 + $0xdc] sm:$0xf]
      %v1415 = vld [vmem:[%s2 + $0xe0] sm:$0xf]
      %v1416 = vld [vmem:[%s2 + $0xe4] sm:$0xf]
      %v1417 = vld [vmem:[%s2 + $0xe8] sm:$0xf]
      %v1418 = vld [vmem:[%s2 + $0xec] sm:$0xf]
      %v1419 = vld [vmem:[%s2 + $0xf0] sm:$0xf]
      %v1420 = vld [vmem:[%s2 + $0xf4] sm:$0xf]
      %v1421 = vld [vmem:[%s2 + $0xf8] sm:$0xf]
      %v1422 = vld [vmem:[%s2 + $0xfc] sm:$0xf]
      %v1423 = vld [vmem:[%s2 + $0x100] sm:$0xf]
      %v1424 = vld [vmem:[%s2 + $0x104] sm:$0xf]
      %v1425 = vld [vmem:[%s2 + $0x108] sm:$0xf]
      %v1426 = vld [vmem:[%s2 + $0x10c] sm:$0xf]
      %v1427 = vld [vmem:[%s2 + $0x110] sm:$0xf]
      %v1428 = vld [vmem:[%s2 + $0x114] sm:$0xf]
      %v1429 = vld [vmem:[%s2 + $0x118] sm:$0xf]
      %v1430 = vld [vmem:[%s2 + $0x11c] sm:$0xf]
      %v1431 = vld [vmem:[%s2 + $0x120] sm:$0xf]
      %v1432 = vld [vmem:[%s2 + $0x124] sm:$0xf]
      %v1433 = vld [vmem:[%s2 + $0x128] sm:$0xf]
      %v1434 = vld [vmem:[%s2 + $0x12c] sm:$0xf]
      %v1435 = vld [vmem:[%s2 + $0x130] sm:$0xf]
      %v1436 = vld [vmem:[%s2 + $0x134] sm:$0xf]
      %v1437 = vld [vmem:[%s2 + $0x138] sm:$0xf]
      %v1438 = vld [vmem:[%s2 + $0x13c] sm:$0xf]
      %v1439 = vld [vmem:[%s2 + $0x140] sm:$0xf]
      %v1440 = vld [vmem:[%s2 + $0x144] sm:$0xf]
      %v1441 = vld [vmem:[%s2 + $0x148] sm:$0xf]
      %v1442 = vld [vmem:[%s2 + $0x14c] sm:$0xf]
      %v1443 = vld [vmem:[%s2 + $0x150] sm:$0xf]
      %v1444 = vld [vmem:[%s2 + $0x154] sm:$0xf]
      %v1445 = vld [vmem:[%s2 + $0x158] sm:$0xf]
      %v1446 = vld [vmem:[%s2 + $0x15c] sm:$0xf]
      %v1447 = vld [vmem:[%s2 + $0x160] sm:$0xf]
      %v1448 = vld [vmem:[%s2 + $0x164] sm:$0xf]
      %v1449 = vld [vmem:[%s2 + $0x168] sm:$0xf]
      %v1450 = vld [vmem:[%s2 + $0x16c] sm:$0xf]
      %v1451 = vld [vmem:[%s2 + $0x170] sm:$0xf]
      %v1452 = vld [vmem:[%s2 + $0x174] sm:$0xf]
      %v1453 = vld [vmem:[%s2 + $0x178] sm:$0xf]
      %v1454 = vld [vmem:[%s2 + $0x17c] sm:$0xf]
      %v1455 = vld [vmem:[%s2 + $0x180] sm:$0xf]
      %v1456 = vld [vmem:[%s2 + $0x184] sm:$0xf]
      %v1457 = vld [vmem:[%s2 + $0x188] sm:$0xf]
      %v1458 = vld [vmem:[%s2 + $0x18c] sm:$0xf]
      %v1459 = vld [vmem:[%s2 + $0x190] sm:$0xf]
      %v1460 = vld [vmem:[%s2 + $0x194] sm:$0xf]
      %v1461 = vld [vmem:[%s2 + $0x198] sm:$0xf]
      %v1462 = vld [vmem:[%s2 + $0x19c] sm:$0xf]
      %v1463 = vld [vmem:[%s2 + $0x1a0] sm:$0xf]
      %v1464 = vld [vmem:[%s2 + $0x1a4] sm:$0xf]
      %v1465 = vld [vmem:[%s2 + $0x1a8] sm:$0xf]
      %v1466 = vld [vmem:[%s2 + $0x1ac] sm:$0xf]
      %v1467 = vld [vmem:[%s2 + $0x1b0] sm:$0xf]
      %v1468 = vld [vmem:[%s2 + $0x1b4] sm:$0xf]
      %v1469 = vld [vmem:[%s2 + $0x1b8] sm:$0xf]
      %v1470 = vld [vmem:[%s2 + $0x1bc] sm:$0xf]
      %v1471 = vld [vmem:[%s2 + $0x1c0] sm:$0xf]
      %v1472 = vld [vmem:[%s2 + $0x1c4] sm:$0xf]
      %v1473 = vld [vmem:[%s2 + $0x1c8] sm:$0xf]
      %v1474 = vld [vmem:[%s2 + $0x1cc] sm:$0xf]
      %v1475 = vld [vmem:[%s2 + $0x1d0] sm:$0xf]
      %v1476 = vld [vmem:[%s2 + $0x1d4] sm:$0xf]
      %v1477 = vld [vmem:[%s2 + $0x1d8] sm:$0xf]
      %v1478 = vld [vmem:[%s2 + $0x1dc] sm:$0xf]
      %v1479 = vld [vmem:[%s2 + $0x1e0] sm:$0xf]
      %v1480 = vld [vmem:[%s2 + $0x1e4] sm:$0xf]
      %v1481 = vld [vmem:[%s2 + $0x1e8] sm:$0xf]
      %v1482 = vld [vmem:[%s2 + $0x1ec] sm:$0xf]
      %v1483 = vld [vmem:[%s2 + $0x1f0] sm:$0xf]
      %v1484 = vld [vmem:[%s2 + $0x1f4] sm:$0xf]
      %v1485 = vld [vmem:[%s2 + $0x1f8] sm:$0xf]
      %v1486 = vld [vmem:[%s2 + $0x1fc] sm:$0xf]
      %v1487 = vld [vmem:[%s2 + $0x200] sm:$0xf]
      %v1488 = vld [vmem:[%s2 + $0x204] sm:$0xf]
      %v1489 = vld [vmem:[%s2 + $0x208] sm:$0xf]
      %v1490 = vld [vmem:[%s2 + $0x20c] sm:$0xf]
      %v1491 = vld [vmem:[%s2 + $0x210] sm:$0xf]
      %v1492 = vld [vmem:[%s2 + $0x214] sm:$0xf]
      %v1493 = vld [vmem:[%s2 + $0x218] sm:$0xf]
      %v1494 = vld [vmem:[%s2 + $0x21c] sm:$0xf]
      %v1495 = vld [vmem:[%s2 + $0x220] sm:$0xf]
      %v1496 = vld [vmem:[%s2 + $0x224] sm:$0xf]
      %v1497 = vld [vmem:[%s2 + $0x228] sm:$0xf]
      %v1498 = vld [vmem:[%s2 + $0x22c] sm:$0xf]
      %v1499 = vld [vmem:[%s2 + $0x230] sm:$0xf]
      %v1500 = vld [vmem:[%s2 + $0x234] sm:$0xf]
      %v1501 = vld [vmem:[%s2 + $0x238] sm:$0xf]
      %v1502 = vld [vmem:[%s2 + $0x23c] sm:$0xf]
      %v1647 = vunpack.c.l.b16 %v1359
      %v1648 = vunpack.c.l.b16 %v1360
      %v1649 = vunpack.c.l.b16 %v1361
      %v1650 = vunpack.c.l.b16 %v1362
      %v1651 = vunpack.c.l.b16 %v1363
      %v1652 = vunpack.c.l.b16 %v1364
      %v1653 = vunpack.c.l.b16 %v1365
      %v1654 = vunpack.c.l.b16 %v1366
      %v1655 = vunpack.c.l.b16 %v1367
      %v1656 = vunpack.c.l.b16 %v1368
      %v1657 = vunpack.c.l.b16 %v1369
      %v1658 = vunpack.c.l.b16 %v1370
      %v1659 = vunpack.c.l.b16 %v1371
      %v1660 = vunpack.c.l.b16 %v1372
      %v1661 = vunpack.c.l.b16 %v1373
      %v1662 = vunpack.c.l.b16 %v1374
      %v1663 = vunpack.c.l.b16 %v1375
      %v1664 = vunpack.c.l.b16 %v1376
      %v1665 = vunpack.c.l.b16 %v1377
      %v1666 = vunpack.c.l.b16 %v1378
      %v1667 = vunpack.c.l.b16 %v1379
      %v1668 = vunpack.c.l.b16 %v1380
      %v1669 = vunpack.c.l.b16 %v1381
      %v1670 = vunpack.c.l.b16 %v1382
      %v1671 = vunpack.c.l.b16 %v1383
      %v1672 = vunpack.c.l.b16 %v1384
      %v1673 = vunpack.c.l.b16 %v1385
      %v1674 = vunpack.c.l.b16 %v1386
      %v1675 = vunpack.c.l.b16 %v1387
      %v1676 = vunpack.c.l.b16 %v1388
      %v1677 = vunpack.c.l.b16 %v1389
      %v1678 = vunpack.c.l.b16 %v1390
      %v1679 = vunpack.c.l.b16 %v1391
      %v1680 = vunpack.c.l.b16 %v1392
      %v1681 = vunpack.c.l.b16 %v1393
      %v1682 = vunpack.c.l.b16 %v1394
      %v1683 = vunpack.c.l.b16 %v1395
      %v1684 = vunpack.c.l.b16 %v1396
      %v1685 = vunpack.c.l.b16 %v1397
      %v1686 = vunpack.c.l.b16 %v1398
      %v1687 = vunpack.c.l.b16 %v1399
      %v1688 = vunpack.c.l.b16 %v1400
      %v1689 = vunpack.c.l.b16 %v1401
      %v1690 = vunpack.c.l.b16 %v1402
      %v1691 = vunpack.c.l.b16 %v1403
      %v1692 = vunpack.c.l.b16 %v1404
      %v1693 = vunpack.c.l.b16 %v1405
      %v1694 = vunpack.c.l.b16 %v1406
      %v1695 = vunpack.c.l.b16 %v1407
      %v1696 = vunpack.c.l.b16 %v1408
      %v1697 = vunpack.c.l.b16 %v1409
      %v1698 = vunpack.c.l.b16 %v1410
      %v1699 = vunpack.c.l.b16 %v1411
      %v1700 = vunpack.c.l.b16 %v1412
      %v1701 = vunpack.c.l.b16 %v1413
      %v1702 = vunpack.c.l.b16 %v1414
      %v1703 = vunpack.c.l.b16 %v1415
      %v1704 = vunpack.c.l.b16 %v1416
      %v1705 = vunpack.c.l.b16 %v1417
      %v1706 = vunpack.c.l.b16 %v1418
      %v1707 = vunpack.c.l.b16 %v1419
      %v1708 = vunpack.c.l.b16 %v1420
      %v1709 = vunpack.c.l.b16 %v1421
      %v1710 = vunpack.c.l.b16 %v1422
      %v1711 = vunpack.c.l.b16 %v1423
      %v1712 = vunpack.c.l.b16 %v1424
      %v1713 = vunpack.c.l.b16 %v1425
      %v1714 = vunpack.c.l.b16 %v1426
      %v1715 = vunpack.c.l.b16 %v1427
      %v1716 = vunpack.c.l.b16 %v1428
      %v1717 = vunpack.c.l.b16 %v1429
      %v1718 = vunpack.c.l.b16 %v1430
      %v1719 = vunpack.c.l.b16 %v1431
      %v1720 = vunpack.c.l.b16 %v1432
      %v1721 = vunpack.c.l.b16 %v1433
      %v1722 = vunpack.c.l.b16 %v1434
      %v1723 = vunpack.c.l.b16 %v1435
      %v1724 = vunpack.c.l.b16 %v1436
      %v1725 = vunpack.c.l.b16 %v1437
      %v1726 = vunpack.c.l.b16 %v1438
      %v1727 = vunpack.c.l.b16 %v1439
      %v1728 = vunpack.c.l.b16 %v1440
      %v1729 = vunpack.c.l.b16 %v1441
      %v1730 = vunpack.c.l.b16 %v1442
      %v1731 = vunpack.c.l.b16 %v1443
      %v1732 = vunpack.c.l.b16 %v1444
      %v1733 = vunpack.c.l.b16 %v1445
      %v1734 = vunpack.c.l.b16 %v1446
      %v1735 = vunpack.c.l.b16 %v1447
      %v1736 = vunpack.c.l.b16 %v1448
      %v1737 = vunpack.c.l.b16 %v1449
      %v1738 = vunpack.c.l.b16 %v1450
      %v1739 = vunpack.c.l.b16 %v1451
      %v1740 = vunpack.c.l.b16 %v1452
      %v1741 = vunpack.c.l.b16 %v1453
      %v1742 = vunpack.c.l.b16 %v1454
      %v1743 = vunpack.c.l.b16 %v1455
      %v1744 = vunpack.c.l.b16 %v1456
      %v1745 = vunpack.c.l.b16 %v1457
      %v1746 = vunpack.c.l.b16 %v1458
      %v1747 = vunpack.c.l.b16 %v1459
      %v1748 = vunpack.c.l.b16 %v1460
      %v1749 = vunpack.c.l.b16 %v1461
      %v1750 = vunpack.c.l.b16 %v1462
      %v1751 = vunpack.c.l.b16 %v1463
      %v1752 = vunpack.c.l.b16 %v1464
      %v1753 = vunpack.c.l.b16 %v1465
      %v1754 = vunpack.c.l.b16 %v1466
      %v1755 = vunpack.c.l.b16 %v1467
      %v1756 = vunpack.c.l.b16 %v1468
      %v1757 = vunpack.c.l.b16 %v1469
      %v1758 = vunpack.c.l.b16 %v1470
      %v1759 = vunpack.c.l.b16 %v1471
      %v1760 = vunpack.c.l.b16 %v1472
      %v1761 = vunpack.c.l.b16 %v1473
      %v1762 = vunpack.c.l.b16 %v1474
      %v1763 = vunpack.c.l.b16 %v1475
      %v1764 = vunpack.c.l.b16 %v1476
      %v1765 = vunpack.c.l.b16 %v1477
      %v1766 = vunpack.c.l.b16 %v1478
      %v1767 = vunpack.c.l.b16 %v1479
      %v1768 = vunpack.c.l.b16 %v1480
      %v1769 = vunpack.c.l.b16 %v1481
      %v1770 = vunpack.c.l.b16 %v1482
      %v1771 = vunpack.c.l.b16 %v1483
      %v1772 = vunpack.c.l.b16 %v1484
      %v1773 = vunpack.c.l.b16 %v1485
      %v1774 = vunpack.c.l.b16 %v1486
      %v1775 = vunpack.c.l.b16 %v1487
      %v1776 = vunpack.c.l.b16 %v1488
      %v1777 = vunpack.c.l.b16 %v1489
      %v1778 = vunpack.c.l.b16 %v1490
      %v1779 = vunpack.c.l.b16 %v1491
      %v1780 = vunpack.c.l.b16 %v1492
      %v1781 = vunpack.c.l.b16 %v1493
      %v1782 = vunpack.c.l.b16 %v1494
      %v1783 = vunpack.c.l.b16 %v1495
      %v1784 = vunpack.c.l.b16 %v1496
      %v1785 = vunpack.c.l.b16 %v1497
      %v1786 = vunpack.c.l.b16 %v1498
      %v1787 = vunpack.c.l.b16 %v1499
      %v1788 = vunpack.c.l.b16 %v1500
      %v1789 = vunpack.c.l.b16 %v1501
      %v1790 = vunpack.c.l.b16 %v1502
      %v1791 = vpack.c.b16 %v1648, %v1647
      %v1792 = vpack.c.b16 %v1650, %v1649
      %v1793 = vpack.c.b16 %v1652, %v1651
      %v1794 = vpack.c.b16 %v1654, %v1653
      %v1795 = vpack.c.b16 %v1656, %v1655
      %v1796 = vpack.c.b16 %v1658, %v1657
      %v1797 = vpack.c.b16 %v1660, %v1659
      %v1798 = vpack.c.b16 %v1662, %v1661
      %v1799 = vpack.c.b16 %v1664, %v1663
      %v1800 = vpack.c.b16 %v1666, %v1665
      %v1801 = vpack.c.b16 %v1668, %v1667
      %v1802 = vpack.c.b16 %v1670, %v1669
      %v1803 = vpack.c.b16 %v1672, %v1671
      %v1804 = vpack.c.b16 %v1674, %v1673
      %v1805 = vpack.c.b16 %v1676, %v1675
      %v1806 = vpack.c.b16 %v1678, %v1677
      %v1807 = vpack.c.b16 %v1680, %v1679
      %v1808 = vpack.c.b16 %v1682, %v1681
      %v1809 = vpack.c.b16 %v1684, %v1683
      %v1810 = vpack.c.b16 %v1686, %v1685
      %v1811 = vpack.c.b16 %v1688, %v1687
      %v1812 = vpack.c.b16 %v1690, %v1689
      %v1813 = vpack.c.b16 %v1692, %v1691
      %v1814 = vpack.c.b16 %v1694, %v1693
      %v1815 = vpack.c.b16 %v1696, %v1695
      %v1816 = vpack.c.b16 %v1698, %v1697
      %v1817 = vpack.c.b16 %v1700, %v1699
      %v1818 = vpack.c.b16 %v1702, %v1701
      %v1819 = vpack.c.b16 %v1704, %v1703
      %v1820 = vpack.c.b16 %v1706, %v1705
      %v1821 = vpack.c.b16 %v1708, %v1707
      %v1822 = vpack.c.b16 %v1710, %v1709
      %v1823 = vpack.c.b16 %v1712, %v1711
      %v1824 = vpack.c.b16 %v1714, %v1713
      %v1825 = vpack.c.b16 %v1716, %v1715
      %v1826 = vpack.c.b16 %v1718, %v1717
      %v1827 = vpack.c.b16 %v1720, %v1719
      %v1828 = vpack.c.b16 %v1722, %v1721
      %v1829 = vpack.c.b16 %v1724, %v1723
      %v1830 = vpack.c.b16 %v1726, %v1725
      %v1831 = vpack.c.b16 %v1728, %v1727
      %v1832 = vpack.c.b16 %v1730, %v1729
      %v1833 = vpack.c.b16 %v1732, %v1731
      %v1834 = vpack.c.b16 %v1734, %v1733
      %v1835 = vpack.c.b16 %v1736, %v1735
      %v1836 = vpack.c.b16 %v1738, %v1737
      %v1837 = vpack.c.b16 %v1740, %v1739
      %v1838 = vpack.c.b16 %v1742, %v1741
      %v1839 = vpack.c.b16 %v1744, %v1743
      %v1840 = vpack.c.b16 %v1746, %v1745
      %v1841 = vpack.c.b16 %v1748, %v1747
      %v1842 = vpack.c.b16 %v1750, %v1749
      %v1843 = vpack.c.b16 %v1752, %v1751
      %v1844 = vpack.c.b16 %v1754, %v1753
      %v1845 = vpack.c.b16 %v1756, %v1755
      %v1846 = vpack.c.b16 %v1758, %v1757
      %v1847 = vpack.c.b16 %v1760, %v1759
      %v1848 = vpack.c.b16 %v1762, %v1761
      %v1849 = vpack.c.b16 %v1764, %v1763
      %v1850 = vpack.c.b16 %v1766, %v1765
      %v1851 = vpack.c.b16 %v1768, %v1767
      %v1852 = vpack.c.b16 %v1770, %v1769
      %v1853 = vpack.c.b16 %v1772, %v1771
      %v1854 = vpack.c.b16 %v1774, %v1773
      %v1855 = vpack.c.b16 %v1776, %v1775
      %v1856 = vpack.c.b16 %v1778, %v1777
      %v1857 = vpack.c.b16 %v1780, %v1779
      %v1858 = vpack.c.b16 %v1782, %v1781
      %v1859 = vpack.c.b16 %v1784, %v1783
      %v1860 = vpack.c.b16 %v1786, %v1785
      %v1861 = vpack.c.b16 %v1788, %v1787
      %v1862 = vpack.c.b16 %v1790, %v1789
      %1935 = vmatpush.bf16.msra.mxu0 %v1798
      %1936 = vmatpush.bf16.msra.mxu0 %v1797
      %1937 = vmatpush.bf16.msra.mxu0 %v1796
      %1938 = vmatpush.bf16.msra.mxu0 %v1795
      %1939 = vmatpush.bf16.msra.mxu0 %v1794
      %1940 = vmatpush.bf16.msra.mxu0 %v1793
      %1941 = vmatpush.bf16.msra.mxu0 %v1792
      %1942 = vmatpush.bf16.msra.mxu0 %v1791
      %1943 = vmatmul.bf16.gmra.mxu0 %v1175
      %v1944 = vpop.f32.mrf.mxu0
      %v1945 = vadd.f32 0.0, %v1944
      %v1946 = vpop.f32.mrf.mxu0
      %v1947 = vadd.f32 0.0, %v1946
      %1948 = vmatmul.bf16.gmra.mxu0 %v1176
      %v1949 = vpop.f32.mrf.mxu0
      %v1950 = vadd.f32 0.0, %v1949
      %v1951 = vpop.f32.mrf.mxu0
      %v1952 = vadd.f32 0.0, %v1951
      %1953 = vmatmul.bf16.gmra.mxu0 %v1177
      %v1954 = vpop.f32.mrf.mxu0
      %v1955 = vadd.f32 0.0, %v1954
      %v1956 = vpop.f32.mrf.mxu0
      %v1957 = vadd.f32 0.0, %v1956
      %1958 = vmatmul.bf16.gmra.mxu0 %v1178
      %v1959 = vpop.f32.mrf.mxu0
      %v1960 = vadd.f32 0.0, %v1959
      %v1961 = vpop.f32.mrf.mxu0
      %v1962 = vadd.f32 0.0, %v1961
      %1963 = vmatmul.bf16.gmra.mxu0 %v1179
      %v1964 = vpop.f32.mrf.mxu0
      %v1965 = vadd.f32 0.0, %v1964
      %v1966 = vpop.f32.mrf.mxu0
      %v1967 = vadd.f32 0.0, %v1966
      %1968 = vmatmul.bf16.gmra.mxu0 %v1180
      %v1969 = vpop.f32.mrf.mxu0
      %v1970 = vadd.f32 0.0, %v1969
      %v1971 = vpop.f32.mrf.mxu0
      %v1972 = vadd.f32 0.0, %v1971
      %1973 = vmatmul.bf16.gmra.mxu0 %v1181
      %v1974 = vpop.f32.mrf.mxu0
      %v1975 = vadd.f32 0.0, %v1974
      %v1976 = vpop.f32.mrf.mxu0
      %v1977 = vadd.f32 0.0, %v1976
      %1978 = vmatmul.bf16.gmra.mxu0 %v1182
      %v1979 = vpop.f32.mrf.mxu0
      %v1980 = vadd.f32 0.0, %v1979
      %v1981 = vpop.f32.mrf.mxu0
      %v1982 = vadd.f32 0.0, %v1981
      %1983 = vmatmul.bf16.gmra.mxu0 %v1183
      %v1984 = vpop.f32.mrf.mxu0
      %v1985 = vadd.f32 0.0, %v1984
      %v1986 = vpop.f32.mrf.mxu0
      %v1987 = vadd.f32 0.0, %v1986
      %1988 = vmatmul.bf16.gmra.mxu0 %v1184
      %v1989 = vpop.f32.mrf.mxu0
      %v1990 = vadd.f32 0.0, %v1989
      %v1991 = vpop.f32.mrf.mxu0
      %v1992 = vadd.f32 0.0, %v1991
      %1993 = vmatmul.bf16.gmra.mxu0 %v1185
      %v1994 = vpop.f32.mrf.mxu0
      %v1995 = vadd.f32 0.0, %v1994
      %v1996 = vpop.f32.mrf.mxu0
      %v1997 = vadd.f32 0.0, %v1996
      %1998 = vmatmul.bf16.gmra.mxu0 %v1186
      %v1999 = vpop.f32.mrf.mxu0
      %v2000 = vadd.f32 0.0, %v1999
      %v2001 = vpop.f32.mrf.mxu0
      %v2002 = vadd.f32 0.0, %v2001
      %2003 = vmatmul.bf16.gmra.mxu0 %v1187
      %v2004 = vpop.f32.mrf.mxu0
      %v2005 = vadd.f32 0.0, %v2004
      %v2006 = vpop.f32.mrf.mxu0
      %v2007 = vadd.f32 0.0, %v2006
      %2008 = vmatmul.bf16.gmra.mxu0 %v1188
      %v2009 = vpop.f32.mrf.mxu0
      %v2010 = vadd.f32 0.0, %v2009
      %v2011 = vpop.f32.mrf.mxu0
      %v2012 = vadd.f32 0.0, %v2011
      %2013 = vmatmul.bf16.gmra.mxu0 %v1189
      %v2014 = vpop.f32.mrf.mxu0
      %v2015 = vadd.f32 0.0, %v2014
      %v2016 = vpop.f32.mrf.mxu0
      %v2017 = vadd.f32 0.0, %v2016
      %2018 = vmatmul.bf16.gmra.mxu0 %v1190
      %v2019 = vpop.f32.mrf.mxu0
      %v2020 = vadd.f32 0.0, %v2019
      %v2021 = vpop.f32.mrf.mxu0
      %v2022 = vadd.f32 0.0, %v2021
      %2023 = vdwg.mxu0
      %2024 = vmatpush.bf16.msra.mxu0 %v1806
      %2025 = vmatpush.bf16.msra.mxu0 %v1805
      %2026 = vmatpush.bf16.msra.mxu0 %v1804
      %2027 = vmatpush.bf16.msra.mxu0 %v1803
      %2028 = vmatpush.bf16.msra.mxu0 %v1802
      %2029 = vmatpush.bf16.msra.mxu0 %v1801
      %2030 = vmatpush.bf16.msra.mxu0 %v1800
      %2031 = vmatpush.bf16.msra.mxu0 %v1799
      %2032 = vmatmul.bf16.gmra.mxu0 %v1239
      %v2033 = vpop.f32.mrf.mxu0
      %v2034 = vadd.f32 %v1945, %v2033
      %v2035 = vpop.f32.mrf.mxu0
      %v2036 = vadd.f32 %v1947, %v2035
      %2037 = vmatmul.bf16.gmra.mxu0 %v1240
      %v2038 = vpop.f32.mrf.mxu0
      %v2039 = vadd.f32 %v1950, %v2038
      %v2040 = vpop.f32.mrf.mxu0
      %v2041 = vadd.f32 %v1952, %v2040
      %2042 = vmatmul.bf16.gmra.mxu0 %v1241
      %v2043 = vpop.f32.mrf.mxu0
      %v2044 = vadd.f32 %v1955, %v2043
      %v2045 = vpop.f32.mrf.mxu0
      %v2046 = vadd.f32 %v1957, %v2045
      %2047 = vmatmul.bf16.gmra.mxu0 %v1242
      %v2048 = vpop.f32.mrf.mxu0
      %v2049 = vadd.f32 %v1960, %v2048
      %v2050 = vpop.f32.mrf.mxu0
      %v2051 = vadd.f32 %v1962, %v2050
      %2052 = vmatmul.bf16.gmra.mxu0 %v1243
      %v2053 = vpop.f32.mrf.mxu0
      %v2054 = vadd.f32 %v1965, %v2053
      %v2055 = vpop.f32.mrf.mxu0
      %v2056 = vadd.f32 %v1967, %v2055
      %2057 = vmatmul.bf16.gmra.mxu0 %v1244
      %v2058 = vpop.f32.mrf.mxu0
      %v2059 = vadd.f32 %v1970, %v2058
      %v2060 = vpop.f32.mrf.mxu0
      %v2061 = vadd.f32 %v1972, %v2060
      %2062 = vmatmul.bf16.gmra.mxu0 %v1245
      %v2063 = vpop.f32.mrf.mxu0
      %v2064 = vadd.f32 %v1975, %v2063
      %v2065 = vpop.f32.mrf.mxu0
      %v2066 = vadd.f32 %v1977, %v2065
      %2067 = vmatmul.bf16.gmra.mxu0 %v1246
      %v2068 = vpop.f32.mrf.mxu0
      %v2069 = vadd.f32 %v1980, %v2068
      %v2070 = vpop.f32.mrf.mxu0
      %v2071 = vadd.f32 %v1982, %v2070
      %2072 = vmatmul.bf16.gmra.mxu0 %v1247
      %v2073 = vpop.f32.mrf.mxu0
      %v2074 = vadd.f32 %v1985, %v2073
      %v2075 = vpop.f32.mrf.mxu0
      %v2076 = vadd.f32 %v1987, %v2075
      %2077 = vmatmul.bf16.gmra.mxu0 %v1248
      %v2078 = vpop.f32.mrf.mxu0
      %v2079 = vadd.f32 %v1990, %v2078
      %v2080 = vpop.f32.mrf.mxu0
      %v2081 = vadd.f32 %v1992, %v2080
      %2082 = vmatmul.bf16.gmra.mxu0 %v1249
      %v2083 = vpop.f32.mrf.mxu0
      %v2084 = vadd.f32 %v1995, %v2083
      %v2085 = vpop.f32.mrf.mxu0
      %v2086 = vadd.f32 %v1997, %v2085
      %2087 = vmatmul.bf16.gmra.mxu0 %v1250
      %v2088 = vpop.f32.mrf.mxu0
      %v2089 = vadd.f32 %v2000, %v2088
      %v2090 = vpop.f32.mrf.mxu0
      %v2091 = vadd.f32 %v2002, %v2090
      %2092 = vmatmul.bf16.gmra.mxu0 %v1251
      %v2093 = vpop.f32.mrf.mxu0
      %v2094 = vadd.f32 %v2005, %v2093
      %v2095 = vpop.f32.mrf.mxu0
      %v2096 = vadd.f32 %v2007, %v2095
      %2097 = vmatmul.bf16.gmra.mxu0 %v1252
      %v2098 = vpop.f32.mrf.mxu0
      %v2099 = vadd.f32 %v2010, %v2098
      %v2100 = vpop.f32.mrf.mxu0
      %v2101 = vadd.f32 %v2012, %v2100
      %2102 = vmatmul.bf16.gmra.mxu0 %v1253
      %v2103 = vpop.f32.mrf.mxu0
      %v2104 = vadd.f32 %v2015, %v2103
      %v2105 = vpop.f32.mrf.mxu0
      %v2106 = vadd.f32 %v2017, %v2105
      %2107 = vmatmul.bf16.gmra.mxu0 %v1254
      %v2108 = vpop.f32.mrf.mxu0
      %v2109 = vadd.f32 %v2020, %v2108
      %v2110 = vpop.f32.mrf.mxu0
      %v2111 = vadd.f32 %v2022, %v2110
      %2112 = vdwg.mxu0
      %2113 = vmatpush.bf16.msra.mxu0 %v1814
      %2114 = vmatpush.bf16.msra.mxu0 %v1813
      %2115 = vmatpush.bf16.msra.mxu0 %v1812
      %2116 = vmatpush.bf16.msra.mxu0 %v1811
      %2117 = vmatpush.bf16.msra.mxu0 %v1810
      %2118 = vmatpush.bf16.msra.mxu0 %v1809
      %2119 = vmatpush.bf16.msra.mxu0 %v1808
      %2120 = vmatpush.bf16.msra.mxu0 %v1807
      %2121 = vmatmul.bf16.gmra.mxu0 %v1303
      %v2122 = vpop.f32.mrf.mxu0
      %v2123 = vadd.f32 %v2034, %v2122
      %v2124 = vpop.f32.mrf.mxu0
      %v2125 = vadd.f32 %v2036, %v2124
      %2126 = vmatmul.bf16.gmra.mxu0 %v1304
      %v2127 = vpop.f32.mrf.mxu0
      %v2128 = vadd.f32 %v2039, %v2127
      %v2129 = vpop.f32.mrf.mxu0
      %v2130 = vadd.f32 %v2041, %v2129
      %2131 = vmatmul.bf16.gmra.mxu0 %v1305
      %v2132 = vpop.f32.mrf.mxu0
      %v2133 = vadd.f32 %v2044, %v2132
      %v2134 = vpop.f32.mrf.mxu0
      %v2135 = vadd.f32 %v2046, %v2134
      %2136 = vmatmul.bf16.gmra.mxu0 %v1306
      %v2137 = vpop.f32.mrf.mxu0
      %v2138 = vadd.f32 %v2049, %v2137
      %v2139 = vpop.f32.mrf.mxu0
      %v2140 = vadd.f32 %v2051, %v2139
      %2141 = vmatmul.bf16.gmra.mxu0 %v1307
      %v2142 = vpop.f32.mrf.mxu0
      %v2143 = vadd.f32 %v2054, %v2142
      %v2144 = vpop.f32.mrf.mxu0
      %v2145 = vadd.f32 %v2056, %v2144
      %2146 = vmatmul.bf16.gmra.mxu0 %v1308
      %v2147 = vpop.f32.mrf.mxu0
      %v2148 = vadd.f32 %v2059, %v2147
      %v2149 = vpop.f32.mrf.mxu0
      %v2150 = vadd.f32 %v2061, %v2149
      %2151 = vmatmul.bf16.gmra.mxu0 %v1309
      %v2152 = vpop.f32.mrf.mxu0
      %v2153 = vadd.f32 %v2064, %v2152
      %v2154 = vpop.f32.mrf.mxu0
      %v2155 = vadd.f32 %v2066, %v2154
      %2156 = vmatmul.bf16.gmra.mxu0 %v1310
      %v2157 = vpop.f32.mrf.mxu0
      %v2158 = vadd.f32 %v2069, %v2157
      %v2159 = vpop.f32.mrf.mxu0
      %v2160 = vadd.f32 %v2071, %v2159
      %2161 = vmatmul.bf16.gmra.mxu0 %v1311
      %v2162 = vpop.f32.mrf.mxu0
      %v2163 = vadd.f32 %v2074, %v2162
      %v2164 = vpop.f32.mrf.mxu0
      %v2165 = vadd.f32 %v2076, %v2164
      %2166 = vmatmul.bf16.gmra.mxu0 %v1312
      %v2167 = vpop.f32.mrf.mxu0
      %v2168 = vadd.f32 %v2079, %v2167
      %v2169 = vpop.f32.mrf.mxu0
      %v2170 = vadd.f32 %v2081, %v2169
      %2171 = vmatmul.bf16.gmra.mxu0 %v1313
      %v2172 = vpop.f32.mrf.mxu0
      %v2173 = vadd.f32 %v2084, %v2172
      %v2174 = vpop.f32.mrf.mxu0
      %v2175 = vadd.f32 %v2086, %v2174
      %2176 = vmatmul.bf16.gmra.mxu0 %v1314
      %v2177 = vpop.f32.mrf.mxu0
      %v2178 = vadd.f32 %v2089, %v2177
      %v2179 = vpop.f32.mrf.mxu0
      %v2180 = vadd.f32 %v2091, %v2179
      %2181 = vmatmul.bf16.gmra.mxu0 %v1315
      %v2182 = vpop.f32.mrf.mxu0
      %v2183 = vadd.f32 %v2094, %v2182
      %v2184 = vpop.f32.mrf.mxu0
      %v2185 = vadd.f32 %v2096, %v2184
      %2186 = vmatmul.bf16.gmra.mxu0 %v1316
      %v2187 = vpop.f32.mrf.mxu0
      %v2188 = vadd.f32 %v2099, %v2187
      %v2189 = vpop.f32.mrf.mxu0
      %v2190 = vadd.f32 %v2101, %v2189
      %2191 = vmatmul.bf16.gmra.mxu0 %v1317
      %v2192 = vpop.f32.mrf.mxu0
      %v2193 = vadd.f32 %v2104, %v2192
      %v2194 = vpop.f32.mrf.mxu0
      %v2195 = vadd.f32 %v2106, %v2194
      %2196 = vmatmul.bf16.gmra.mxu0 %v1318
      %v2197 = vpop.f32.mrf.mxu0
      %v2198 = vadd.f32 %v2109, %v2197
      %v2199 = vpop.f32.mrf.mxu0
      %v2200 = vadd.f32 %v2111, %v2199
      %2201 = vdwg.mxu0
      %2202 = vmatpush.bf16.msra.mxu0 %v1822
      %2203 = vmatpush.bf16.msra.mxu0 %v1821
      %2204 = vmatpush.bf16.msra.mxu0 %v1820
      %2205 = vmatpush.bf16.msra.mxu0 %v1819
      %2206 = vmatpush.bf16.msra.mxu0 %v1818
      %2207 = vmatpush.bf16.msra.mxu0 %v1817
      %2208 = vmatpush.bf16.msra.mxu0 %v1816
      %2209 = vmatpush.bf16.msra.mxu0 %v1815
      %2210 = vmatmul.bf16.gmra.mxu0 %v1176
      %v2211 = vpop.f32.mrf.mxu0
      %v2212 = vadd.f32 %v2123, %v2211
      %v2213 = vpop.f32.mrf.mxu0
      %v2214 = vadd.f32 %v2125, %v2213
      %2215 = vmatmul.bf16.gmra.mxu0 %v1177
      %v2216 = vpop.f32.mrf.mxu0
      %v2217 = vadd.f32 %v2128, %v2216
      %v2218 = vpop.f32.mrf.mxu0
      %v2219 = vadd.f32 %v2130, %v2218
      %2220 = vmatmul.bf16.gmra.mxu0 %v1178
      %v2221 = vpop.f32.mrf.mxu0
      %v2222 = vadd.f32 %v2133, %v2221
      %v2223 = vpop.f32.mrf.mxu0
      %v2224 = vadd.f32 %v2135, %v2223
      %2225 = vmatmul.bf16.gmra.mxu0 %v1179
      %v2226 = vpop.f32.mrf.mxu0
      %v2227 = vadd.f32 %v2138, %v2226
      %v2228 = vpop.f32.mrf.mxu0
      %v2229 = vadd.f32 %v2140, %v2228
      %2230 = vmatmul.bf16.gmra.mxu0 %v1180
      %v2231 = vpop.f32.mrf.mxu0
      %v2232 = vadd.f32 %v2143, %v2231
      %v2233 = vpop.f32.mrf.mxu0
      %v2234 = vadd.f32 %v2145, %v2233
      %2235 = vmatmul.bf16.gmra.mxu0 %v1181
      %v2236 = vpop.f32.mrf.mxu0
      %v2237 = vadd.f32 %v2148, %v2236
      %v2238 = vpop.f32.mrf.mxu0
      %v2239 = vadd.f32 %v2150, %v2238
      %2240 = vmatmul.bf16.gmra.mxu0 %v1182
      %v2241 = vpop.f32.mrf.mxu0
      %v2242 = vadd.f32 %v2153, %v2241
      %v2243 = vpop.f32.mrf.mxu0
      %v2244 = vadd.f32 %v2155, %v2243
      %2245 = vmatmul.bf16.gmra.mxu0 %v1183
      %v2246 = vpop.f32.mrf.mxu0
      %v2247 = vadd.f32 %v2158, %v2246
      %v2248 = vpop.f32.mrf.mxu0
      %v2249 = vadd.f32 %v2160, %v2248
      %2250 = vmatmul.bf16.gmra.mxu0 %v1184
      %v2251 = vpop.f32.mrf.mxu0
      %v2252 = vadd.f32 %v2163, %v2251
      %v2253 = vpop.f32.mrf.mxu0
      %v2254 = vadd.f32 %v2165, %v2253
      %2255 = vmatmul.bf16.gmra.mxu0 %v1185
      %v2256 = vpop.f32.mrf.mxu0
      %v2257 = vadd.f32 %v2168, %v2256
      %v2258 = vpop.f32.mrf.mxu0
      %v2259 = vadd.f32 %v2170, %v2258
      %2260 = vmatmul.bf16.gmra.mxu0 %v1186
      %v2261 = vpop.f32.mrf.mxu0
      %v2262 = vadd.f32 %v2173, %v2261
      %v2263 = vpop.f32.mrf.mxu0
      %v2264 = vadd.f32 %v2175, %v2263
      %2265 = vmatmul.bf16.gmra.mxu0 %v1187
      %v2266 = vpop.f32.mrf.mxu0
      %v2267 = vadd.f32 %v2178, %v2266
      %v2268 = vpop.f32.mrf.mxu0
      %v2269 = vadd.f32 %v2180, %v2268
      %2270 = vmatmul.bf16.gmra.mxu0 %v1188
      %v2271 = vpop.f32.mrf.mxu0
      %v2272 = vadd.f32 %v2183, %v2271
      %v2273 = vpop.f32.mrf.mxu0
      %v2274 = vadd.f32 %v2185, %v2273
      %2275 = vmatmul.bf16.gmra.mxu0 %v1189
      %v2276 = vpop.f32.mrf.mxu0
      %v2277 = vadd.f32 %v2188, %v2276
      %v2278 = vpop.f32.mrf.mxu0
      %v2279 = vadd.f32 %v2190, %v2278
      %2280 = vmatmul.bf16.gmra.mxu0 %v1190
      %v2281 = vpop.f32.mrf.mxu0
      %v2282 = vadd.f32 %v2193, %v2281
      %v2283 = vpop.f32.mrf.mxu0
      %v2284 = vadd.f32 %v2195, %v2283
      %2285 = vmatmul.bf16.gmra.mxu0 %v1337
      %v2286 = vpop.f32.mrf.mxu0
      %v2287 = vadd.f32 %v2198, %v2286
      %v2288 = vpop.f32.mrf.mxu0
      %v2289 = vadd.f32 %v2200, %v2288
      %2290 = vdwg.mxu0
      %2291 = vmatpush.bf16.msra.mxu0 %v1830
      %2292 = vmatpush.bf16.msra.mxu0 %v1829
      %2293 = vmatpush.bf16.msra.mxu0 %v1828
      %2294 = vmatpush.bf16.msra.mxu0 %v1827
      %2295 = vmatpush.bf16.msra.mxu0 %v1826
      %2296 = vmatpush.bf16.msra.mxu0 %v1825
      %2297 = vmatpush.bf16.msra.mxu0 %v1824
      %2298 = vmatpush.bf16.msra.mxu0 %v1823
      %2299 = vmatmul.bf16.gmra.mxu0 %v1240
      %v2300 = vpop.f32.mrf.mxu0
      %v2301 = vadd.f32 %v2212, %v2300
      %v2302 = vpop.f32.mrf.mxu0
      %v2303 = vadd.f32 %v2214, %v2302
      %2304 = vmatmul.bf16.gmra.mxu0 %v1241
      %v2305 = vpop.f32.mrf.mxu0
      %v2306 = vadd.f32 %v2217, %v2305
      %v2307 = vpop.f32.mrf.mxu0
      %v2308 = vadd.f32 %v2219, %v2307
      %2309 = vmatmul.bf16.gmra.mxu0 %v1242
      %v2310 = vpop.f32.mrf.mxu0
      %v2311 = vadd.f32 %v2222, %v2310
      %v2312 = vpop.f32.mrf.mxu0
      %v2313 = vadd.f32 %v2224, %v2312
      %2314 = vmatmul.bf16.gmra.mxu0 %v1243
      %v2315 = vpop.f32.mrf.mxu0
      %v2316 = vadd.f32 %v2227, %v2315
      %v2317 = vpop.f32.mrf.mxu0
      %v2318 = vadd.f32 %v2229, %v2317
      %2319 = vmatmul.bf16.gmra.mxu0 %v1244
      %v2320 = vpop.f32.mrf.mxu0
      %v2321 = vadd.f32 %v2232, %v2320
      %v2322 = vpop.f32.mrf.mxu0
      %v2323 = vadd.f32 %v2234, %v2322
      %2324 = vmatmul.bf16.gmra.mxu0 %v1245
      %v2325 = vpop.f32.mrf.mxu0
      %v2326 = vadd.f32 %v2237, %v2325
      %v2327 = vpop.f32.mrf.mxu0
      %v2328 = vadd.f32 %v2239, %v2327
      %2329 = vmatmul.bf16.gmra.mxu0 %v1246
      %v2330 = vpop.f32.mrf.mxu0
      %v2331 = vadd.f32 %v2242, %v2330
      %v2332 = vpop.f32.mrf.mxu0
      %v2333 = vadd.f32 %v2244, %v2332
      %2334 = vmatmul.bf16.gmra.mxu0 %v1247
      %v2335 = vpop.f32.mrf.mxu0
      %v2336 = vadd.f32 %v2247, %v2335
      %v2337 = vpop.f32.mrf.mxu0
      %v2338 = vadd.f32 %v2249, %v2337
      %2339 = vmatmul.bf16.gmra.mxu0 %v1248
      %v2340 = vpop.f32.mrf.mxu0
      %v2341 = vadd.f32 %v2252, %v2340
      %v2342 = vpop.f32.mrf.mxu0
      %v2343 = vadd.f32 %v2254, %v2342
      %2344 = vmatmul.bf16.gmra.mxu0 %v1249
      %v2345 = vpop.f32.mrf.mxu0
      %v2346 = vadd.f32 %v2257, %v2345
      %v2347 = vpop.f32.mrf.mxu0
      %v2348 = vadd.f32 %v2259, %v2347
      %2349 = vmatmul.bf16.gmra.mxu0 %v1250
      %v2350 = vpop.f32.mrf.mxu0
      %v2351 = vadd.f32 %v2262, %v2350
      %v2352 = vpop.f32.mrf.mxu0
      %v2353 = vadd.f32 %v2264, %v2352
      %2354 = vmatmul.bf16.gmra.mxu0 %v1251
      %v2355 = vpop.f32.mrf.mxu0
      %v2356 = vadd.f32 %v2267, %v2355
      %v2357 = vpop.f32.mrf.mxu0
      %v2358 = vadd.f32 %v2269, %v2357
      %2359 = vmatmul.bf16.gmra.mxu0 %v1252
      %v2360 = vpop.f32.mrf.mxu0
      %v2361 = vadd.f32 %v2272, %v2360
      %v2362 = vpop.f32.mrf.mxu0
      %v2363 = vadd.f32 %v2274, %v2362
      %2364 = vmatmul.bf16.gmra.mxu0 %v1253
      %v2365 = vpop.f32.mrf.mxu0
      %v2366 = vadd.f32 %v2277, %v2365
      %v2367 = vpop.f32.mrf.mxu0
      %v2368 = vadd.f32 %v2279, %v2367
      %2369 = vmatmul.bf16.gmra.mxu0 %v1254
      %v2370 = vpop.f32.mrf.mxu0
      %v2371 = vadd.f32 %v2282, %v2370
      %v2372 = vpop.f32.mrf.mxu0
      %v2373 = vadd.f32 %v2284, %v2372
      %2374 = vmatmul.bf16.gmra.mxu0 %v1341
      %v2375 = vpop.f32.mrf.mxu0
      %v2376 = vadd.f32 %v2287, %v2375
      %v2377 = vpop.f32.mrf.mxu0
      %v2378 = vadd.f32 %v2289, %v2377
      %2379 = vdwg.mxu0
      %2380 = vmatpush.bf16.msra.mxu0 %v1838
      %2381 = vmatpush.bf16.msra.mxu0 %v1837
      %2382 = vmatpush.bf16.msra.mxu0 %v1836
      %2383 = vmatpush.bf16.msra.mxu0 %v1835
      %2384 = vmatpush.bf16.msra.mxu0 %v1834
      %2385 = vmatpush.bf16.msra.mxu0 %v1833
      %2386 = vmatpush.bf16.msra.mxu0 %v1832
      %2387 = vmatpush.bf16.msra.mxu0 %v1831
      %2388 = vmatmul.bf16.gmra.mxu0 %v1304
      %v2389 = vpop.f32.mrf.mxu0
      %v2390 = vadd.f32 %v2301, %v2389
      %v2391 = vpop.f32.mrf.mxu0
      %v2392 = vadd.f32 %v2303, %v2391
      %2393 = vmatmul.bf16.gmra.mxu0 %v1305
      %v2394 = vpop.f32.mrf.mxu0
      %v2395 = vadd.f32 %v2306, %v2394
      %v2396 = vpop.f32.mrf.mxu0
      %v2397 = vadd.f32 %v2308, %v2396
      %2398 = vmatmul.bf16.gmra.mxu0 %v1306
      %v2399 = vpop.f32.mrf.mxu0
      %v2400 = vadd.f32 %v2311, %v2399
      %v2401 = vpop.f32.mrf.mxu0
      %v2402 = vadd.f32 %v2313, %v2401
      %2403 = vmatmul.bf16.gmra.mxu0 %v1307
      %v2404 = vpop.f32.mrf.mxu0
      %v2405 = vadd.f32 %v2316, %v2404
      %v2406 = vpop.f32.mrf.mxu0
      %v2407 = vadd.f32 %v2318, %v2406
      %2408 = vmatmul.bf16.gmra.mxu0 %v1308
      %v2409 = vpop.f32.mrf.mxu0
      %v2410 = vadd.f32 %v2321, %v2409
      %v2411 = vpop.f32.mrf.mxu0
      %v2412 = vadd.f32 %v2323, %v2411
      %2413 = vmatmul.bf16.gmra.mxu0 %v1309
      %v2414 = vpop.f32.mrf.mxu0
      %v2415 = vadd.f32 %v2326, %v2414
      %v2416 = vpop.f32.mrf.mxu0
      %v2417 = vadd.f32 %v2328, %v2416
      %2418 = vmatmul.bf16.gmra.mxu0 %v1310
      %v2419 = vpop.f32.mrf.mxu0
      %v2420 = vadd.f32 %v2331, %v2419
      %v2421 = vpop.f32.mrf.mxu0
      %v2422 = vadd.f32 %v2333, %v2421
      %2423 = vmatmul.bf16.gmra.mxu0 %v1311
      %v2424 = vpop.f32.mrf.mxu0
      %v2425 = vadd.f32 %v2336, %v2424
      %v2426 = vpop.f32.mrf.mxu0
      %v2427 = vadd.f32 %v2338, %v2426
      %2428 = vmatmul.bf16.gmra.mxu0 %v1312
      %v2429 = vpop.f32.mrf.mxu0
      %v2430 = vadd.f32 %v2341, %v2429
      %v2431 = vpop.f32.mrf.mxu0
      %v2432 = vadd.f32 %v2343, %v2431
      %2433 = vmatmul.bf16.gmra.mxu0 %v1313
      %v2434 = vpop.f32.mrf.mxu0
      %v2435 = vadd.f32 %v2346, %v2434
      %v2436 = vpop.f32.mrf.mxu0
      %v2437 = vadd.f32 %v2348, %v2436
      %2438 = vmatmul.bf16.gmra.mxu0 %v1314
      %v2439 = vpop.f32.mrf.mxu0
      %v2440 = vadd.f32 %v2351, %v2439
      %v2441 = vpop.f32.mrf.mxu0
      %v2442 = vadd.f32 %v2353, %v2441
      %2443 = vmatmul.bf16.gmra.mxu0 %v1315
      %v2444 = vpop.f32.mrf.mxu0
      %v2445 = vadd.f32 %v2356, %v2444
      %v2446 = vpop.f32.mrf.mxu0
      %v2447 = vadd.f32 %v2358, %v2446
      %2448 = vmatmul.bf16.gmra.mxu0 %v1316
      %v2449 = vpop.f32.mrf.mxu0
      %v2450 = vadd.f32 %v2361, %v2449
      %v2451 = vpop.f32.mrf.mxu0
      %v2452 = vadd.f32 %v2363, %v2451
      %2453 = vmatmul.bf16.gmra.mxu0 %v1317
      %v2454 = vpop.f32.mrf.mxu0
      %v2455 = vadd.f32 %v2366, %v2454
      %v2456 = vpop.f32.mrf.mxu0
      %v2457 = vadd.f32 %v2368, %v2456
      %2458 = vmatmul.bf16.gmra.mxu0 %v1318
      %v2459 = vpop.f32.mrf.mxu0
      %v2460 = vadd.f32 %v2371, %v2459
      %v2461 = vpop.f32.mrf.mxu0
      %v2462 = vadd.f32 %v2373, %v2461
      %2463 = vmatmul.bf16.gmra.mxu0 %v1345
      %v2464 = vpop.f32.mrf.mxu0
      %v2465 = vadd.f32 %v2376, %v2464
      %v2466 = vpop.f32.mrf.mxu0
      %v2467 = vadd.f32 %v2378, %v2466
      %2468 = vdwg.mxu0
      %2469 = vmatpush.bf16.msra.mxu0 %v1846
      %2470 = vmatpush.bf16.msra.mxu0 %v1845
      %2471 = vmatpush.bf16.msra.mxu0 %v1844
      %2472 = vmatpush.bf16.msra.mxu0 %v1843
      %2473 = vmatpush.bf16.msra.mxu0 %v1842
      %2474 = vmatpush.bf16.msra.mxu0 %v1841
      %2475 = vmatpush.bf16.msra.mxu0 %v1840
      %2476 = vmatpush.bf16.msra.mxu0 %v1839
      %2477 = vmatmul.bf16.gmra.mxu0 %v1177
      %v2478 = vpop.f32.mrf.mxu0
      %v2479 = vadd.f32 %v2390, %v2478
      %v2480 = vpop.f32.mrf.mxu0
      %v2481 = vadd.f32 %v2392, %v2480
      %2482 = vmatmul.bf16.gmra.mxu0 %v1178
      %v2483 = vpop.f32.mrf.mxu0
      %v2484 = vadd.f32 %v2395, %v2483
      %v2485 = vpop.f32.mrf.mxu0
      %v2486 = vadd.f32 %v2397, %v2485
      %2487 = vmatmul.bf16.gmra.mxu0 %v1179
      %v2488 = vpop.f32.mrf.mxu0
      %v2489 = vadd.f32 %v2400, %v2488
      %v2490 = vpop.f32.mrf.mxu0
      %v2491 = vadd.f32 %v2402, %v2490
      %2492 = vmatmul.bf16.gmra.mxu0 %v1180
      %v2493 = vpop.f32.mrf.mxu0
      %v2494 = vadd.f32 %v2405, %v2493
      %v2495 = vpop.f32.mrf.mxu0
      %v2496 = vadd.f32 %v2407, %v2495
      %2497 = vmatmul.bf16.gmra.mxu0 %v1181
      %v2498 = vpop.f32.mrf.mxu0
      %v2499 = vadd.f32 %v2410, %v2498
      %v2500 = vpop.f32.mrf.mxu0
      %v2501 = vadd.f32 %v2412, %v2500
      %2502 = vmatmul.bf16.gmra.mxu0 %v1182
      %v2503 = vpop.f32.mrf.mxu0
      %v2504 = vadd.f32 %v2415, %v2503
      %v2505 = vpop.f32.mrf.mxu0
      %v2506 = vadd.f32 %v2417, %v2505
      %2507 = vmatmul.bf16.gmra.mxu0 %v1183
      %v2508 = vpop.f32.mrf.mxu0
      %v2509 = vadd.f32 %v2420, %v2508
      %v2510 = vpop.f32.mrf.mxu0
      %v2511 = vadd.f32 %v2422, %v2510
      %2512 = vmatmul.bf16.gmra.mxu0 %v1184
      %v2513 = vpop.f32.mrf.mxu0
      %v2514 = vadd.f32 %v2425, %v2513
      %v2515 = vpop.f32.mrf.mxu0
      %v2516 = vadd.f32 %v2427, %v2515
      %2517 = vmatmul.bf16.gmra.mxu0 %v1185
      %v2518 = vpop.f32.mrf.mxu0
      %v2519 = vadd.f32 %v2430, %v2518
      %v2520 = vpop.f32.mrf.mxu0
      %v2521 = vadd.f32 %v2432, %v2520
      %2522 = vmatmul.bf16.gmra.mxu0 %v1186
      %v2523 = vpop.f32.mrf.mxu0
      %v2524 = vadd.f32 %v2435, %v2523
      %v2525 = vpop.f32.mrf.mxu0
      %v2526 = vadd.f32 %v2437, %v2525
      %2527 = vmatmul.bf16.gmra.mxu0 %v1187
      %v2528 = vpop.f32.mrf.mxu0
      %v2529 = vadd.f32 %v2440, %v2528
      %v2530 = vpop.f32.mrf.mxu0
      %v2531 = vadd.f32 %v2442, %v2530
      %2532 = vmatmul.bf16.gmra.mxu0 %v1188
      %v2533 = vpop.f32.mrf.mxu0
      %v2534 = vadd.f32 %v2445, %v2533
      %v2535 = vpop.f32.mrf.mxu0
      %v2536 = vadd.f32 %v2447, %v2535
      %2537 = vmatmul.bf16.gmra.mxu0 %v1189
      %v2538 = vpop.f32.mrf.mxu0
      %v2539 = vadd.f32 %v2450, %v2538
      %v2540 = vpop.f32.mrf.mxu0
      %v2541 = vadd.f32 %v2452, %v2540
      %2542 = vmatmul.bf16.gmra.mxu0 %v1190
      %v2543 = vpop.f32.mrf.mxu0
      %v2544 = vadd.f32 %v2455, %v2543
      %v2545 = vpop.f32.mrf.mxu0
      %v2546 = vadd.f32 %v2457, %v2545
      %2547 = vmatmul.bf16.gmra.mxu0 %v1337
      %v2548 = vpop.f32.mrf.mxu0
      %v2549 = vadd.f32 %v2460, %v2548
      %v2550 = vpop.f32.mrf.mxu0
      %v2551 = vadd.f32 %v2462, %v2550
      %2552 = vmatmul.bf16.gmra.mxu0 %v1349
      %v2553 = vpop.f32.mrf.mxu0
      %v2554 = vadd.f32 %v2465, %v2553
      %v2555 = vpop.f32.mrf.mxu0
      %v2556 = vadd.f32 %v2467, %v2555
      %2557 = vdwg.mxu0
      %2558 = vmatpush.bf16.msra.mxu0 %v1854
      %2559 = vmatpush.bf16.msra.mxu0 %v1853
      %2560 = vmatpush.bf16.msra.mxu0 %v1852
      %2561 = vmatpush.bf16.msra.mxu0 %v1851
      %2562 = vmatpush.bf16.msra.mxu0 %v1850
      %2563 = vmatpush.bf16.msra.mxu0 %v1849
      %2564 = vmatpush.bf16.msra.mxu0 %v1848
      %2565 = vmatpush.bf16.msra.mxu0 %v1847
      %2566 = vmatmul.bf16.gmra.mxu0 %v1241
      %v2567 = vpop.f32.mrf.mxu0
      %v2568 = vadd.f32 %v2479, %v2567
      %v2569 = vpop.f32.mrf.mxu0
      %v2570 = vadd.f32 %v2481, %v2569
      %2571 = vmatmul.bf16.gmra.mxu0 %v1242
      %v2572 = vpop.f32.mrf.mxu0
      %v2573 = vadd.f32 %v2484, %v2572
      %v2574 = vpop.f32.mrf.mxu0
      %v2575 = vadd.f32 %v2486, %v2574
      %2576 = vmatmul.bf16.gmra.mxu0 %v1243
      %v2577 = vpop.f32.mrf.mxu0
      %v2578 = vadd.f32 %v2489, %v2577
      %v2579 = vpop.f32.mrf.mxu0
      %v2580 = vadd.f32 %v2491, %v2579
      %2581 = vmatmul.bf16.gmra.mxu0 %v1244
      %v2582 = vpop.f32.mrf.mxu0
      %v2583 = vadd.f32 %v2494, %v2582
      %v2584 = vpop.f32.mrf.mxu0
      %v2585 = vadd.f32 %v2496, %v2584
      %2586 = vmatmul.bf16.gmra.mxu0 %v1245
      %v2587 = vpop.f32.mrf.mxu0
      %v2588 = vadd.f32 %v2499, %v2587
      %v2589 = vpop.f32.mrf.mxu0
      %v2590 = vadd.f32 %v2501, %v2589
      %2591 = vmatmul.bf16.gmra.mxu0 %v1246
      %v2592 = vpop.f32.mrf.mxu0
      %v2593 = vadd.f32 %v2504, %v2592
      %v2594 = vpop.f32.mrf.mxu0
      %v2595 = vadd.f32 %v2506, %v2594
      %2596 = vmatmul.bf16.gmra.mxu0 %v1247
      %v2597 = vpop.f32.mrf.mxu0
      %v2598 = vadd.f32 %v2509, %v2597
      %v2599 = vpop.f32.mrf.mxu0
      %v2600 = vadd.f32 %v2511, %v2599
      %2601 = vmatmul.bf16.gmra.mxu0 %v1248
      %v2602 = vpop.f32.mrf.mxu0
      %v2603 = vadd.f32 %v2514, %v2602
      %v2604 = vpop.f32.mrf.mxu0
      %v2605 = vadd.f32 %v2516, %v2604
      %2606 = vmatmul.bf16.gmra.mxu0 %v1249
      %v2607 = vpop.f32.mrf.mxu0
      %v2608 = vadd.f32 %v2519, %v2607
      %v2609 = vpop.f32.mrf.mxu0
      %v2610 = vadd.f32 %v2521, %v2609
      %2611 = vmatmul.bf16.gmra.mxu0 %v1250
      %v2612 = vpop.f32.mrf.mxu0
      %v2613 = vadd.f32 %v2524, %v2612
      %v2614 = vpop.f32.mrf.mxu0
      %v2615 = vadd.f32 %v2526, %v2614
      %2616 = vmatmul.bf16.gmra.mxu0 %v1251
      %v2617 = vpop.f32.mrf.mxu0
      %v2618 = vadd.f32 %v2529, %v2617
      %v2619 = vpop.f32.mrf.mxu0
      %v2620 = vadd.f32 %v2531, %v2619
      %2621 = vmatmul.bf16.gmra.mxu0 %v1252
      %v2622 = vpop.f32.mrf.mxu0
      %v2623 = vadd.f32 %v2534, %v2622
      %v2624 = vpop.f32.mrf.mxu0
      %v2625 = vadd.f32 %v2536, %v2624
      %2626 = vmatmul.bf16.gmra.mxu0 %v1253
      %v2627 = vpop.f32.mrf.mxu0
      %v2628 = vadd.f32 %v2539, %v2627
      %v2629 = vpop.f32.mrf.mxu0
      %v2630 = vadd.f32 %v2541, %v2629
      %2631 = vmatmul.bf16.gmra.mxu0 %v1254
      %v2632 = vpop.f32.mrf.mxu0
      %v2633 = vadd.f32 %v2544, %v2632
      %v2634 = vpop.f32.mrf.mxu0
      %v2635 = vadd.f32 %v2546, %v2634
      %2636 = vmatmul.bf16.gmra.mxu0 %v1341
      %v2637 = vpop.f32.mrf.mxu0
      %v2638 = vadd.f32 %v2549, %v2637
      %v2639 = vpop.f32.mrf.mxu0
      %v2640 = vadd.f32 %v2551, %v2639
      %2641 = vmatmul.bf16.gmra.mxu0 %v1353
      %v2642 = vpop.f32.mrf.mxu0
      %v2643 = vadd.f32 %v2554, %v2642
      %v2644 = vpop.f32.mrf.mxu0
      %v2645 = vadd.f32 %v2556, %v2644
      %2646 = vdwg.mxu0
      %2647 = vmatpush.bf16.msra.mxu0 %v1862
      %2648 = vmatpush.bf16.msra.mxu0 %v1861
      %2649 = vmatpush.bf16.msra.mxu0 %v1860
      %2650 = vmatpush.bf16.msra.mxu0 %v1859
      %2651 = vmatpush.bf16.msra.mxu0 %v1858
      %2652 = vmatpush.bf16.msra.mxu0 %v1857
      %2653 = vmatpush.bf16.msra.mxu0 %v1856
      %2654 = vmatpush.bf16.msra.mxu0 %v1855
      %2655 = vmatmul.bf16.gmra.mxu0 %v1305
      %v2656 = vpop.f32.mrf.mxu0
      %v2657 = vadd.f32 %v2568, %v2656
      %v2658 = vpop.f32.mrf.mxu0
      %v2659 = vadd.f32 %v2570, %v2658
      %2660 = vmatmul.bf16.gmra.mxu0 %v1306
      %v2661 = vpop.f32.mrf.mxu0
      %v2662 = vadd.f32 %v2573, %v2661
      %v2663 = vpop.f32.mrf.mxu0
      %v2664 = vadd.f32 %v2575, %v2663
      %2665 = vmatmul.bf16.gmra.mxu0 %v1307
      %v2666 = vpop.f32.mrf.mxu0
      %v2667 = vadd.f32 %v2578, %v2666
      %v2668 = vpop.f32.mrf.mxu0
      %v2669 = vadd.f32 %v2580, %v2668
      %2670 = vmatmul.bf16.gmra.mxu0 %v1308
      %v2671 = vpop.f32.mrf.mxu0
      %v2672 = vadd.f32 %v2583, %v2671
      %v2673 = vpop.f32.mrf.mxu0
      %v2674 = vadd.f32 %v2585, %v2673
      %2675 = vmatmul.bf16.gmra.mxu0 %v1309
      %v2676 = vpop.f32.mrf.mxu0
      %v2677 = vadd.f32 %v2588, %v2676
      %v2678 = vpop.f32.mrf.mxu0
      %v2679 = vadd.f32 %v2590, %v2678
      %2680 = vmatmul.bf16.gmra.mxu0 %v1310
      %v2681 = vpop.f32.mrf.mxu0
      %v2682 = vadd.f32 %v2593, %v2681
      %v2683 = vpop.f32.mrf.mxu0
      %v2684 = vadd.f32 %v2595, %v2683
      %2685 = vmatmul.bf16.gmra.mxu0 %v1311
      %v2686 = vpop.f32.mrf.mxu0
      %v2687 = vadd.f32 %v2598, %v2686
      %v2688 = vpop.f32.mrf.mxu0
      %v2689 = vadd.f32 %v2600, %v2688
      %2690 = vmatmul.bf16.gmra.mxu0 %v1312
      %v2691 = vpop.f32.mrf.mxu0
      %v2692 = vadd.f32 %v2603, %v2691
      %v2693 = vpop.f32.mrf.mxu0
      %v2694 = vadd.f32 %v2605, %v2693
      %2695 = vmatmul.bf16.gmra.mxu0 %v1313
      %v2696 = vpop.f32.mrf.mxu0
      %v2697 = vadd.f32 %v2608, %v2696
      %v2698 = vpop.f32.mrf.mxu0
      %v2699 = vadd.f32 %v2610, %v2698
      %2700 = vmatmul.bf16.gmra.mxu0 %v1314
      %v2701 = vpop.f32.mrf.mxu0
      %v2702 = vadd.f32 %v2613, %v2701
      %v2703 = vpop.f32.mrf.mxu0
      %v2704 = vadd.f32 %v2615, %v2703
      %2705 = vmatmul.bf16.gmra.mxu0 %v1315
      %v2706 = vpop.f32.mrf.mxu0
      %v2707 = vadd.f32 %v2618, %v2706
      %v2708 = vpop.f32.mrf.mxu0
      %v2709 = vadd.f32 %v2620, %v2708
      %2710 = vmatmul.bf16.gmra.mxu0 %v1316
      %v2711 = vpop.f32.mrf.mxu0
      %v2712 = vadd.f32 %v2623, %v2711
      %v2713 = vpop.f32.mrf.mxu0
      %v2714 = vadd.f32 %v2625, %v2713
      %2715 = vmatmul.bf16.gmra.mxu0 %v1317
      %v2716 = vpop.f32.mrf.mxu0
      %v2717 = vadd.f32 %v2628, %v2716
      %v2718 = vpop.f32.mrf.mxu0
      %v2719 = vadd.f32 %v2630, %v2718
      %2720 = vmatmul.bf16.gmra.mxu0 %v1318
      %v2721 = vpop.f32.mrf.mxu0
      %v2722 = vadd.f32 %v2633, %v2721
      %v2723 = vpop.f32.mrf.mxu0
      %v2724 = vadd.f32 %v2635, %v2723
      %2725 = vmatmul.bf16.gmra.mxu0 %v1345
      %v2726 = vpop.f32.mrf.mxu0
      %v2727 = vadd.f32 %v2638, %v2726
      %v2728 = vpop.f32.mrf.mxu0
      %v2729 = vadd.f32 %v2640, %v2728
      %2730 = vmatmul.bf16.gmra.mxu0 %v1357
      %v2731 = vpop.f32.mrf.mxu0
      %v2732 = vadd.f32 %v2643, %v2731
      %v2733 = vpop.f32.mrf.mxu0
      %v2734 = vadd.f32 %v2645, %v2733
      %2735 = vdwg.mxu0
      %2736 = vst [vmem:[%s204] sm:$0xff] %v2657
      %2737 = vst [vmem:[%s204 + $0x8] sm:$0xff] %v2659
      %2738 = vst [vmem:[%s204 + $0x10] sm:$0xff] %v2662
      %2739 = vst [vmem:[%s204 + $0x18] sm:$0xff] %v2664
      %2740 = vst [vmem:[%s204 + $0x20] sm:$0xff] %v2667
      %2741 = vst [vmem:[%s204 + $0x28] sm:$0xff] %v2669
      %2742 = vst [vmem:[%s204 + $0x30] sm:$0xff] %v2672
      %2743 = vst [vmem:[%s204 + $0x38] sm:$0xff] %v2674
      %2744 = vst [vmem:[%s204 + $0x40] sm:$0xff] %v2677
      %2745 = vst [vmem:[%s204 + $0x48] sm:$0xff] %v2679
      %2746 = vst [vmem:[%s204 + $0x50] sm:$0xff] %v2682
      %2747 = vst [vmem:[%s204 + $0x58] sm:$0xff] %v2684
      %2748 = vst [vmem:[%s204 + $0x60] sm:$0xff] %v2687
      %2749 = vst [vmem:[%s204 + $0x68] sm:$0xff] %v2689
      %2750 = vst [vmem:[%s204 + $0x70] sm:$0xff] %v2692
      %2751 = vst [vmem:[%s204 + $0x78] sm:$0xff] %v2694
      %2752 = vst [vmem:[%s204 + $0x80] sm:$0xff] %v2697
      %2753 = vst [vmem:[%s204 + $0x88] sm:$0xff] %v2699
      %2754 = vst [vmem:[%s204 + $0x90] sm:$0xff] %v2702
      %2755 = vst [vmem:[%s204 + $0x98] sm:$0xff] %v2704
      %2756 = vst [vmem:[%s204 + $0xa0] sm:$0xff] %v2707
      %2757 = vst [vmem:[%s204 + $0xa8] sm:$0xff] %v2709
      %2758 = vst [vmem:[%s204 + $0xb0] sm:$0xff] %v2712
      %2759 = vst [vmem:[%s204 + $0xb8] sm:$0xff] %v2714
      %2760 = vst [vmem:[%s204 + $0xc0] sm:$0xff] %v2717
      %2761 = vst [vmem:[%s204 + $0xc8] sm:$0xff] %v2719
      %2762 = vst [vmem:[%s204 + $0xd0] sm:$0xff] %v2722
      %2763 = vst [vmem:[%s204 + $0xd8] sm:$0xff] %v2724
      %2764 = vst [vmem:[%s204 + $0xe0] sm:$0xff] %v2727
      %2765 = vst [vmem:[%s204 + $0xe8] sm:$0xff] %v2729
      %2766 = vst [vmem:[%s204 + $0xf0] sm:$0xff] %v2732
      %2767 = vst [vmem:[%s204 + $0xf8] sm:$0xff] %v2734
      %v2768 = vadd.f32 %v2657, %v2659
      %v2769 = vadd.f32 %v2768, %v2662
      %v2770 = vadd.f32 %v2769, %v2664
      %v2771 = vadd.f32 %v2770, %v2667
      %v2772 = vadd.f32 %v2771, %v2669
      %v2773 = vadd.f32 %v2772, %v2672
      %v2774 = vadd.f32 %v2773, %v2674
      %v2775 = vadd.f32 %v2774, %v2677
      %v2776 = vadd.f32 %v2775, %v2679
      %v2777 = vadd.f32 %v2776, %v2682
      %v2778 = vadd.f32 %v2777, %v2684
      %v2779 = vadd.f32 %v2778, %v2687
      %v2780 = vadd.f32 %v2779, %v2689
      %v2781 = vadd.f32 %v2780, %v2692
      %v2782 = vadd.f32 %v2781, %v2694
      %v2783 = vadd.f32 %v2782, %v2697
      %v2784 = vadd.f32 %v2783, %v2699
      %v2785 = vadd.f32 %v2784, %v2702
      %v2786 = vadd.f32 %v2785, %v2704
      %v2787 = vadd.f32 %v2786, %v2707
      %v2788 = vadd.f32 %v2787, %v2709
      %v2789 = vadd.f32 %v2788, %v2712
      %v2790 = vadd.f32 %v2789, %v2714
      %v2791 = vadd.f32 %v2790, %v2717
      %v2792 = vadd.f32 %v2791, %v2719
      %v2793 = vadd.f32 %v2792, %v2722
      %v2794 = vadd.f32 %v2793, %v2724
      %v2795 = vadd.f32 %v2794, %v2727
      %v2796 = vadd.f32 %v2795, %v2729
      %v2797 = vadd.f32 %v2796, %v2732
      %v2798 = vadd.f32 %v2797, %v2734
      %v2799 = vrot.slane %v2798, 4
      %v2800 = vadd.f32 %v2798, %v2799
      %v2801 = vrot.slane %v2800, 2
      %v2802 = vadd.f32 %v2800, %v2801
      %v2803 = vrot.slane %v2802, 1
      %v2804 = vadd.f32 %v2802, %v2803
      %v2805 = vmul.f32 %v2657, %v2657
      %v2806 = vmul.f32 %v2659, %v2659
      %v2807 = vmul.f32 %v2662, %v2662
      %v2808 = vmul.f32 %v2664, %v2664
      %v2809 = vmul.f32 %v2667, %v2667
      %v2810 = vmul.f32 %v2669, %v2669
      %v2811 = vmul.f32 %v2672, %v2672
      %v2812 = vmul.f32 %v2674, %v2674
      %v2813 = vmul.f32 %v2677, %v2677
      %v2814 = vmul.f32 %v2679, %v2679
      %v2815 = vmul.f32 %v2682, %v2682
      %v2816 = vmul.f32 %v2684, %v2684
      %v2817 = vmul.f32 %v2687, %v2687
      %v2818 = vmul.f32 %v2689, %v2689
      %v2819 = vmul.f32 %v2692, %v2692
      %v2820 = vmul.f32 %v2694, %v2694
      %v2821 = vmul.f32 %v2697, %v2697
      %v2822 = vmul.f32 %v2699, %v2699
      %v2823 = vmul.f32 %v2702, %v2702
      %v2824 = vmul.f32 %v2704, %v2704
      %v2825 = vmul.f32 %v2707, %v2707
      %v2826 = vmul.f32 %v2709, %v2709
      %v2827 = vmul.f32 %v2712, %v2712
      %v2828 = vmul.f32 %v2714, %v2714
      %v2829 = vmul.f32 %v2717, %v2717
      %v2830 = vmul.f32 %v2719, %v2719
      %v2831 = vmul.f32 %v2722, %v2722
      %v2832 = vmul.f32 %v2724, %v2724
      %v2833 = vmul.f32 %v2727, %v2727
      %v2834 = vmul.f32 %v2729, %v2729
      %v2835 = vmul.f32 %v2732, %v2732
      %v2836 = vmul.f32 %v2734, %v2734
      %v2837 = vadd.f32 %v2805, %v2806
      %v2838 = vadd.f32 %v2837, %v2807
      %v2839 = vadd.f32 %v2838, %v2808
      %v2840 = vadd.f32 %v2839, %v2809
      %v2841 = vadd.f32 %v2840, %v2810
      %v2842 = vadd.f32 %v2841, %v2811
      %v2843 = vadd.f32 %v2842, %v2812
      %v2844 = vadd.f32 %v2843, %v2813
      %v2845 = vadd.f32 %v2844, %v2814
      %v2846 = vadd.f32 %v2845, %v2815
      %v2847 = vadd.f32 %v2846, %v2816
      %v2848 = vadd.f32 %v2847, %v2817
      %v2849 = vadd.f32 %v2848, %v2818
      %v2850 = vadd.f32 %v2849, %v2819
      %v2851 = vadd.f32 %v2850, %v2820
      %v2852 = vadd.f32 %v2851, %v2821
      %v2853 = vadd.f32 %v2852, %v2822
      %v2854 = vadd.f32 %v2853, %v2823
      %v2855 = vadd.f32 %v2854, %v2824
      %v2856 = vadd.f32 %v2855, %v2825
      %v2857 = vadd.f32 %v2856, %v2826
      %v2858 = vadd.f32 %v2857, %v2827
      %v2859 = vadd.f32 %v2858, %v2828
      %v2860 = vadd.f32 %v2859, %v2829
      %v2861 = vadd.f32 %v2860, %v2830
      %v2862 = vadd.f32 %v2861, %v2831
      %v2863 = vadd.f32 %v2862, %v2832
      %v2864 = vadd.f32 %v2863, %v2833
      %v2865 = vadd.f32 %v2864, %v2834
      %v2866 = vadd.f32 %v2865, %v2835
      %v2867 = vadd.f32 %v2866, %v2836
      %v2868 = vrot.slane %v2867, 4
      %v2869 = vadd.f32 %v2867, %v2868
      %v2870 = vrot.slane %v2869, 2
      %v2871 = vadd.f32 %v2869, %v2870
      %v2872 = vrot.slane %v2871, 1
      %v2873 = vadd.f32 %v2871, %v2872
      %vm2874 = vcmask 1040384
      %v2875 = vsel %vm2874, %v2804, %v2873
      %2876 = vst [vmem:[%s208] sm:$0x3] %v2875
      %p2877 = scmp.lt.s32.totalorder %s16, 1
      %s2878 = scalar_select %p2877, %s16, 1
      %s2879 = smul.addr %s2878, 32
      %s2880 = smul.addr %s2879, 8
      %s2881 = scalar_lea.vmem %s3, %s2880
      %p2882 = scmp.lt.s32.totalorder %s16, 1
      %s2883 = scalar_select %p2882, %s16, 1
      %s2884 = smul.addr %s2883, 2
      %s2885 = scalar_lea.vmem %s4, %s2884
      // Predicated region
      $region33: #{residual_block.4} parent=31 // pred_check
        %p2886 = pneg %p102
      $region34: #{residual_block.4} parent=31 // pred_check_branch
        %2888 = sbr.rel (%p2886) target = $region36
      $region35: #{residual_block.4} parent=31 // pred_region
        _
      $region36: #{residual_block.4} parent=31 // pred_fallthru
        _
      // Predicated region
      $region37: #{residual_block.4} parent=31 // pred_check
        %p2889 = pneg %p128
      $region38: #{residual_block.4} parent=31 // pred_check_branch
        %2891 = sbr.rel (%p2889) target = $region40
      $region39: #{residual_block.4} parent=31 // pred_region
        _
      $region40: #{residual_block.4} parent=31 // pred_fallthru
        _
    $region32: #{residual_block.4} parent=5 // pred_fallthru
      _
    %p2892 = scmp.le.s32.totalorder 2, %s11
    // Predicated region
    $region41: #{residual_block.4} parent=5 // pred_check
      %p2893 = pneg %p2892
    $region42: #{residual_block.4} parent=5 // pred_check_branch
      %2895 = sbr.rel (%p2893) target = $region44
    $region43: #{residual_block.4} parent=5 // pred_region
      %s2896 = ssub.s32 %s11, 2
      // Predicated region
      $region45: #{residual_block.4} parent=43 // pred_check
        %p2897 = pneg %p108
      $region46: #{residual_block.4} parent=43 // pred_check_branch
        %2899 = sbr.rel (%p2897) target = $region48
      $region47: #{residual_block.4} parent=43 // pred_region
        %p2900 = scmp.lt.s32.totalorder %s17, 1
        %s2901 = scalar_select %p2900, %s17, 1
        %s2902 = smul.addr %s2901, 32
        %s2903 = smul.addr %s2902, 8
        %s2904 = scalar_lea.vmem %s3, %s2903
      $region48: #{residual_block.4} parent=43 // pred_fallthru
        _
      // Predicated region
      $region49: #{residual_block.4} parent=43 // pred_check
        %p2905 = pneg %p134
      $region50: #{residual_block.4} parent=43 // pred_check_branch
        %2907 = sbr.rel (%p2905) target = $region52
      $region51: #{residual_block.4} parent=43 // pred_region
        %p2908 = scmp.lt.s32.totalorder %s17, 1
        %s2909 = scalar_select %p2908, %s17, 1
        %s2910 = smul.addr %s2909, 2
        %s2911 = scalar_lea.vmem %s4, %s2910
      $region52: #{residual_block.4} parent=43 // pred_fallthru
        _
    $region44: #{residual_block.4} parent=5 // pred_fallthru
      _
  $region6: #{residual_block.4} parent=0 // loop_footer
    %s15 = sadd.s32 1, %s11
  $region7: #{residual_block.4} parent=0 // loop_footer_branch
    %10 = sbr.rel target = $region3
  $region8: #{residual_block.4} parent=0 // loop_exit
    _

</llo_original>
